<compile_context>
chip_gen: v6e
topology: v6e:2x2x1
jax: 0.10.0
libtpu: 0.0.40
codegen_flags: <defaults>
</compile_context>

<pallas_src>
import jax
import jax.numpy as jnp
from jax import lax
from jax.experimental import pallas as pl
from jax.experimental.pallas import tpu as pltpu

HIDDEN_DIM = 600
BN_EPS = 1e-5
SOFTPLUS_THRESHOLD = 20.0   # PyTorch nn.Softplus default threshold
LANE = 128


def _round_up(n, m):
    return ((n + m - 1) // m) * m


HID_PAD = _round_up(HIDDEN_DIM, LANE)   # 640
LAT_PAD = LANE                          # latent padded to one full lane group


# ---------------------------------------------------------------------------
# Fused VAE forward kernel
# ---------------------------------------------------------------------------
def vae_kernel(
    # auto-DMA'd inputs (VMEM)
    x_ref, eps_ref, w0_ref, hslab_ref, lslab_ref, b4_ref,
    # HBM-resident weights (manual layer-ahead prefetch)
    w1_hbm, wml_hbm, w2_hbm, w3_hbm, w4_hbm,
    # outputs
    recon_ref, mu_ref, logvar_ref,
    # scratch: VMEM landing buffers + per-weight DMA semaphores
    w1_v, wml_v, w2_v, w3_v, w4_v, sem,
):
    lp = mu_ref.shape[1]          # padded latent width (static)

    # ---- layer-ahead weight prefetch chain ---------------------------------
    # Issue every copy up-front (in usage order); wait right before each dot so
    # the DMA engine streams the next layer's weights while this layer computes.
    cps = [
        pltpu.make_async_copy(w1_hbm, w1_v, sem.at[0]),
        pltpu.make_async_copy(wml_hbm, wml_v, sem.at[1]),
        pltpu.make_async_copy(w2_hbm, w2_v, sem.at[2]),
        pltpu.make_async_copy(w3_hbm, w3_v, sem.at[3]),
        pltpu.make_async_copy(w4_hbm, w4_v, sem.at[4]),
    ]
    for cp in cps:
        cp.start()

    hs = hslab_ref[...]
    ls = lslab_ref[...]

    def row(slab, i):             # static (1, N) row slice of a loaded slab
        return slab[i:i + 1, :]

    def lin(a_bf16, w_ref, b):
        # bf16 operands on the MXU, f32 accumulation, f32 bias add.
        return jnp.dot(a_bf16, w_ref[...], preferred_element_type=jnp.float32) + b

    def bn(h, g, be):
        # Training-mode BatchNorm1d, one-pass stats, folded per-channel scale.
        m = jnp.mean(h, axis=0, keepdims=True)
        var = jnp.mean(h * h, axis=0, keepdims=True) - m * m
        scale = g * lax.rsqrt(var + BN_EPS)
        return h * scale + (be - m * scale)

    def sp(h):
        # PyTorch Softplus (beta=1, threshold=20); bf16 result feeds the next MXU op.
        safe = jnp.minimum(h, SOFTPLUS_THRESHOLD)
        return jnp.where(h > SOFTPLUS_THRESHOLD, h,
                         jnp.log1p(jnp.exp(safe))).astype(jnp.bfloat16)

    x = x_ref[...].astype(jnp.bfloat16)

    # encoder
    h = sp(bn(lin(x, w0_ref, row(hs, 0)), row(hs, 1), row(hs, 2)))
    cps[0].wait()
    h = sp(bn(lin(h, w1_v, row(hs, 3)), row(hs, 4), row(hs, 5)))

    # fused fc_mu / fc_logvar: one (HID_PAD, 2*LAT_PAD) matmul + BN, then slice.
    cps[1].wait()
    ml = bn(lin(h, wml_v, row(ls, 0)), row(ls, 1), row(ls, 2))
    mu = ml[:, :lp]
    logvar = ml[:, lp:]

    # reparameterize
    z = (mu + eps_ref[...] * jnp.exp(0.5 * logvar)).astype(jnp.bfloat16)

    # decoder
    cps[2].wait()
    d = sp(bn(lin(z, w2_v, row(hs, 6)), row(hs, 7), row(hs, 8)))
    cps[3].wait()
    d = sp(bn(lin(d, w3_v, row(hs, 9)), row(hs, 10), row(hs, 11)))
    cps[4].wait()
    recon = lin(d, w4_v, b4_ref[...])

    recon_ref[...] = recon
    mu_ref[...] = mu
    logvar_ref[...] = logvar


# ---------------------------------------------------------------------------
# Wrapper
# ---------------------------------------------------------------------------
def vae_forward(x_nchw, eps, packed):
    """Fused VAE forward.  x_nchw: (B, C, H, W) f32, eps: (B, latent_dim) f32."""
    B = x_nchw.shape[0]
    x2d = x_nchw.reshape(B, -1).astype(jnp.float32)
    input_dim = x2d.shape[1]
    latent_dim = eps.shape[1]
    in_pad = _round_up(input_dim, LANE)

    x_p = jnp.pad(x2d, ((0, 0), (0, in_pad - input_dim)))
    eps_p = jnp.pad(eps.astype(jnp.float32), ((0, 0), (0, LAT_PAD - latent_dim)))

    (w0p, w1p, wml, w2p, w3p, w4p, hslab, lslab, b4p) = packed

    # Advisory cost estimate so XLA schedules the surrounding graph well.
    flops = int(2 * B * (in_pad * HID_PAD + HID_PAD * HID_PAD
                         + HID_PAD * 2 * LAT_PAD + LAT_PAD * HID_PAD
                         + HID_PAD * HID_PAD + HID_PAD * in_pad))
    transcend = int(B * (4 * HID_PAD * 2 + 3 * LAT_PAD))
    bytes_acc = int(sum(int(a.size) * a.dtype.itemsize for a in packed)
                    + (int(x_p.size) + int(eps_p.size)) * 4
                    + B * (in_pad + 2 * LAT_PAD) * 4)

    vmem = pl.BlockSpec(memory_space=pltpu.MemorySpace.VMEM)
    hbm = pl.BlockSpec(memory_space=pl.ANY)

    recon_p, mu_p, logvar_p = pl.pallas_call(
        vae_kernel,
        out_shape=(
            jax.ShapeDtypeStruct((B, in_pad), jnp.float32),
            jax.ShapeDtypeStruct((B, LAT_PAD), jnp.float32),
            jax.ShapeDtypeStruct((B, LAT_PAD), jnp.float32),
        ),
        in_specs=[vmem, vmem, vmem, vmem, vmem, vmem,   # x, eps, w0, hslab, lslab, b4
                  hbm, hbm, hbm, hbm, hbm],             # w1, wml, w2, w3, w4 (manual DMA)
        out_specs=(vmem, vmem, vmem),
        scratch_shapes=[
            pltpu.VMEM(w1p.shape, jnp.bfloat16),
            pltpu.VMEM(wml.shape, jnp.bfloat16),
            pltpu.VMEM(w2p.shape, jnp.bfloat16),
            pltpu.VMEM(w3p.shape, jnp.bfloat16),
            pltpu.VMEM(w4p.shape, jnp.bfloat16),
            pltpu.SemaphoreType.DMA((5,)),
        ],
        compiler_params=pltpu.CompilerParams(vmem_limit_bytes=16 << 20),
        cost_estimate=pl.CostEstimate(flops=flops, transcendentals=transcend,
                                      bytes_accessed=bytes_acc),
    )(x_p, eps_p, w0p, hslab, lslab, b4p, w1p, wml, w2p, w3p, w4p)

    return (recon_p[:, :input_dim],
            mu_p[:, :latent_dim],
            logvar_p[:, :latent_dim])


# ---------------------------------------------------------------------------
# Parameter construction (logical dims) and packing to kernel layout
# ---------------------------------------------------------------------------
def init_params(key, input_dim, latent_dim):
    keys = iter(jax.random.split(key, 64))

    def linear(in_f, out_f):
        w = jax.random.normal(next(keys), (in_f, out_f), jnp.float32) * (1.0 / jnp.sqrt(in_f))
        b = jax.random.normal(next(keys), (1, out_f), jnp.float32) * 0.01
        return w, b

    def bn(feat):
        gamma = 1.0 + 0.1 * jax.random.normal(next(keys), (1, feat), jnp.float32)
        beta = 0.1 * jax.random.normal(next(keys), (1, feat), jnp.float32)
        return gamma, beta

    params = []
    params += [*linear(input_dim, HIDDEN_DIM), *bn(HIDDEN_DIM)]    # encoder 0
    params += [*linear(HIDDEN_DIM, HIDDEN_DIM), *bn(HIDDEN_DIM)]   # encoder 1
    params += [*linear(HIDDEN_DIM, latent_dim), *bn(latent_dim)]   # fc_mu + bn_mu
    params += [*linear(HIDDEN_DIM, latent_dim), *bn(latent_dim)]   # fc_logvar + bn_logvar
    params += [*linear(latent_dim, HIDDEN_DIM), *bn(HIDDEN_DIM)]   # decoder 0
    params += [*linear(HIDDEN_DIM, HIDDEN_DIM), *bn(HIDDEN_DIM)]   # decoder 1
    params += [*linear(HIDDEN_DIM, input_dim)]                     # decoder out
    return params


def pack_params(params, input_dim, latent_dim):
    """Pad to lane-dense shapes, cast weights to bf16, pack small vectors."""
    (w0, b0, g0, be0, w1, b1, g1, be1,
     wmu, bmu, gmu, bemu, wlv, blv, glv, belv,
     w2, b2, g2, be2, w3, b3, g3, be3, w4, b4) = params

    in_pad = _round_up(input_dim, LANE)

    def pad2(a, r, c):
        return jnp.pad(a, ((0, r - a.shape[0]), (0, c - a.shape[1])))

    def padrow(a, c):  # (1, n) -> (1, c), zero-padded
        return jnp.pad(a, ((0, 0), (0, c - a.shape[1])))

    # Weights: zero-padded rows/cols (pad-channel invariant), bf16 for the MXU.
    w0p = pad2(w0, in_pad, HID_PAD).astype(jnp.bfloat16)
    w1p = pad2(w1, HID_PAD, HID_PAD).astype(jnp.bfloat16)
    wml = pad2(jnp.concatenate([pad2(wmu, HIDDEN_DIM, LAT_PAD),
                                pad2(wlv, HIDDEN_DIM, LAT_PAD)], axis=1),
               HID_PAD, 2 * LAT_PAD).astype(jnp.bfloat16)
    w2p = pad2(w2, LAT_PAD, HID_PAD).astype(jnp.bfloat16)
    w3p = pad2(w3, HID_PAD, HID_PAD).astype(jnp.bfloat16)
    w4p = pad2(w4, HID_PAD, in_pad).astype(jnp.bfloat16)

    # Hidden-width bias/gamma/beta slab: pad channels get gamma=0, beta=0.
    hrows = [b0, g0, be0, b1, g1, be1, b2, g2, be2, b3, g3, be3]
    hslab = jnp.concatenate([padrow(r, HID_PAD) for r in hrows], axis=0)
    hslab = jnp.pad(hslab, ((0, 16 - hslab.shape[0]), (0, 0)))        # (16, HID_PAD)

    # Latent slab for the fused mu|logvar layer.
    ml_b = jnp.concatenate([padrow(bmu, LAT_PAD), padrow(blv, LAT_PAD)], axis=1)
    ml_g = jnp.concatenate([padrow(gmu, LAT_PAD), padrow(glv, LAT_PAD)], axis=1)
    ml_be = jnp.concatenate([padrow(bemu, LAT_PAD), padrow(belv, LAT_PAD)], axis=1)
    lslab = jnp.concatenate([ml_b, ml_g, ml_be], axis=0)
    lslab = jnp.pad(lslab, ((0, 8 - lslab.shape[0]), (0, 0)))         # (8, 2*LAT_PAD)

    b4p = padrow(b4, in_pad)                                          # (1, in_pad)

    return (w0p, w1p, wml, w2p, w3p, w4p, hslab, lslab, b4p)


# ---------------------------------------------------------------------------
# Pure-JAX reference (logical dims; same bf16-operand / f32-accumulate matmuls)
# ---------------------------------------------------------------------------
def vae_reference(x_nchw, eps, params):
    x = x_nchw.reshape(x_nchw.shape[0], -1)

    def lin(a, w, b):
        return jnp.dot(a.astype(jnp.bfloat16), w.astype(jnp.bfloat16),
                       preferred_element_type=jnp.float32) + b

    def bn(h, g, b):
        m = jnp.mean(h, axis=0, keepdims=True)
        v = jnp.mean((h - m) ** 2, axis=0, keepdims=True)
        return g * (h - m) / jnp.sqrt(v + BN_EPS) + b

    def sp(h):
        return jnp.where(h > SOFTPLUS_THRESHOLD, h,
                         jnp.log1p(jnp.exp(jnp.minimum(h, SOFTPLUS_THRESHOLD))))

    (w0, b0, g0, be0, w1, b1, g1, be1,
     wmu, bmu, gmu, bemu, wlv, blv, glv, belv,
     w2, b2, g2, be2, w3, b3, g3, be3, w4, b4) = params

    h = sp(bn(lin(x, w0, b0), g0, be0))
    h = sp(bn(lin(h, w1, b1), g1, be1))
    mu = bn(lin(h, wmu, bmu), gmu, bemu)
    logvar = bn(lin(h, wlv, blv), glv, belv)
    z = mu + eps * jnp.exp(0.5 * logvar)
    d = sp(bn(lin(z, w2, b2), g2, be2))
    d = sp(bn(lin(d, w3, b3), g3, be3))
    recon = lin(d, w4, b4)
    return recon, mu, logvar


if __name__ == "__main__":
    # Small synthetic shapes: x is NCHW (B, C, H, W) -> flattened feature dim.
    B, C, H, W = 8, 4, 8, 8
    input_dim = C * H * W          # 256
    latent_dim = 32

    key = jax.random.PRNGKey(0)
    kx, keps, kp = jax.random.split(key, 3)

    x = jax.random.normal(kx, (B, C, H, W), jnp.float32)
    eps = jax.random.normal(keps, (B, latent_dim), jnp.float32)  # randn_like(std)
    params = init_params(kp, input_dim, latent_dim)
    packed = pack_params(params, input_dim, latent_dim)

    recon, mu, logvar = jax.block_until_ready(vae_forward(x, eps, packed))

    # Spot-check against a pure-JAX reference with matched matmul precision.
    r_ref, mu_ref, lv_ref = vae_reference(x, eps, params)
    assert recon.shape == (B, input_dim)
    assert mu.shape == (B, latent_dim) and logvar.shape == (B, latent_dim)
    assert jnp.allclose(mu, mu_ref, atol=3e-3, rtol=3e-3)
    assert jnp.allclose(logvar, lv_ref, atol=3e-3, rtol=3e-3)
    assert jnp.allclose(recon, r_ref, atol=3e-3, rtol=3e-3)

    print("KERNEL_OK")
</pallas_src>

<mosaic_0001>
module attributes {stable_mosaic.version = 11 : i64} {
  func.func @vae_kernel(%arg0: memref<8x256xf32, #tpu.memory_space<vmem>>, %arg1: memref<8x128xf32, #tpu.memory_space<vmem>>, %arg2: memref<256x640xbf16, #tpu.memory_space<vmem>>, %arg3: memref<16x640xf32, #tpu.memory_space<vmem>>, %arg4: memref<8x256xf32, #tpu.memory_space<vmem>>, %arg5: memref<1x256xf32, #tpu.memory_space<vmem>>, %arg6: memref<640x640xbf16, #tpu.memory_space<any>>, %arg7: memref<640x256xbf16, #tpu.memory_space<any>>, %arg8: memref<128x640xbf16, #tpu.memory_space<any>>, %arg9: memref<640x640xbf16, #tpu.memory_space<any>>, %arg10: memref<640x256xbf16, #tpu.memory_space<any>>, %arg11: memref<8x256xf32, #tpu.memory_space<vmem>>, %arg12: memref<8x128xf32, #tpu.memory_space<vmem>>, %arg13: memref<8x128xf32, #tpu.memory_space<vmem>>, %arg14: memref<640x640xbf16, #tpu.memory_space<vmem>>, %arg15: memref<640x256xbf16, #tpu.memory_space<vmem>>, %arg16: memref<128x640xbf16, #tpu.memory_space<vmem>>, %arg17: memref<640x640xbf16, #tpu.memory_space<vmem>>, %arg18: memref<640x256xbf16, #tpu.memory_space<vmem>>, %arg19: memref<5x!tpu.dma_semaphore, #tpu.memory_space<semaphore_mem>>) attributes {dimension_semantics = [], scalar_prefetch = 0 : i64, scratch_operands = 6 : i64, tpu.core_type = #tpu.core_type<tc>} {
    %c0_i32 = arith.constant 0 : i32
    %0 = tpu.memref_slice %arg19[%c0_i32] : memref<5x!tpu.dma_semaphore, #tpu.memory_space<semaphore_mem>> -> memref<1x!tpu.dma_semaphore, #tpu.memory_space<semaphore_mem>>
    %1 = tpu.memref_squeeze %0 : memref<1x!tpu.dma_semaphore, #tpu.memory_space<semaphore_mem>> -> memref<!tpu.dma_semaphore, #tpu.memory_space<semaphore_mem>>
    tpu.enqueue_dma source(%arg6 : memref<640x640xbf16, #tpu.memory_space<any>>) target(%arg14 : memref<640x640xbf16, #tpu.memory_space<vmem>>) target_semaphore(%1 : memref<!tpu.dma_semaphore, #tpu.memory_space<semaphore_mem>>)
    %c1_i32 = arith.constant 1 : i32
    %2 = tpu.memref_slice %arg19[%c1_i32] : memref<5x!tpu.dma_semaphore, #tpu.memory_space<semaphore_mem>> -> memref<1x!tpu.dma_semaphore, #tpu.memory_space<semaphore_mem>>
    %3 = tpu.memref_squeeze %2 : memref<1x!tpu.dma_semaphore, #tpu.memory_space<semaphore_mem>> -> memref<!tpu.dma_semaphore, #tpu.memory_space<semaphore_mem>>
    tpu.enqueue_dma source(%arg7 : memref<640x256xbf16, #tpu.memory_space<any>>) target(%arg15 : memref<640x256xbf16, #tpu.memory_space<vmem>>) target_semaphore(%3 : memref<!tpu.dma_semaphore, #tpu.memory_space<semaphore_mem>>)
    %c2_i32 = arith.constant 2 : i32
    %4 = tpu.memref_slice %arg19[%c2_i32] : memref<5x!tpu.dma_semaphore, #tpu.memory_space<semaphore_mem>> -> memref<1x!tpu.dma_semaphore, #tpu.memory_space<semaphore_mem>>
    %5 = tpu.memref_squeeze %4 : memref<1x!tpu.dma_semaphore, #tpu.memory_space<semaphore_mem>> -> memref<!tpu.dma_semaphore, #tpu.memory_space<semaphore_mem>>
    tpu.enqueue_dma source(%arg8 : memref<128x640xbf16, #tpu.memory_space<any>>) target(%arg16 : memref<128x640xbf16, #tpu.memory_space<vmem>>) target_semaphore(%5 : memref<!tpu.dma_semaphore, #tpu.memory_space<semaphore_mem>>)
    %c3_i32 = arith.constant 3 : i32
    %6 = tpu.memref_slice %arg19[%c3_i32] : memref<5x!tpu.dma_semaphore, #tpu.memory_space<semaphore_mem>> -> memref<1x!tpu.dma_semaphore, #tpu.memory_space<semaphore_mem>>
    %7 = tpu.memref_squeeze %6 : memref<1x!tpu.dma_semaphore, #tpu.memory_space<semaphore_mem>> -> memref<!tpu.dma_semaphore, #tpu.memory_space<semaphore_mem>>
    tpu.enqueue_dma source(%arg9 : memref<640x640xbf16, #tpu.memory_space<any>>) target(%arg17 : memref<640x640xbf16, #tpu.memory_space<vmem>>) target_semaphore(%7 : memref<!tpu.dma_semaphore, #tpu.memory_space<semaphore_mem>>)
    %c4_i32 = arith.constant 4 : i32
    %8 = tpu.memref_slice %arg19[%c4_i32] : memref<5x!tpu.dma_semaphore, #tpu.memory_space<semaphore_mem>> -> memref<1x!tpu.dma_semaphore, #tpu.memory_space<semaphore_mem>>
    %9 = tpu.memref_squeeze %8 : memref<1x!tpu.dma_semaphore, #tpu.memory_space<semaphore_mem>> -> memref<!tpu.dma_semaphore, #tpu.memory_space<semaphore_mem>>
    tpu.enqueue_dma source(%arg10 : memref<640x256xbf16, #tpu.memory_space<any>>) target(%arg18 : memref<640x256xbf16, #tpu.memory_space<vmem>>) target_semaphore(%9 : memref<!tpu.dma_semaphore, #tpu.memory_space<semaphore_mem>>)
    %c0 = arith.constant 0 : index
    %c0_0 = arith.constant 0 : index
    %10 = vector.load %arg3[%c0, %c0_0] : memref<16x640xf32, #tpu.memory_space<vmem>>, vector<16x640xf32>
    %c0_1 = arith.constant 0 : index
    %c0_2 = arith.constant 0 : index
    %11 = vector.load %arg4[%c0_1, %c0_2] : memref<8x256xf32, #tpu.memory_space<vmem>>, vector<8x256xf32>
    %c0_3 = arith.constant 0 : index
    %c0_4 = arith.constant 0 : index
    %12 = vector.load %arg0[%c0_3, %c0_4] : memref<8x256xf32, #tpu.memory_space<vmem>>, vector<8x256xf32>
    %13 = arith.truncf %12 : vector<8x256xf32> to vector<8x256xbf16>
    %14 = vector.extract_strided_slice %10 {offsets = [0, 0], sizes = [1, 640], strides = [1, 1]} : vector<16x640xf32> to vector<1x640xf32>
    %c0_5 = arith.constant 0 : index
    %c0_6 = arith.constant 0 : index
    %15 = vector.load %arg2[%c0_5, %c0_6] : memref<256x640xbf16, #tpu.memory_space<vmem>>, vector<256x640xbf16>
    %cst = arith.constant dense<0.000000e+00> : vector<8x640xf32>
    %16 = tpu.matmul %13, %15, %cst {dimension_numbers = #tpu.dot_dimension_numbers<[1], [0], [0], [1], [0, 0, 1, 1], [], []>} : vector<8x256xbf16>, vector<256x640xbf16>, vector<8x640xf32> -> vector<8x640xf32>
    %17 = vector.broadcast %14 : vector<1x640xf32> to vector<8x640xf32>
    %18 = arith.addf %16, %17 : vector<8x640xf32>
    %19 = vector.extract_strided_slice %10 {offsets = [1, 0], sizes = [1, 640], strides = [1, 1]} : vector<16x640xf32> to vector<1x640xf32>
    %20 = vector.extract_strided_slice %10 {offsets = [2, 0], sizes = [1, 640], strides = [1, 1]} : vector<16x640xf32> to vector<1x640xf32>
    %cst_7 = arith.constant dense<0.000000e+00> : vector<640xf32>
    %21 = vector.multi_reduction <add>, %18, %cst_7 [0] : vector<8x640xf32> to vector<640xf32>
    %22 = vector.shape_cast %21 : vector<640xf32> to vector<1x640xf32>
    %cst_8 = arith.constant 8.000000e+00 : f32
    %23 = vector.broadcast %cst_8 : f32 to vector<1x640xf32>
    %24 = arith.divf %22, %23 : vector<1x640xf32>
    %25 = arith.mulf %18, %18 : vector<8x640xf32>
    %cst_9 = arith.constant dense<0.000000e+00> : vector<640xf32>
    %26 = vector.multi_reduction <add>, %25, %cst_9 [0] : vector<8x640xf32> to vector<640xf32>
    %27 = vector.shape_cast %26 : vector<640xf32> to vector<1x640xf32>
    %cst_10 = arith.constant 8.000000e+00 : f32
    %28 = vector.broadcast %cst_10 : f32 to vector<1x640xf32>
    %29 = arith.divf %27, %28 : vector<1x640xf32>
    %30 = arith.mulf %24, %24 : vector<1x640xf32>
    %31 = arith.subf %29, %30 : vector<1x640xf32>
    %cst_11 = arith.constant 9.99999974E-6 : f32
    %32 = vector.broadcast %cst_11 : f32 to vector<1x640xf32>
    %33 = arith.addf %31, %32 : vector<1x640xf32>
    %34 = math.rsqrt %33 : vector<1x640xf32>
    %35 = arith.mulf %19, %34 : vector<1x640xf32>
    %36 = vector.broadcast %35 : vector<1x640xf32> to vector<8x640xf32>
    %37 = arith.mulf %18, %36 : vector<8x640xf32>
    %38 = arith.mulf %24, %35 : vector<1x640xf32>
    %39 = arith.subf %20, %38 : vector<1x640xf32>
    %40 = vector.broadcast %39 : vector<1x640xf32> to vector<8x640xf32>
    %41 = arith.addf %37, %40 : vector<8x640xf32>
    %cst_12 = arith.constant 2.000000e+01 : f32
    %42 = vector.broadcast %cst_12 : f32 to vector<8x640xf32>
    %43 = arith.minimumf %41, %42 : vector<8x640xf32>
    %cst_13 = arith.constant 2.000000e+01 : f32
    %44 = vector.broadcast %cst_13 : f32 to vector<8x640xf32>
    %45 = arith.cmpf ogt, %41, %44 : vector<8x640xf32>
    %46 = math.exp %43 : vector<8x640xf32>
    %47 = math.log1p %46 : vector<8x640xf32>
    %48 = arith.select %45, %41, %47 : vector<8x640xi1>, vector<8x640xf32>
    %49 = arith.truncf %48 : vector<8x640xf32> to vector<8x640xbf16>
    %c0_i32_14 = arith.constant 0 : i32
    %50 = tpu.memref_slice %arg19[%c0_i32_14] : memref<5x!tpu.dma_semaphore, #tpu.memory_space<semaphore_mem>> -> memref<1x!tpu.dma_semaphore, #tpu.memory_space<semaphore_mem>>
    %51 = tpu.memref_squeeze %50 : memref<1x!tpu.dma_semaphore, #tpu.memory_space<semaphore_mem>> -> memref<!tpu.dma_semaphore, #tpu.memory_space<semaphore_mem>>
    tpu.wait_dma2 semaphore(%51 : memref<!tpu.dma_semaphore, #tpu.memory_space<semaphore_mem>>) src(%arg6 : memref<640x640xbf16, #tpu.memory_space<any>>) dst(%arg14 : memref<640x640xbf16, #tpu.memory_space<vmem>>)
    %52 = vector.extract_strided_slice %10 {offsets = [3, 0], sizes = [1, 640], strides = [1, 1]} : vector<16x640xf32> to vector<1x640xf32>
    %c0_15 = arith.constant 0 : index
    %c0_16 = arith.constant 0 : index
    %53 = vector.load %arg14[%c0_15, %c0_16] : memref<640x640xbf16, #tpu.memory_space<vmem>>, vector<640x640xbf16>
    %cst_17 = arith.constant dense<0.000000e+00> : vector<8x640xf32>
    %54 = tpu.matmul %49, %53, %cst_17 {dimension_numbers = #tpu.dot_dimension_numbers<[1], [0], [0], [1], [0, 0, 1, 1], [], []>} : vector<8x640xbf16>, vector<640x640xbf16>, vector<8x640xf32> -> vector<8x640xf32>
    %55 = vector.broadcast %52 : vector<1x640xf32> to vector<8x640xf32>
    %56 = arith.addf %54, %55 : vector<8x640xf32>
    %57 = vector.extract_strided_slice %10 {offsets = [4, 0], sizes = [1, 640], strides = [1, 1]} : vector<16x640xf32> to vector<1x640xf32>
    %58 = vector.extract_strided_slice %10 {offsets = [5, 0], sizes = [1, 640], strides = [1, 1]} : vector<16x640xf32> to vector<1x640xf32>
    %cst_18 = arith.constant dense<0.000000e+00> : vector<640xf32>
    %59 = vector.multi_reduction <add>, %56, %cst_18 [0] : vector<8x640xf32> to vector<640xf32>
    %60 = vector.shape_cast %59 : vector<640xf32> to vector<1x640xf32>
    %cst_19 = arith.constant 8.000000e+00 : f32
    %61 = vector.broadcast %cst_19 : f32 to vector<1x640xf32>
    %62 = arith.divf %60, %61 : vector<1x640xf32>
    %63 = arith.mulf %56, %56 : vector<8x640xf32>
    %cst_20 = arith.constant dense<0.000000e+00> : vector<640xf32>
    %64 = vector.multi_reduction <add>, %63, %cst_20 [0] : vector<8x640xf32> to vector<640xf32>
    %65 = vector.shape_cast %64 : vector<640xf32> to vector<1x640xf32>
    %cst_21 = arith.constant 8.000000e+00 : f32
    %66 = vector.broadcast %cst_21 : f32 to vector<1x640xf32>
    %67 = arith.divf %65, %66 : vector<1x640xf32>
    %68 = arith.mulf %62, %62 : vector<1x640xf32>
    %69 = arith.subf %67, %68 : vector<1x640xf32>
    %cst_22 = arith.constant 9.99999974E-6 : f32
    %70 = vector.broadcast %cst_22 : f32 to vector<1x640xf32>
    %71 = arith.addf %69, %70 : vector<1x640xf32>
    %72 = math.rsqrt %71 : vector<1x640xf32>
    %73 = arith.mulf %57, %72 : vector<1x640xf32>
    %74 = vector.broadcast %73 : vector<1x640xf32> to vector<8x640xf32>
    %75 = arith.mulf %56, %74 : vector<8x640xf32>
    %76 = arith.mulf %62, %73 : vector<1x640xf32>
    %77 = arith.subf %58, %76 : vector<1x640xf32>
    %78 = vector.broadcast %77 : vector<1x640xf32> to vector<8x640xf32>
    %79 = arith.addf %75, %78 : vector<8x640xf32>
    %cst_23 = arith.constant 2.000000e+01 : f32
    %80 = vector.broadcast %cst_23 : f32 to vector<8x640xf32>
    %81 = arith.minimumf %79, %80 : vector<8x640xf32>
    %cst_24 = arith.constant 2.000000e+01 : f32
    %82 = vector.broadcast %cst_24 : f32 to vector<8x640xf32>
    %83 = arith.cmpf ogt, %79, %82 : vector<8x640xf32>
    %84 = math.exp %81 : vector<8x640xf32>
    %85 = math.log1p %84 : vector<8x640xf32>
    %86 = arith.select %83, %79, %85 : vector<8x640xi1>, vector<8x640xf32>
    %87 = arith.truncf %86 : vector<8x640xf32> to vector<8x640xbf16>
    %c1_i32_25 = arith.constant 1 : i32
    %88 = tpu.memref_slice %arg19[%c1_i32_25] : memref<5x!tpu.dma_semaphore, #tpu.memory_space<semaphore_mem>> -> memref<1x!tpu.dma_semaphore, #tpu.memory_space<semaphore_mem>>
    %89 = tpu.memref_squeeze %88 : memref<1x!tpu.dma_semaphore, #tpu.memory_space<semaphore_mem>> -> memref<!tpu.dma_semaphore, #tpu.memory_space<semaphore_mem>>
    tpu.wait_dma2 semaphore(%89 : memref<!tpu.dma_semaphore, #tpu.memory_space<semaphore_mem>>) src(%arg7 : memref<640x256xbf16, #tpu.memory_space<any>>) dst(%arg15 : memref<640x256xbf16, #tpu.memory_space<vmem>>)
    %90 = vector.extract_strided_slice %11 {offsets = [0, 0], sizes = [1, 256], strides = [1, 1]} : vector<8x256xf32> to vector<1x256xf32>
    %c0_26 = arith.constant 0 : index
    %c0_27 = arith.constant 0 : index
    %91 = vector.load %arg15[%c0_26, %c0_27] : memref<640x256xbf16, #tpu.memory_space<vmem>>, vector<640x256xbf16>
    %cst_28 = arith.constant dense<0.000000e+00> : vector<8x256xf32>
    %92 = tpu.matmul %87, %91, %cst_28 {dimension_numbers = #tpu.dot_dimension_numbers<[1], [0], [0], [1], [0, 0, 1, 1], [], []>} : vector<8x640xbf16>, vector<640x256xbf16>, vector<8x256xf32> -> vector<8x256xf32>
    %93 = vector.broadcast %90 : vector<1x256xf32> to vector<8x256xf32>
    %94 = arith.addf %92, %93 : vector<8x256xf32>
    %95 = vector.extract_strided_slice %11 {offsets = [1, 0], sizes = [1, 256], strides = [1, 1]} : vector<8x256xf32> to vector<1x256xf32>
    %96 = vector.extract_strided_slice %11 {offsets = [2, 0], sizes = [1, 256], strides = [1, 1]} : vector<8x256xf32> to vector<1x256xf32>
    %cst_29 = arith.constant dense<0.000000e+00> : vector<256xf32>
    %97 = vector.multi_reduction <add>, %94, %cst_29 [0] : vector<8x256xf32> to vector<256xf32>
    %98 = vector.shape_cast %97 : vector<256xf32> to vector<1x256xf32>
    %cst_30 = arith.constant 8.000000e+00 : f32
    %99 = vector.broadcast %cst_30 : f32 to vector<1x256xf32>
    %100 = arith.divf %98, %99 : vector<1x256xf32>
    %101 = arith.mulf %94, %94 : vector<8x256xf32>
    %cst_31 = arith.constant dense<0.000000e+00> : vector<256xf32>
    %102 = vector.multi_reduction <add>, %101, %cst_31 [0] : vector<8x256xf32> to vector<256xf32>
    %103 = vector.shape_cast %102 : vector<256xf32> to vector<1x256xf32>
    %cst_32 = arith.constant 8.000000e+00 : f32
    %104 = vector.broadcast %cst_32 : f32 to vector<1x256xf32>
    %105 = arith.divf %103, %104 : vector<1x256xf32>
    %106 = arith.mulf %100, %100 : vector<1x256xf32>
    %107 = arith.subf %105, %106 : vector<1x256xf32>
    %cst_33 = arith.constant 9.99999974E-6 : f32
    %108 = vector.broadcast %cst_33 : f32 to vector<1x256xf32>
    %109 = arith.addf %107, %108 : vector<1x256xf32>
    %110 = math.rsqrt %109 : vector<1x256xf32>
    %111 = arith.mulf %95, %110 : vector<1x256xf32>
    %112 = vector.broadcast %111 : vector<1x256xf32> to vector<8x256xf32>
    %113 = arith.mulf %94, %112 : vector<8x256xf32>
    %114 = arith.mulf %100, %111 : vector<1x256xf32>
    %115 = arith.subf %96, %114 : vector<1x256xf32>
    %116 = vector.broadcast %115 : vector<1x256xf32> to vector<8x256xf32>
    %117 = arith.addf %113, %116 : vector<8x256xf32>
    %118 = vector.extract_strided_slice %117 {offsets = [0, 0], sizes = [8, 128], strides = [1, 1]} : vector<8x256xf32> to vector<8x128xf32>
    %119 = vector.extract_strided_slice %117 {offsets = [0, 128], sizes = [8, 128], strides = [1, 1]} : vector<8x256xf32> to vector<8x128xf32>
    %c0_34 = arith.constant 0 : index
    %c0_35 = arith.constant 0 : index
    %120 = vector.load %arg1[%c0_34, %c0_35] : memref<8x128xf32, #tpu.memory_space<vmem>>, vector<8x128xf32>
    %cst_36 = arith.constant 5.000000e-01 : f32
    %121 = vector.broadcast %cst_36 : f32 to vector<8x128xf32>
    %122 = arith.mulf %121, %119 : vector<8x128xf32>
    %123 = math.exp %122 : vector<8x128xf32>
    %124 = arith.mulf %120, %123 : vector<8x128xf32>
    %125 = arith.addf %118, %124 : vector<8x128xf32>
    %126 = arith.truncf %125 : vector<8x128xf32> to vector<8x128xbf16>
    %c2_i32_37 = arith.constant 2 : i32
    %127 = tpu.memref_slice %arg19[%c2_i32_37] : memref<5x!tpu.dma_semaphore, #tpu.memory_space<semaphore_mem>> -> memref<1x!tpu.dma_semaphore, #tpu.memory_space<semaphore_mem>>
    %128 = tpu.memref_squeeze %127 : memref<1x!tpu.dma_semaphore, #tpu.memory_space<semaphore_mem>> -> memref<!tpu.dma_semaphore, #tpu.memory_space<semaphore_mem>>
    tpu.wait_dma2 semaphore(%128 : memref<!tpu.dma_semaphore, #tpu.memory_space<semaphore_mem>>) src(%arg8 : memref<128x640xbf16, #tpu.memory_space<any>>) dst(%arg16 : memref<128x640xbf16, #tpu.memory_space<vmem>>)
    %129 = vector.extract_strided_slice %10 {offsets = [6, 0], sizes = [1, 640], strides = [1, 1]} : vector<16x640xf32> to vector<1x640xf32>
    %c0_38 = arith.constant 0 : index
    %c0_39 = arith.constant 0 : index
    %130 = vector.load %arg16[%c0_38, %c0_39] : memref<128x640xbf16, #tpu.memory_space<vmem>>, vector<128x640xbf16>
    %cst_40 = arith.constant dense<0.000000e+00> : vector<8x640xf32>
    %131 = tpu.matmul %126, %130, %cst_40 {dimension_numbers = #tpu.dot_dimension_numbers<[1], [0], [0], [1], [0, 0, 1, 1], [], []>} : vector<8x128xbf16>, vector<128x640xbf16>, vector<8x640xf32> -> vector<8x640xf32>
    %132 = vector.broadcast %129 : vector<1x640xf32> to vector<8x640xf32>
    %133 = arith.addf %131, %132 : vector<8x640xf32>
    %134 = vector.extract_strided_slice %10 {offsets = [7, 0], sizes = [1, 640], strides = [1, 1]} : vector<16x640xf32> to vector<1x640xf32>
    %135 = vector.extract_strided_slice %10 {offsets = [8, 0], sizes = [1, 640], strides = [1, 1]} : vector<16x640xf32> to vector<1x640xf32>
    %cst_41 = arith.constant dense<0.000000e+00> : vector<640xf32>
    %136 = vector.multi_reduction <add>, %133, %cst_41 [0] : vector<8x640xf32> to vector<640xf32>
    %137 = vector.shape_cast %136 : vector<640xf32> to vector<1x640xf32>
    %cst_42 = arith.constant 8.000000e+00 : f32
    %138 = vector.broadcast %cst_42 : f32 to vector<1x640xf32>
    %139 = arith.divf %137, %138 : vector<1x640xf32>
    %140 = arith.mulf %133, %133 : vector<8x640xf32>
    %cst_43 = arith.constant dense<0.000000e+00> : vector<640xf32>
    %141 = vector.multi_reduction <add>, %140, %cst_43 [0] : vector<8x640xf32> to vector<640xf32>
    %142 = vector.shape_cast %141 : vector<640xf32> to vector<1x640xf32>
    %cst_44 = arith.constant 8.000000e+00 : f32
    %143 = vector.broadcast %cst_44 : f32 to vector<1x640xf32>
    %144 = arith.divf %142, %143 : vector<1x640xf32>
    %145 = arith.mulf %139, %139 : vector<1x640xf32>
    %146 = arith.subf %144, %145 : vector<1x640xf32>
    %cst_45 = arith.constant 9.99999974E-6 : f32
    %147 = vector.broadcast %cst_45 : f32 to vector<1x640xf32>
    %148 = arith.addf %146, %147 : vector<1x640xf32>
    %149 = math.rsqrt %148 : vector<1x640xf32>
    %150 = arith.mulf %134, %149 : vector<1x640xf32>
    %151 = vector.broadcast %150 : vector<1x640xf32> to vector<8x640xf32>
    %152 = arith.mulf %133, %151 : vector<8x640xf32>
    %153 = arith.mulf %139, %150 : vector<1x640xf32>
    %154 = arith.subf %135, %153 : vector<1x640xf32>
    %155 = vector.broadcast %154 : vector<1x640xf32> to vector<8x640xf32>
    %156 = arith.addf %152, %155 : vector<8x640xf32>
    %cst_46 = arith.constant 2.000000e+01 : f32
    %157 = vector.broadcast %cst_46 : f32 to vector<8x640xf32>
    %158 = arith.minimumf %156, %157 : vector<8x640xf32>
    %cst_47 = arith.constant 2.000000e+01 : f32
    %159 = vector.broadcast %cst_47 : f32 to vector<8x640xf32>
    %160 = arith.cmpf ogt, %156, %159 : vector<8x640xf32>
    %161 = math.exp %158 : vector<8x640xf32>
    %162 = math.log1p %161 : vector<8x640xf32>
    %163 = arith.select %160, %156, %162 : vector<8x640xi1>, vector<8x640xf32>
    %164 = arith.truncf %163 : vector<8x640xf32> to vector<8x640xbf16>
    %c3_i32_48 = arith.constant 3 : i32
    %165 = tpu.memref_slice %arg19[%c3_i32_48] : memref<5x!tpu.dma_semaphore, #tpu.memory_space<semaphore_mem>> -> memref<1x!tpu.dma_semaphore, #tpu.memory_space<semaphore_mem>>
    %166 = tpu.memref_squeeze %165 : memref<1x!tpu.dma_semaphore, #tpu.memory_space<semaphore_mem>> -> memref<!tpu.dma_semaphore, #tpu.memory_space<semaphore_mem>>
    tpu.wait_dma2 semaphore(%166 : memref<!tpu.dma_semaphore, #tpu.memory_space<semaphore_mem>>) src(%arg9 : memref<640x640xbf16, #tpu.memory_space<any>>) dst(%arg17 : memref<640x640xbf16, #tpu.memory_space<vmem>>)
    %167 = vector.extract_strided_slice %10 {offsets = [9, 0], sizes = [1, 640], strides = [1, 1]} : vector<16x640xf32> to vector<1x640xf32>
    %c0_49 = arith.constant 0 : index
    %c0_50 = arith.constant 0 : index
    %168 = vector.load %arg17[%c0_49, %c0_50] : memref<640x640xbf16, #tpu.memory_space<vmem>>, vector<640x640xbf16>
    %cst_51 = arith.constant dense<0.000000e+00> : vector<8x640xf32>
    %169 = tpu.matmul %164, %168, %cst_51 {dimension_numbers = #tpu.dot_dimension_numbers<[1], [0], [0], [1], [0, 0, 1, 1], [], []>} : vector<8x640xbf16>, vector<640x640xbf16>, vector<8x640xf32> -> vector<8x640xf32>
    %170 = vector.broadcast %167 : vector<1x640xf32> to vector<8x640xf32>
    %171 = arith.addf %169, %170 : vector<8x640xf32>
    %172 = vector.extract_strided_slice %10 {offsets = [10, 0], sizes = [1, 640], strides = [1, 1]} : vector<16x640xf32> to vector<1x640xf32>
    %173 = vector.extract_strided_slice %10 {offsets = [11, 0], sizes = [1, 640], strides = [1, 1]} : vector<16x640xf32> to vector<1x640xf32>
    %cst_52 = arith.constant dense<0.000000e+00> : vector<640xf32>
    %174 = vector.multi_reduction <add>, %171, %cst_52 [0] : vector<8x640xf32> to vector<640xf32>
    %175 = vector.shape_cast %174 : vector<640xf32> to vector<1x640xf32>
    %cst_53 = arith.constant 8.000000e+00 : f32
    %176 = vector.broadcast %cst_53 : f32 to vector<1x640xf32>
    %177 = arith.divf %175, %176 : vector<1x640xf32>
    %178 = arith.mulf %171, %171 : vector<8x640xf32>
    %cst_54 = arith.constant dense<0.000000e+00> : vector<640xf32>
    %179 = vector.multi_reduction <add>, %178, %cst_54 [0] : vector<8x640xf32> to vector<640xf32>
    %180 = vector.shape_cast %179 : vector<640xf32> to vector<1x640xf32>
    %cst_55 = arith.constant 8.000000e+00 : f32
    %181 = vector.broadcast %cst_55 : f32 to vector<1x640xf32>
    %182 = arith.divf %180, %181 : vector<1x640xf32>
    %183 = arith.mulf %177, %177 : vector<1x640xf32>
    %184 = arith.subf %182, %183 : vector<1x640xf32>
    %cst_56 = arith.constant 9.99999974E-6 : f32
    %185 = vector.broadcast %cst_56 : f32 to vector<1x640xf32>
    %186 = arith.addf %184, %185 : vector<1x640xf32>
    %187 = math.rsqrt %186 : vector<1x640xf32>
    %188 = arith.mulf %172, %187 : vector<1x640xf32>
    %189 = vector.broadcast %188 : vector<1x640xf32> to vector<8x640xf32>
    %190 = arith.mulf %171, %189 : vector<8x640xf32>
    %191 = arith.mulf %177, %188 : vector<1x640xf32>
    %192 = arith.subf %173, %191 : vector<1x640xf32>
    %193 = vector.broadcast %192 : vector<1x640xf32> to vector<8x640xf32>
    %194 = arith.addf %190, %193 : vector<8x640xf32>
    %cst_57 = arith.constant 2.000000e+01 : f32
    %195 = vector.broadcast %cst_57 : f32 to vector<8x640xf32>
    %196 = arith.minimumf %194, %195 : vector<8x640xf32>
    %cst_58 = arith.constant 2.000000e+01 : f32
    %197 = vector.broadcast %cst_58 : f32 to vector<8x640xf32>
    %198 = arith.cmpf ogt, %194, %197 : vector<8x640xf32>
    %199 = math.exp %196 : vector<8x640xf32>
    %200 = math.log1p %199 : vector<8x640xf32>
    %201 = arith.select %198, %194, %200 : vector<8x640xi1>, vector<8x640xf32>
    %202 = arith.truncf %201 : vector<8x640xf32> to vector<8x640xbf16>
    %c4_i32_59 = arith.constant 4 : i32
    %203 = tpu.memref_slice %arg19[%c4_i32_59] : memref<5x!tpu.dma_semaphore, #tpu.memory_space<semaphore_mem>> -> memref<1x!tpu.dma_semaphore, #tpu.memory_space<semaphore_mem>>
    %204 = tpu.memref_squeeze %203 : memref<1x!tpu.dma_semaphore, #tpu.memory_space<semaphore_mem>> -> memref<!tpu.dma_semaphore, #tpu.memory_space<semaphore_mem>>
    tpu.wait_dma2 semaphore(%204 : memref<!tpu.dma_semaphore, #tpu.memory_space<semaphore_mem>>) src(%arg10 : memref<640x256xbf16, #tpu.memory_space<any>>) dst(%arg18 : memref<640x256xbf16, #tpu.memory_space<vmem>>)
    %c0_60 = arith.constant 0 : index
    %c0_61 = arith.constant 0 : index
    %205 = vector.load %arg5[%c0_60, %c0_61] : memref<1x256xf32, #tpu.memory_space<vmem>>, vector<1x256xf32>
    %c0_62 = arith.constant 0 : index
    %c0_63 = arith.constant 0 : index
    %206 = vector.load %arg18[%c0_62, %c0_63] : memref<640x256xbf16, #tpu.memory_space<vmem>>, vector<640x256xbf16>
    %cst_64 = arith.constant dense<0.000000e+00> : vector<8x256xf32>
    %207 = tpu.matmul %202, %206, %cst_64 {dimension_numbers = #tpu.dot_dimension_numbers<[1], [0], [0], [1], [0, 0, 1, 1], [], []>} : vector<8x640xbf16>, vector<640x256xbf16>, vector<8x256xf32> -> vector<8x256xf32>
    %208 = vector.broadcast %205 : vector<1x256xf32> to vector<8x256xf32>
    %209 = arith.addf %207, %208 : vector<8x256xf32>
    %c0_65 = arith.constant 0 : index
    %c0_66 = arith.constant 0 : index
    %210 = vector.load %arg11[%c0_65, %c0_66] : memref<8x256xf32, #tpu.memory_space<vmem>>, vector<8x256xf32>
    tpu.vector_store %arg11[%c0_65, %c0_66], %209 {strides = array<i32>} : memref<8x256xf32, #tpu.memory_space<vmem>>, vector<8x256xf32>,
    %c0_67 = arith.constant 0 : index
    %c0_68 = arith.constant 0 : index
    %211 = vector.load %arg12[%c0_67, %c0_68] : memref<8x128xf32, #tpu.memory_space<vmem>>, vector<8x128xf32>
    tpu.vector_store %arg12[%c0_67, %c0_68], %118 {strides = array<i32>} : memref<8x128xf32, #tpu.memory_space<vmem>>, vector<8x128xf32>,
    %c0_69 = arith.constant 0 : index
    %c0_70 = arith.constant 0 : index
    %212 = vector.load %arg13[%c0_69, %c0_70] : memref<8x128xf32, #tpu.memory_space<vmem>>, vector<8x128xf32>
    tpu.vector_store %arg13[%c0_69, %c0_70], %119 {strides = array<i32>} : memref<8x128xf32, #tpu.memory_space<vmem>>, vector<8x128xf32>,
    return
  }
}

</mosaic_0001>

<llo_original>
// kernel: tpu_custom_call.1
$region0: #{tpu_custom_call.1}
  #allocation0 [shape = 'u32[]', space=smem, size = 0x4, offset = 0x4, fixed_abs, tag = 'smem constant byte address 0x4 - core index']
  #allocation1 [shape = 'u32[144,128]{1,0:T(1,128)}', space=vmem, size = 0x12000, scoped, tag = 'internal scratch']
  #allocation2 [shape = 'bf16[640,640]{1,0:T(8,128)(2,1)}', space=vmem, size = 0xc8000, scoped, tag = 'scratch operand']
  #allocation3 [shape = 'bf16[640,256]{1,0:T(8,128)(2,1)}', space=vmem, size = 0x50000, scoped, tag = 'scratch operand']
  #allocation4 [shape = 'bf16[128,640]{1,0:T(8,128)(2,1)}', space=vmem, size = 0x28000, scoped, tag = 'scratch operand']
  #allocation5 [shape = 'bf16[640,640]{1,0:T(8,128)(2,1)}', space=vmem, size = 0xc8000, scoped, tag = 'scratch operand']
  #allocation6 [shape = 'bf16[640,256]{1,0:T(8,128)(2,1)}', space=vmem, size = 0x50000, scoped, tag = 'scratch operand']
  #allocation7 [shape = 's32[5]{0}', space=sflag, size = 0x14, scoped, tag = 'scratch operand']
  #allocation21 [shape = 's32[]', space=sflag, size = 0x4, offset = 0, fixed_abs, tag = 'sflag constant byte address 0x0 - dummy sync flag']
  #allocation22 [shape = 's32[]', space=sflag, size = 0x4, offset = 0, fixed_abs, tag = 'sflag constant byte address 0x0 - dummy sync flag']
  #allocation23 [shape = 'u32[]', space=smem, size = 0x4, offset = 0x44, fixed_abs, tag = 'smem constant byte address 0x44 - assertion arg 0']
  #allocation24 [shape = 'u32[]', space=smem, size = 0x4, offset = 0x48, fixed_abs, tag = 'smem constant byte address 0x48 - assertion arg 1']
  #allocation25 [shape = 's32[]', space=sflag, size = 0x4, offset = 0, fixed_abs, tag = 'sflag constant byte address 0x0 - dummy sync flag']
  #allocation26 [shape = 's32[]', space=sflag, size = 0x4, offset = 0, fixed_abs, tag = 'sflag constant byte address 0x0 - dummy sync flag']
  #allocation27 [shape = 's32[]', space=sflag, size = 0x4, offset = 0, fixed_abs, tag = 'sflag constant byte address 0x0 - dummy sync flag']
  #allocation28 [shape = 's32[]', space=sflag, size = 0x4, offset = 0, fixed_abs, tag = 'sflag constant byte address 0x0 - dummy sync flag']
  #allocation29 [shape = 's32[]', space=sflag, size = 0x4, offset = 0, fixed_abs, tag = 'sflag constant byte address 0x0 - dummy sync flag']
  #allocation30 [shape = 's32[]', space=sflag, size = 0x4, offset = 0, fixed_abs, tag = 'sflag constant byte address 0x0 - dummy sync flag']
  #allocation31 [shape = 's32[]', space=sflag, size = 0x4, offset = 0, fixed_abs, tag = 'sflag constant byte address 0x0 - dummy sync flag']
  #allocation32 [shape = 's32[]', space=sflag, size = 0x4, offset = 0, fixed_abs, tag = 'sflag constant byte address 0x0 - dummy sync flag']
  %s0 = inlined_call_operand.hbm [shape: f32[8,256], index: 0, kind: input, shape index: {}]
  %s1 = inlined_call_operand.hbm [shape: f32[8,128], index: 1, kind: input, shape index: {}]
  %s2 = inlined_call_operand.hbm [shape: bf16[256,640], index: 2, kind: input, shape index: {}]
  %s3 = inlined_call_operand.hbm [shape: f32[16,640], index: 3, kind: input, shape index: {}]
  %s4 = inlined_call_operand.hbm [shape: f32[8,256], index: 4, kind: input, shape index: {}]
  %s5 = inlined_call_operand.vmem [shape: f32[1,256], index: 5, kind: input, shape index: {}]
  %s6 = inlined_call_operand.hbm [shape: bf16[640,640], index: 6, kind: input, shape index: {}]
  %s7 = inlined_call_operand.hbm [shape: bf16[640,256], index: 7, kind: input, shape index: {}]
  %s8 = inlined_call_operand.hbm [shape: bf16[128,640], index: 8, kind: input, shape index: {}]
  %s9 = inlined_call_operand.hbm [shape: bf16[640,640], index: 9, kind: input, shape index: {}]
  %s10 = inlined_call_operand.hbm [shape: bf16[640,256], index: 10, kind: input, shape index: {}]
  %s11 = inlined_call_operand.hbm [shape: f32[8,256], index: 11, kind: output, shape index: {0}]
  %s12 = inlined_call_operand.hbm [shape: f32[8,128], index: 12, kind: output, shape index: {1}]
  %s13 = inlined_call_operand.hbm [shape: f32[8,128], index: 13, kind: output, shape index: {2}]
  %14 = xla_tuple %s11, %s12, %s13
  %s15 = sld [smem:[#allocation0]]
  $region90: #{tpu_custom_call.1} parent=0
    _
  %s17 = ssub.s32 1, %s15
  %s18 = scalar_select 0, %s17, %s15
  $region1: #{tpu_custom_call.1} parent=0
    #allocation8 [shape = 'u8[8192]{0}', space=vmem, size = 0x2000, scoped, tag = 'input window, operand 0, single buffered']
    #allocation9 [shape = 's32[1]{0}', space=sflag, size = 0x4, scoped, tag = 'scoped memory for tpu_custom_call.1']
    #allocation10 [shape = 's32[1]{0}', space=sflag, size = 0x4, scoped, tag = 'scoped memory for tpu_custom_call.1']
    #allocation11 [shape = 'u8[4096]{0}', space=vmem, size = 0x1000, scoped, tag = 'input window, operand 1, single buffered']
    #allocation12 [shape = 's32[1]{0}', space=sflag, size = 0x4, scoped, tag = 'scoped memory for tpu_custom_call.1']
    #allocation13 [shape = 'u8[327680]{0}', space=vmem, size = 0x50000, scoped, tag = 'input window, operand 2, single buffered']
    #allocation14 [shape = 'u8[40960]{0}', space=vmem, size = 0xa000, scoped, tag = 'input window, operand 3, single buffered']
    #allocation15 [shape = 's32[1]{0}', space=sflag, size = 0x4, scoped, tag = 'scoped memory for tpu_custom_call.1']
    #allocation16 [shape = 'u8[8192]{0}', space=vmem, size = 0x2000, scoped, tag = 'input window, operand 4, single buffered']
    #allocation17 [shape = 'u8[8192]{0}', space=vmem, size = 0x2000, scoped, tag = 'output window, operand 0, single buffered']
    #allocation18 [shape = 'u8[4096]{0}', space=vmem, size = 0x1000, scoped, tag = 'output window, operand 1, single buffered']
    #allocation19 [shape = 's32[1]{0}', space=sflag, size = 0x4, scoped, tag = 'scoped memory for tpu_custom_call.1']
    #allocation20 [shape = 'u8[4096]{0}', space=vmem, size = 0x1000, scoped, tag = 'output window, operand 2, single buffered']
    %19 = vsyncpa [#allocation9], 0
    %20 = vsyncpa [#allocation12], 0
    %21 = vsyncpa [#allocation15], 0
    %22 = vsyncpa [#allocation10], 0
    %23 = vsyncpa [#allocation19], 0
    // Predicated region
    $region2: #{tpu_custom_call.1} parent=1 // pred_check
      _
    $region3: #{tpu_custom_call.1} parent=1 // pred_check_branch
      %25 = sbr.rel (0) target = $region5
    $region4: #{tpu_custom_call.1} parent=1 // pred_region
      %s27 = ssub.s32 256, 256
      %28 = vsyncadd [#allocation9], %s27
      %s30 = sshll.u32 [#allocation8], 4
      %s31 = int_to_ptr.vmem [resolvable:$true] %s30
      %33 = dma.hbm_to_vmem [thread:$0]  %s0, 256, %s31, [#allocation9]
    $region5: #{tpu_custom_call.1} parent=1 // pred_fallthru
      _
    // Predicated region
    $region6: #{tpu_custom_call.1} parent=1 // pred_check
      _
    $region7: #{tpu_custom_call.1} parent=1 // pred_check_branch
      %35 = sbr.rel (0) target = $region9
    $region8: #{tpu_custom_call.1} parent=1 // pred_region
      %s37 = ssub.s32 128, 128
      %38 = vsyncadd [#allocation12], %s37
      %s40 = sshll.u32 [#allocation11], 4
      %s41 = int_to_ptr.vmem [resolvable:$true] %s40
      %43 = dma.hbm_to_vmem [thread:$0]  %s1, 128, %s41, [#allocation12]
    $region9: #{tpu_custom_call.1} parent=1 // pred_fallthru
      _
    // Predicated region
    $region10: #{tpu_custom_call.1} parent=1 // pred_check
      _
    $region11: #{tpu_custom_call.1} parent=1 // pred_check_branch
      %45 = sbr.rel (0) target = $region13
    $region12: #{tpu_custom_call.1} parent=1 // pred_region
      %s47 = ssub.s32 10240, 10240
      %48 = vsyncadd [#allocation12], %s47
      %s49 = sshll.u32 [#allocation13], 4
      %s50 = int_to_ptr.vmem [resolvable:$true] %s49
      %55 = dma.hbm_to_vmem [thread:$0]  %s2, 10240, %s50, [#allocation12], 320, 320, 20
    $region13: #{tpu_custom_call.1} parent=1 // pred_fallthru
      _
    // Predicated region
    $region14: #{tpu_custom_call.1} parent=1 // pred_check
      _
    $region15: #{tpu_custom_call.1} parent=1 // pred_check_branch
      %57 = sbr.rel (0) target = $region17
    $region16: #{tpu_custom_call.1} parent=1 // pred_region
      %s59 = ssub.s32 1280, 1280
      %60 = vsyncadd [#allocation15], %s59
      %s61 = sshll.u32 [#allocation14], 4
      %s62 = int_to_ptr.vmem [resolvable:$true] %s61
      %67 = dma.hbm_to_vmem [thread:$0]  %s3, 1280, %s62, [#allocation15], 640, 640, 40
    $region17: #{tpu_custom_call.1} parent=1 // pred_fallthru
      _
    // Predicated region
    $region18: #{tpu_custom_call.1} parent=1 // pred_check
      _
    $region19: #{tpu_custom_call.1} parent=1 // pred_check_branch
      %69 = sbr.rel (0) target = $region21
    $region20: #{tpu_custom_call.1} parent=1 // pred_region
      %s71 = ssub.s32 256, 256
      %72 = vsyncadd [#allocation15], %s71
      %s74 = sshll.u32 [#allocation16], 4
      %s75 = int_to_ptr.vmem [resolvable:$true] %s74
      %77 = dma.hbm_to_vmem [thread:$0]  %s4, 256, %s75, [#allocation15]
    $region21: #{tpu_custom_call.1} parent=1 // pred_fallthru
      _
    // Predicated region
    $region22: #{tpu_custom_call.1} parent=1 // pred_check
      _
    $region23: #{tpu_custom_call.1} parent=1 // pred_check_branch
      %79 = sbr.rel (0) target = $region25
    $region24: #{tpu_custom_call.1} parent=1 // pred_region
      _
    $region25: #{tpu_custom_call.1} parent=1 // pred_fallthru
      _
    // Predicated region
    $region26: #{tpu_custom_call.1} parent=1 // pred_check
      _
    $region27: #{tpu_custom_call.1} parent=1 // pred_check_branch
      %81 = sbr.rel (0) target = $region29
    $region28: #{tpu_custom_call.1} parent=1 // pred_region
      %82 = dma.done [#allocation9], 256
    $region29: #{tpu_custom_call.1} parent=1 // pred_fallthru
      _
    // Predicated region
    $region30: #{tpu_custom_call.1} parent=1 // pred_check
      _
    $region31: #{tpu_custom_call.1} parent=1 // pred_check_branch
      %84 = sbr.rel (0) target = $region33
    $region32: #{tpu_custom_call.1} parent=1 // pred_region
      %85 = dma.done [#allocation12], 128
    $region33: #{tpu_custom_call.1} parent=1 // pred_fallthru
      _
    // Predicated region
    $region34: #{tpu_custom_call.1} parent=1 // pred_check
      _
    $region35: #{tpu_custom_call.1} parent=1 // pred_check_branch
      %87 = sbr.rel (0) target = $region37
    $region36: #{tpu_custom_call.1} parent=1 // pred_region
      %88 = dma.done [#allocation12], 10240
    $region37: #{tpu_custom_call.1} parent=1 // pred_fallthru
      _
    // Predicated region
    $region38: #{tpu_custom_call.1} parent=1 // pred_check
      _
    $region39: #{tpu_custom_call.1} parent=1 // pred_check_branch
      %90 = sbr.rel (0) target = $region41
    $region40: #{tpu_custom_call.1} parent=1 // pred_region
      %91 = dma.done [#allocation15], 1280
    $region41: #{tpu_custom_call.1} parent=1 // pred_fallthru
      _
    // Predicated region
    $region42: #{tpu_custom_call.1} parent=1 // pred_check
      _
    $region43: #{tpu_custom_call.1} parent=1 // pred_check_branch
      %93 = sbr.rel (0) target = $region45
    $region44: #{tpu_custom_call.1} parent=1 // pred_region
      %94 = dma.done [#allocation15], 256
    $region45: #{tpu_custom_call.1} parent=1 // pred_fallthru
      _
    // Predicated region
    $region46: #{tpu_custom_call.1} parent=1 // pred_check
      _
    $region47: #{tpu_custom_call.1} parent=1 // pred_check_branch
      %97 = sbr.rel target = $region49
    $region48: #{tpu_custom_call.1} parent=1 // pred_region
      %98 = sst [smem:[#allocation23]] [#allocation22]
      %99 = sst [smem:[#allocation24]] [#allocation21]
    $region49: #{tpu_custom_call.1} parent=1 // pred_fallthru
      _
    %101 = shalt.err (0)
    %s103 = sshll.u32 [#allocation2], 4
    %s104 = int_to_ptr.vmem [resolvable:$true] %s103
    %106 = dma.hbm_to_vmem [thread:$0]  %s6, 25600, %s104, [#allocation7]
    %s107 = scalar_lea.sflag [#allocation7], 1
    // Predicated region
    $region50: #{tpu_custom_call.1} parent=1 // pred_check
      _
    $region51: #{tpu_custom_call.1} parent=1 // pred_check_branch
      %109 = sbr.rel target = $region53
    $region52: #{tpu_custom_call.1} parent=1 // pred_region
      %110 = sst [smem:[#allocation23]] [#allocation26]
      %111 = sst [smem:[#allocation24]] [#allocation25]
    $region53: #{tpu_custom_call.1} parent=1 // pred_fallthru
      _
    %113 = shalt.err (0)
    %s115 = sshll.u32 [#allocation3], 4
    %s116 = int_to_ptr.vmem [resolvable:$true] %s115
    %118 = dma.hbm_to_vmem [thread:$0]  %s7, 10240, %s116, %s107
    %s119 = scalar_lea.sflag [#allocation7], 2
    // Predicated region
    $region54: #{tpu_custom_call.1} parent=1 // pred_check
      _
    $region55: #{tpu_custom_call.1} parent=1 // pred_check_branch
      %121 = sbr.rel target = $region57
    $region56: #{tpu_custom_call.1} parent=1 // pred_region
      %122 = sst [smem:[#allocation23]] [#allocation28]
      %123 = sst [smem:[#allocation24]] [#allocation27]
    $region57: #{tpu_custom_call.1} parent=1 // pred_fallthru
      _
    %125 = shalt.err (0)
    %s127 = sshll.u32 [#allocation4], 4
    %s128 = int_to_ptr.vmem [resolvable:$true] %s127
    %130 = dma.hbm_to_vmem [thread:$0]  %s8, 5120, %s128, %s119
    %s131 = scalar_lea.sflag [#allocation7], 3
    // Predicated region
    $region58: #{tpu_custom_call.1} parent=1 // pred_check
      _
    $region59: #{tpu_custom_call.1} parent=1 // pred_check_branch
      %133 = sbr.rel target = $region61
    $region60: #{tpu_custom_call.1} parent=1 // pred_region
      %134 = sst [smem:[#allocation23]] [#allocation30]
      %135 = sst [smem:[#allocation24]] [#allocation29]
    $region61: #{tpu_custom_call.1} parent=1 // pred_fallthru
      _
    %137 = shalt.err (0)
    %s139 = sshll.u32 [#allocation5], 4
    %s140 = int_to_ptr.vmem [resolvable:$true] %s139
    %142 = dma.hbm_to_vmem [thread:$0]  %s9, 25600, %s140, %s131
    %s143 = scalar_lea.sflag [#allocation7], 4
    // Predicated region
    $region62: #{tpu_custom_call.1} parent=1 // pred_check
      _
    $region63: #{tpu_custom_call.1} parent=1 // pred_check_branch
      %145 = sbr.rel target = $region65
    $region64: #{tpu_custom_call.1} parent=1 // pred_region
      %146 = sst [smem:[#allocation23]] [#allocation32]
      %147 = sst [smem:[#allocation24]] [#allocation31]
    $region65: #{tpu_custom_call.1} parent=1 // pred_fallthru
      _
    %149 = shalt.err (0)
    %s151 = sshll.u32 [#allocation6], 4
    %s152 = int_to_ptr.vmem [resolvable:$true] %s151
    %154 = dma.hbm_to_vmem [thread:$0]  %s10, 10240, %s152, %s143
    %v155 = vld [vmem:[#allocation14] sm:$0xff]
    %v156 = vld [vmem:[#allocation14 + $0x8] sm:$0xff]
    %v157 = vld [vmem:[#allocation14 + $0x10] sm:$0xff]
    %v158 = vld [vmem:[#allocation14 + $0x18] sm:$0xff]
    %v159 = vld [vmem:[#allocation14 + $0x20] sm:$0xff]
    %v160 = vld [vmem:[#allocation14 + $0x28] sm:$0xff]
    %v161 = vld [vmem:[#allocation14 + $0x30] sm:$0xff]
    %v162 = vld [vmem:[#allocation14 + $0x38] sm:$0xff]
    %v163 = vld [vmem:[#allocation14 + $0x40] sm:$0xff]
    %v164 = vld [vmem:[#allocation14 + $0x48] sm:$0xff]
    %v165 = vld [vmem:[#allocation16] sm:$0xff]
    %v166 = vld [vmem:[#allocation16 + $0x8] sm:$0xff]
    %v167 = vld [vmem:[#allocation8] sm:$0xff]
    %v168 = vld [vmem:[#allocation8 + $0x8] sm:$0xff]
    %v169 = vpack.c.bf16 %v167, %v167
    %v170 = vpack.c.bf16 %v168, %v168
    %v171 = vld [vmem:[#allocation13] sm:$0xff]
    %v172 = vld [vmem:[#allocation13 + $0x8] sm:$0xff]
    %v173 = vld [vmem:[#allocation13 + $0x10] sm:$0xf]
    %v174 = vld [vmem:[#allocation13 + $0x14] sm:$0xff]
    %v175 = vld [vmem:[#allocation13 + $0x1c] sm:$0xff]
    %v176 = vld [vmem:[#allocation13 + $0x24] sm:$0xf]
    %v177 = vld [vmem:[#allocation13 + $0x28] sm:$0xff]
    %v178 = vld [vmem:[#allocation13 + $0x30] sm:$0xff]
    %v179 = vld [vmem:[#allocation13 + $0x38] sm:$0xf]
    %v180 = vld [vmem:[#allocation13 + $0x3c] sm:$0xff]
    %v181 = vld [vmem:[#allocation13 + $0x44] sm:$0xff]
    %v182 = vld [vmem:[#allocation13 + $0x4c] sm:$0xf]
    %v183 = vld [vmem:[#allocation13 + $0x50] sm:$0xff]
    %v184 = vld [vmem:[#allocation13 + $0x58] sm:$0xff]
    %v185 = vld [vmem:[#allocation13 + $0x60] sm:$0xf]
    %v186 = vld [vmem:[#allocation13 + $0x64] sm:$0xff]
    %v187 = vld [vmem:[#allocation13 + $0x6c] sm:$0xff]
    %v188 = vld [vmem:[#allocation13 + $0x74] sm:$0xf]
    %v189 = vld [vmem:[#allocation13 + $0x78] sm:$0xff]
    %v190 = vld [vmem:[#allocation13 + $0x80] sm:$0xff]
    %v191 = vld [vmem:[#allocation13 + $0x88] sm:$0xf]
    %v192 = vld [vmem:[#allocation13 + $0x8c] sm:$0xff]
    %v193 = vld [vmem:[#allocation13 + $0x94] sm:$0xff]
    %v194 = vld [vmem:[#allocation13 + $0x9c] sm:$0xf]
    %v195 = vld [vmem:[#allocation13 + $0xa0] sm:$0xff]
    %v196 = vld [vmem:[#allocation13 + $0xa8] sm:$0xff]
    %v197 = vld [vmem:[#allocation13 + $0xb0] sm:$0xf]
    %v198 = vld [vmem:[#allocation13 + $0xb4] sm:$0xff]
    %v199 = vld [vmem:[#allocation13 + $0xbc] sm:$0xff]
    %v200 = vld [vmem:[#allocation13 + $0xc4] sm:$0xf]
    %v201 = vld [vmem:[#allocation13 + $0xc8] sm:$0xff]
    %v202 = vld [vmem:[#allocation13 + $0xd0] sm:$0xff]
    %v203 = vld [vmem:[#allocation13 + $0xd8] sm:$0xf]
    %v204 = vld [vmem:[#allocation13 + $0xdc] sm:$0xff]
    %v205 = vld [vmem:[#allocation13 + $0xe4] sm:$0xff]
    %v206 = vld [vmem:[#allocation13 + $0xec] sm:$0xf]
    %v207 = vld [vmem:[#allocation13 + $0xf0] sm:$0xff]
    %v208 = vld [vmem:[#allocation13 + $0xf8] sm:$0xff]
    %v209 = vld [vmem:[#allocation13 + $0x100] sm:$0xf]
    %v210 = vld [vmem:[#allocation13 + $0x104] sm:$0xff]
    %v211 = vld [vmem:[#allocation13 + $0x10c] sm:$0xff]
    %v212 = vld [vmem:[#allocation13 + $0x114] sm:$0xf]
    %v213 = vld [vmem:[#allocation13 + $0x118] sm:$0xff]
    %v214 = vld [vmem:[#allocation13 + $0x120] sm:$0xff]
    %v215 = vld [vmem:[#allocation13 + $0x128] sm:$0xf]
    %v216 = vld [vmem:[#allocation13 + $0x12c] sm:$0xff]
    %v217 = vld [vmem:[#allocation13 + $0x134] sm:$0xff]
    %v218 = vld [vmem:[#allocation13 + $0x13c] sm:$0xf]
    %v219 = vld [vmem:[#allocation13 + $0x140] sm:$0xff]
    %v220 = vld [vmem:[#allocation13 + $0x148] sm:$0xff]
    %v221 = vld [vmem:[#allocation13 + $0x150] sm:$0xf]
    %v222 = vld [vmem:[#allocation13 + $0x154] sm:$0xff]
    %v223 = vld [vmem:[#allocation13 + $0x15c] sm:$0xff]
    %v224 = vld [vmem:[#allocation13 + $0x164] sm:$0xf]
    %v225 = vld [vmem:[#allocation13 + $0x168] sm:$0xff]
    %v226 = vld [vmem:[#allocation13 + $0x170] sm:$0xff]
    %v227 = vld [vmem:[#allocation13 + $0x178] sm:$0xf]
    %v228 = vld [vmem:[#allocation13 + $0x17c] sm:$0xff]
    %v229 = vld [vmem:[#allocation13 + $0x184] sm:$0xff]
    %v230 = vld [vmem:[#allocation13 + $0x18c] sm:$0xf]
    %v231 = vld [vmem:[#allocation13 + $0x190] sm:$0xff]
    %v232 = vld [vmem:[#allocation13 + $0x198] sm:$0xff]
    %v233 = vld [vmem:[#allocation13 + $0x1a0] sm:$0xf]
    %v234 = vld [vmem:[#allocation13 + $0x1a4] sm:$0xff]
    %v235 = vld [vmem:[#allocation13 + $0x1ac] sm:$0xff]
    %v236 = vld [vmem:[#allocation13 + $0x1b4] sm:$0xf]
    %v237 = vld [vmem:[#allocation13 + $0x1b8] sm:$0xff]
    %v238 = vld [vmem:[#allocation13 + $0x1c0] sm:$0xff]
    %v239 = vld [vmem:[#allocation13 + $0x1c8] sm:$0xf]
    %v240 = vld [vmem:[#allocation13 + $0x1cc] sm:$0xff]
    %v241 = vld [vmem:[#allocation13 + $0x1d4] sm:$0xff]
    %v242 = vld [vmem:[#allocation13 + $0x1dc] sm:$0xf]
    %v243 = vld [vmem:[#allocation13 + $0x1e0] sm:$0xff]
    %v244 = vld [vmem:[#allocation13 + $0x1e8] sm:$0xff]
    %v245 = vld [vmem:[#allocation13 + $0x1f0] sm:$0xf]
    %v246 = vld [vmem:[#allocation13 + $0x1f4] sm:$0xff]
    %v247 = vld [vmem:[#allocation13 + $0x1fc] sm:$0xff]
    %v248 = vld [vmem:[#allocation13 + $0x204] sm:$0xf]
    %v249 = vld [vmem:[#allocation13 + $0x208] sm:$0xff]
    %v250 = vld [vmem:[#allocation13 + $0x210] sm:$0xff]
    %v251 = vld [vmem:[#allocation13 + $0x218] sm:$0xf]
    %v252 = vld [vmem:[#allocation13 + $0x21c] sm:$0xff]
    %v253 = vld [vmem:[#allocation13 + $0x224] sm:$0xff]
    %v254 = vld [vmem:[#allocation13 + $0x22c] sm:$0xf]
    %v255 = vld [vmem:[#allocation13 + $0x230] sm:$0xff]
    %v256 = vld [vmem:[#allocation13 + $0x238] sm:$0xff]
    %v257 = vld [vmem:[#allocation13 + $0x240] sm:$0xf]
    %v258 = vld [vmem:[#allocation13 + $0x244] sm:$0xff]
    %v259 = vld [vmem:[#allocation13 + $0x24c] sm:$0xff]
    %v260 = vld [vmem:[#allocation13 + $0x254] sm:$0xf]
    %v261 = vld [vmem:[#allocation13 + $0x258] sm:$0xff]
    %v262 = vld [vmem:[#allocation13 + $0x260] sm:$0xff]
    %v263 = vld [vmem:[#allocation13 + $0x268] sm:$0xf]
    %v264 = vld [vmem:[#allocation13 + $0x26c] sm:$0xff]
    %v265 = vld [vmem:[#allocation13 + $0x274] sm:$0xff]
    %v266 = vld [vmem:[#allocation13 + $0x27c] sm:$0xf]
    %v267 = vlaneseq
    %v268 = vshrl.u32 %v267, 7
    %v269 = vsub.s32 0, %v268
    %v270 = vrot.slane %v155, %v269
    %v271 = vlaneseq
    %v272 = vshrl.u32 %v271, 7
    %v273 = vsub.s32 0, %v272
    %v274 = vrot.slane %v156, %v273
    %v275 = vlaneseq
    %v276 = vshrl.u32 %v275, 7
    %v277 = vsub.s32 0, %v276
    %v278 = vrot.slane %v157, %v277
    %v279 = vlaneseq
    %v280 = vshrl.u32 %v279, 7
    %v281 = vsub.s32 0, %v280
    %v282 = vrot.slane %v158, %v281
    %v283 = vlaneseq
    %v284 = vshrl.u32 %v283, 7
    %v285 = vsub.s32 0, %v284
    %v286 = vrot.slane %v159, %v285
    %v383 = vunpack.c.l.b16 %v171
    %v384 = vunpack.c.h.b16 %v171
    %v385 = vunpack.c.l.b16 %v172
    %v386 = vunpack.c.h.b16 %v172
    %v387 = vunpack.c.l.b16 %v173
    %v388 = vunpack.c.l.b16 %v174
    %v389 = vunpack.c.h.b16 %v174
    %v390 = vunpack.c.l.b16 %v175
    %v391 = vunpack.c.h.b16 %v175
    %v392 = vunpack.c.l.b16 %v176
    %v393 = vunpack.c.l.b16 %v177
    %v394 = vunpack.c.h.b16 %v177
    %v395 = vunpack.c.l.b16 %v178
    %v396 = vunpack.c.h.b16 %v178
    %v397 = vunpack.c.l.b16 %v179
    %v398 = vunpack.c.l.b16 %v180
    %v399 = vunpack.c.h.b16 %v180
    %v400 = vunpack.c.l.b16 %v181
    %v401 = vunpack.c.h.b16 %v181
    %v402 = vunpack.c.l.b16 %v182
    %v403 = vunpack.c.l.b16 %v183
    %v404 = vunpack.c.h.b16 %v183
    %v405 = vunpack.c.l.b16 %v184
    %v406 = vunpack.c.h.b16 %v184
    %v407 = vunpack.c.l.b16 %v185
    %v408 = vunpack.c.l.b16 %v186
    %v409 = vunpack.c.h.b16 %v186
    %v410 = vunpack.c.l.b16 %v187
    %v411 = vunpack.c.h.b16 %v187
    %v412 = vunpack.c.l.b16 %v188
    %v413 = vunpack.c.l.b16 %v189
    %v414 = vunpack.c.h.b16 %v189
    %v415 = vunpack.c.l.b16 %v190
    %v416 = vunpack.c.h.b16 %v190
    %v417 = vunpack.c.l.b16 %v191
    %v418 = vunpack.c.l.b16 %v192
    %v419 = vunpack.c.h.b16 %v192
    %v420 = vunpack.c.l.b16 %v193
    %v421 = vunpack.c.h.b16 %v193
    %v422 = vunpack.c.l.b16 %v194
    %v423 = vunpack.c.l.b16 %v195
    %v424 = vunpack.c.h.b16 %v195
    %v425 = vunpack.c.l.b16 %v196
    %v426 = vunpack.c.h.b16 %v196
    %v427 = vunpack.c.l.b16 %v197
    %v428 = vunpack.c.l.b16 %v198
    %v429 = vunpack.c.h.b16 %v198
    %v430 = vunpack.c.l.b16 %v199
    %v431 = vunpack.c.h.b16 %v199
    %v432 = vunpack.c.l.b16 %v200
    %v433 = vunpack.c.l.b16 %v201
    %v434 = vunpack.c.h.b16 %v201
    %v435 = vunpack.c.l.b16 %v202
    %v436 = vunpack.c.h.b16 %v202
    %v437 = vunpack.c.l.b16 %v203
    %v438 = vunpack.c.l.b16 %v204
    %v439 = vunpack.c.h.b16 %v204
    %v440 = vunpack.c.l.b16 %v205
    %v441 = vunpack.c.h.b16 %v205
    %v442 = vunpack.c.l.b16 %v206
    %v443 = vunpack.c.l.b16 %v207
    %v444 = vunpack.c.h.b16 %v207
    %v445 = vunpack.c.l.b16 %v208
    %v446 = vunpack.c.h.b16 %v208
    %v447 = vunpack.c.l.b16 %v209
    %v448 = vunpack.c.l.b16 %v210
    %v449 = vunpack.c.h.b16 %v210
    %v450 = vunpack.c.l.b16 %v211
    %v451 = vunpack.c.h.b16 %v211
    %v452 = vunpack.c.l.b16 %v212
    %v453 = vunpack.c.l.b16 %v213
    %v454 = vunpack.c.h.b16 %v213
    %v455 = vunpack.c.l.b16 %v214
    %v456 = vunpack.c.h.b16 %v214
    %v457 = vunpack.c.l.b16 %v215
    %v458 = vunpack.c.l.b16 %v216
    %v459 = vunpack.c.h.b16 %v216
    %v460 = vunpack.c.l.b16 %v217
    %v461 = vunpack.c.h.b16 %v217
    %v462 = vunpack.c.l.b16 %v218
    %v463 = vunpack.c.l.b16 %v219
    %v464 = vunpack.c.h.b16 %v219
    %v465 = vunpack.c.l.b16 %v220
    %v466 = vunpack.c.h.b16 %v220
    %v467 = vunpack.c.l.b16 %v221
    %v468 = vunpack.c.l.b16 %v222
    %v469 = vunpack.c.h.b16 %v222
    %v470 = vunpack.c.l.b16 %v223
    %v471 = vunpack.c.h.b16 %v223
    %v472 = vunpack.c.l.b16 %v224
    %v473 = vunpack.c.l.b16 %v225
    %v474 = vunpack.c.h.b16 %v225
    %v475 = vunpack.c.l.b16 %v226
    %v476 = vunpack.c.h.b16 %v226
    %v477 = vunpack.c.l.b16 %v227
    %v478 = vunpack.c.l.b16 %v228
    %v479 = vunpack.c.h.b16 %v228
    %v480 = vunpack.c.l.b16 %v229
    %v481 = vunpack.c.h.b16 %v229
    %v482 = vunpack.c.l.b16 %v230
    %v483 = vunpack.c.l.b16 %v231
    %v484 = vunpack.c.h.b16 %v231
    %v485 = vunpack.c.l.b16 %v232
    %v486 = vunpack.c.h.b16 %v232
    %v487 = vunpack.c.l.b16 %v233
    %v488 = vunpack.c.l.b16 %v234
    %v489 = vunpack.c.h.b16 %v234
    %v490 = vunpack.c.l.b16 %v235
    %v491 = vunpack.c.h.b16 %v235
    %v492 = vunpack.c.l.b16 %v236
    %v493 = vunpack.c.l.b16 %v237
    %v494 = vunpack.c.h.b16 %v237
    %v495 = vunpack.c.l.b16 %v238
    %v496 = vunpack.c.h.b16 %v238
    %v497 = vunpack.c.l.b16 %v239
    %v498 = vunpack.c.l.b16 %v240
    %v499 = vunpack.c.h.b16 %v240
    %v500 = vunpack.c.l.b16 %v241
    %v501 = vunpack.c.h.b16 %v241
    %v502 = vunpack.c.l.b16 %v242
    %v503 = vunpack.c.l.b16 %v243
    %v504 = vunpack.c.h.b16 %v243
    %v505 = vunpack.c.l.b16 %v244
    %v506 = vunpack.c.h.b16 %v244
    %v507 = vunpack.c.l.b16 %v245
    %v508 = vunpack.c.l.b16 %v246
    %v509 = vunpack.c.h.b16 %v246
    %v510 = vunpack.c.l.b16 %v247
    %v511 = vunpack.c.h.b16 %v247
    %v512 = vunpack.c.l.b16 %v248
    %v513 = vunpack.c.l.b16 %v249
    %v514 = vunpack.c.h.b16 %v249
    %v515 = vunpack.c.l.b16 %v250
    %v516 = vunpack.c.h.b16 %v250
    %v517 = vunpack.c.l.b16 %v251
    %v518 = vunpack.c.l.b16 %v252
    %v519 = vunpack.c.h.b16 %v252
    %v520 = vunpack.c.l.b16 %v253
    %v521 = vunpack.c.h.b16 %v253
    %v522 = vunpack.c.l.b16 %v254
    %v523 = vunpack.c.l.b16 %v255
    %v524 = vunpack.c.h.b16 %v255
    %v525 = vunpack.c.l.b16 %v256
    %v526 = vunpack.c.h.b16 %v256
    %v527 = vunpack.c.l.b16 %v257
    %v528 = vunpack.c.l.b16 %v258
    %v529 = vunpack.c.h.b16 %v258
    %v530 = vunpack.c.l.b16 %v259
    %v531 = vunpack.c.h.b16 %v259
    %v532 = vunpack.c.l.b16 %v260
    %v533 = vunpack.c.l.b16 %v261
    %v534 = vunpack.c.h.b16 %v261
    %v535 = vunpack.c.l.b16 %v262
    %v536 = vunpack.c.h.b16 %v262
    %v537 = vunpack.c.l.b16 %v263
    %v538 = vunpack.c.l.b16 %v264
    %v539 = vunpack.c.h.b16 %v264
    %v540 = vunpack.c.l.b16 %v265
    %v541 = vunpack.c.h.b16 %v265
    %v542 = vunpack.c.l.b16 %v266
    %v543 = vpack.c.b16 %v388, %v383
    %v544 = vpack.c.b16 %v389, %v384
    %v545 = vpack.c.b16 %v390, %v385
    %v546 = vpack.c.b16 %v391, %v386
    %v547 = vpack.c.b16 %v392, %v387
    %v548 = vpack.c.b16 %v398, %v393
    %v549 = vpack.c.b16 %v399, %v394
    %v550 = vpack.c.b16 %v400, %v395
    %v551 = vpack.c.b16 %v401, %v396
    %v552 = vpack.c.b16 %v402, %v397
    %v553 = vpack.c.b16 %v408, %v403
    %v554 = vpack.c.b16 %v409, %v404
    %v555 = vpack.c.b16 %v410, %v405
    %v556 = vpack.c.b16 %v411, %v406
    %v557 = vpack.c.b16 %v412, %v407
    %v558 = vpack.c.b16 %v418, %v413
    %v559 = vpack.c.b16 %v419, %v414
    %v560 = vpack.c.b16 %v420, %v415
    %v561 = vpack.c.b16 %v421, %v416
    %v562 = vpack.c.b16 %v422, %v417
    %v563 = vpack.c.b16 %v428, %v423
    %v564 = vpack.c.b16 %v429, %v424
    %v565 = vpack.c.b16 %v430, %v425
    %v566 = vpack.c.b16 %v431, %v426
    %v567 = vpack.c.b16 %v432, %v427
    %v568 = vpack.c.b16 %v438, %v433
    %v569 = vpack.c.b16 %v439, %v434
    %v570 = vpack.c.b16 %v440, %v435
    %v571 = vpack.c.b16 %v441, %v436
    %v572 = vpack.c.b16 %v442, %v437
    %v573 = vpack.c.b16 %v448, %v443
    %v574 = vpack.c.b16 %v449, %v444
    %v575 = vpack.c.b16 %v450, %v445
    %v576 = vpack.c.b16 %v451, %v446
    %v577 = vpack.c.b16 %v452, %v447
    %v578 = vpack.c.b16 %v458, %v453
    %v579 = vpack.c.b16 %v459, %v454
    %v580 = vpack.c.b16 %v460, %v455
    %v581 = vpack.c.b16 %v461, %v456
    %v582 = vpack.c.b16 %v462, %v457
    %v583 = vpack.c.b16 %v468, %v463
    %v584 = vpack.c.b16 %v469, %v464
    %v585 = vpack.c.b16 %v470, %v465
    %v586 = vpack.c.b16 %v471, %v466
    %v587 = vpack.c.b16 %v472, %v467
    %v588 = vpack.c.b16 %v478, %v473
    %v589 = vpack.c.b16 %v479, %v474
    %v590 = vpack.c.b16 %v480, %v475
    %v591 = vpack.c.b16 %v481, %v476
    %v592 = vpack.c.b16 %v482, %v477
    %v593 = vpack.c.b16 %v488, %v483
    %v594 = vpack.c.b16 %v489, %v484
    %v595 = vpack.c.b16 %v490, %v485
    %v596 = vpack.c.b16 %v491, %v486
    %v597 = vpack.c.b16 %v492, %v487
    %v598 = vpack.c.b16 %v498, %v493
    %v599 = vpack.c.b16 %v499, %v494
    %v600 = vpack.c.b16 %v500, %v495
    %v601 = vpack.c.b16 %v501, %v496
    %v602 = vpack.c.b16 %v502, %v497
    %v603 = vpack.c.b16 %v508, %v503
    %v604 = vpack.c.b16 %v509, %v504
    %v605 = vpack.c.b16 %v510, %v505
    %v606 = vpack.c.b16 %v511, %v506
    %v607 = vpack.c.b16 %v512, %v507
    %v608 = vpack.c.b16 %v518, %v513
    %v609 = vpack.c.b16 %v519, %v514
    %v610 = vpack.c.b16 %v520, %v515
    %v611 = vpack.c.b16 %v521, %v516
    %v612 = vpack.c.b16 %v522, %v517
    %v613 = vpack.c.b16 %v528, %v523
    %v614 = vpack.c.b16 %v529, %v524
    %v615 = vpack.c.b16 %v530, %v525
    %v616 = vpack.c.b16 %v531, %v526
    %v617 = vpack.c.b16 %v532, %v527
    %v618 = vpack.c.b16 %v538, %v533
    %v619 = vpack.c.b16 %v539, %v534
    %v620 = vpack.c.b16 %v540, %v535
    %v621 = vpack.c.b16 %v541, %v536
    %v622 = vpack.c.b16 %v542, %v537
    %703 = vmatprep.subr.bf16.mxu0 %v579
    %704 = vmatpush1.bf16.msra.mxu0 %v578
    %705 = vmatprep.subr.bf16.mxu0 %v574
    %706 = vmatpush1.bf16.msra.mxu0 %v573
    %707 = vmatprep.subr.bf16.mxu0 %v569
    %708 = vmatpush1.bf16.msra.mxu0 %v568
    %709 = vmatprep.subr.bf16.mxu0 %v564
    %710 = vmatpush1.bf16.msra.mxu0 %v563
    %711 = vmatprep.subr.bf16.mxu0 %v559
    %712 = vmatpush1.bf16.msra.mxu0 %v558
    %713 = vmatprep.subr.bf16.mxu0 %v554
    %714 = vmatpush1.bf16.msra.mxu0 %v553
    %715 = vmatprep.subr.bf16.mxu0 %v549
    %716 = vmatpush1.bf16.msra.mxu0 %v548
    %717 = vmatprep.subr.bf16.mxu0 %v544
    %718 = vmatpush1.bf16.msra.mxu0 %v543
    %719 = vmatprep.subr.bf16.mxu0 %v619
    %720 = vmatpush2.bf16.msra.mxu0 %v618
    %721 = vmatprep.subr.bf16.mxu0 %v614
    %722 = vmatpush2.bf16.msra.mxu0 %v613
    %723 = vmatprep.subr.bf16.mxu0 %v609
    %724 = vmatpush2.bf16.msra.mxu0 %v608
    %725 = vmatprep.subr.bf16.mxu0 %v604
    %726 = vmatpush2.bf16.msra.mxu0 %v603
    %727 = vmatprep.subr.bf16.mxu0 %v599
    %728 = vmatpush2.bf16.msra.mxu0 %v598
    %729 = vmatprep.subr.bf16.mxu0 %v594
    %730 = vmatpush2.bf16.msra.mxu0 %v593
    %731 = vmatprep.subr.bf16.mxu0 %v589
    %732 = vmatpush2.bf16.msra.mxu0 %v588
    %733 = vmatprep.subr.bf16.mxu0 %v584
    %734 = vmatpush2.bf16.msra.mxu0 %v583
    %735 = vmatprep.mubr.bf16.mxu0 %v170
    %736 = vmatmul.mubr.bf16.gmra.mxu0 %v169
    %v737 = vpop.f32.mrf.mxu0
    %v738 = vadd.f32 %v270, %v737
    %v739 = vpop.f32.mrf.mxu0
    %v740 = vadd.f32 %v274, %v739
    %v741 = vpop.f32.mrf.mxu0
    %v742 = vpop.f32.mrf.mxu0
    %743 = vdwg.mxu0
    %744 = vmatprep.subr.bf16.mxu0 %v581
    %745 = vmatpush1.bf16.msra.mxu0 %v580
    %746 = vmatprep.subr.bf16.mxu0 %v576
    %747 = vmatpush1.bf16.msra.mxu0 %v575
    %748 = vmatprep.subr.bf16.mxu0 %v571
    %749 = vmatpush1.bf16.msra.mxu0 %v570
    %750 = vmatprep.subr.bf16.mxu0 %v566
    %751 = vmatpush1.bf16.msra.mxu0 %v565
    %752 = vmatprep.subr.bf16.mxu0 %v561
    %753 = vmatpush1.bf16.msra.mxu0 %v560
    %754 = vmatprep.subr.bf16.mxu0 %v556
    %755 = vmatpush1.bf16.msra.mxu0 %v555
    %756 = vmatprep.subr.bf16.mxu0 %v551
    %757 = vmatpush1.bf16.msra.mxu0 %v550
    %758 = vmatprep.subr.bf16.mxu0 %v546
    %759 = vmatpush1.bf16.msra.mxu0 %v545
    %760 = vmatprep.subr.bf16.mxu0 %v621
    %761 = vmatpush2.bf16.msra.mxu0 %v620
    %762 = vmatprep.subr.bf16.mxu0 %v616
    %763 = vmatpush2.bf16.msra.mxu0 %v615
    %764 = vmatprep.subr.bf16.mxu0 %v611
    %765 = vmatpush2.bf16.msra.mxu0 %v610
    %766 = vmatprep.subr.bf16.mxu0 %v606
    %767 = vmatpush2.bf16.msra.mxu0 %v605
    %768 = vmatprep.subr.bf16.mxu0 %v601
    %769 = vmatpush2.bf16.msra.mxu0 %v600
    %770 = vmatprep.subr.bf16.mxu0 %v596
    %771 = vmatpush2.bf16.msra.mxu0 %v595
    %772 = vmatprep.subr.bf16.mxu0 %v591
    %773 = vmatpush2.bf16.msra.mxu0 %v590
    %774 = vmatprep.subr.bf16.mxu0 %v586
    %775 = vmatpush2.bf16.msra.mxu0 %v585
    %776 = vmatprep.mubr.bf16.mxu0 %v170
    %777 = vmatmul.mubr.bf16.gmra.mxu0 %v169
    %v778 = vpop.f32.mrf.mxu0
    %v779 = vadd.f32 %v278, %v778
    %v780 = vpop.f32.mrf.mxu0
    %v781 = vadd.f32 %v282, %v780
    %v782 = vpop.f32.mrf.mxu0
    %v783 = vpop.f32.mrf.mxu0
    %784 = vdwg.mxu0
    %785 = vmatprep.subr.bf16.mxu0 0
    %786 = vmatpush1.bf16.msra.mxu0 %v582
    %787 = vmatprep.subr.bf16.mxu0 0
    %788 = vmatpush1.bf16.msra.mxu0 %v577
    %789 = vmatprep.subr.bf16.mxu0 0
    %790 = vmatpush1.bf16.msra.mxu0 %v572
    %791 = vmatprep.subr.bf16.mxu0 0
    %792 = vmatpush1.bf16.msra.mxu0 %v567
    %793 = vmatprep.subr.bf16.mxu0 0
    %794 = vmatpush1.bf16.msra.mxu0 %v562
    %795 = vmatprep.subr.bf16.mxu0 0
    %796 = vmatpush1.bf16.msra.mxu0 %v557
    %797 = vmatprep.subr.bf16.mxu0 0
    %798 = vmatpush1.bf16.msra.mxu0 %v552
    %799 = vmatprep.subr.bf16.mxu0 0
    %800 = vmatpush1.bf16.msra.mxu0 %v547
    %801 = vmatprep.subr.bf16.mxu0 0
    %802 = vmatpush2.bf16.msra.mxu0 %v622
    %803 = vmatprep.subr.bf16.mxu0 0
    %804 = vmatpush2.bf16.msra.mxu0 %v617
    %805 = vmatprep.subr.bf16.mxu0 0
    %806 = vmatpush2.bf16.msra.mxu0 %v612
    %807 = vmatprep.subr.bf16.mxu0 0
    %808 = vmatpush2.bf16.msra.mxu0 %v607
    %809 = vmatprep.subr.bf16.mxu0 0
    %810 = vmatpush2.bf16.msra.mxu0 %v602
    %811 = vmatprep.subr.bf16.mxu0 0
    %812 = vmatpush2.bf16.msra.mxu0 %v597
    %813 = vmatprep.subr.bf16.mxu0 0
    %814 = vmatpush2.bf16.msra.mxu0 %v592
    %815 = vmatprep.subr.bf16.mxu0 0
    %816 = vmatpush2.bf16.msra.mxu0 %v587
    %817 = vmatprep.mubr.bf16.mxu0 %v170
    %818 = vmatmul.mubr.bf16.gmra.mxu0 %v169
    %v819 = vpop.f32.mrf.mxu0
    %v820 = vadd.f32 %v286, %v819
    %v821 = vpop.f32.mrf.mxu0
    %v822 = vpop.f32.mrf.mxu0
    %v823 = vpop.f32.mrf.mxu0
    %824 = vdwg.mxu0
    %v825 = vrot.slane %v738, 4
    %v826 = vadd.f32 %v738, %v825
    %v827 = vrot.slane %v826, 2
    %v828 = vadd.f32 %v826, %v827
    %v829 = vrot.slane %v828, 1
    %v830 = vadd.f32 %v828, %v829
    %v831 = vrot.slane %v740, 4
    %v832 = vadd.f32 %v740, %v831
    %v833 = vrot.slane %v832, 2
    %v834 = vadd.f32 %v832, %v833
    %v835 = vrot.slane %v834, 1
    %v836 = vadd.f32 %v834, %v835
    %v837 = vrot.slane %v779, 4
    %v838 = vadd.f32 %v779, %v837
    %v839 = vrot.slane %v838, 2
    %v840 = vadd.f32 %v838, %v839
    %v841 = vrot.slane %v840, 1
    %v842 = vadd.f32 %v840, %v841
    %v843 = vrot.slane %v781, 4
    %v844 = vadd.f32 %v781, %v843
    %v845 = vrot.slane %v844, 2
    %v846 = vadd.f32 %v844, %v845
    %v847 = vrot.slane %v846, 1
    %v848 = vadd.f32 %v846, %v847
    %v849 = vrot.slane %v820, 4
    %v850 = vadd.f32 %v820, %v849
    %v851 = vrot.slane %v850, 2
    %v852 = vadd.f32 %v850, %v851
    %v853 = vrot.slane %v852, 1
    %v854 = vadd.f32 %v852, %v853
    %v855 = vrcp.pop 8.0
    %v856 = vmul.f32 %v830, %v855
    %v857 = vmul.f32 %v836, %v855
    %v858 = vmul.f32 %v842, %v855
    %v859 = vmul.f32 %v848, %v855
    %v860 = vmul.f32 %v854, %v855
    %v861 = vmul.f32 %v738, %v738
    %v862 = vmul.f32 %v740, %v740
    %v863 = vmul.f32 %v779, %v779
    %v864 = vmul.f32 %v781, %v781
    %v865 = vmul.f32 %v820, %v820
    %v866 = vrot.slane %v861, 4
    %v867 = vadd.f32 %v861, %v866
    %v868 = vrot.slane %v867, 2
    %v869 = vadd.f32 %v867, %v868
    %v870 = vrot.slane %v869, 1
    %v871 = vadd.f32 %v869, %v870
    %v872 = vrot.slane %v862, 4
    %v873 = vadd.f32 %v862, %v872
    %v874 = vrot.slane %v873, 2
    %v875 = vadd.f32 %v873, %v874
    %v876 = vrot.slane %v875, 1
    %v877 = vadd.f32 %v875, %v876
    %v878 = vrot.slane %v863, 4
    %v879 = vadd.f32 %v863, %v878
    %v880 = vrot.slane %v879, 2
    %v881 = vadd.f32 %v879, %v880
    %v882 = vrot.slane %v881, 1
    %v883 = vadd.f32 %v881, %v882
    %v884 = vrot.slane %v864, 4
    %v885 = vadd.f32 %v864, %v884
    %v886 = vrot.slane %v885, 2
    %v887 = vadd.f32 %v885, %v886
    %v888 = vrot.slane %v887, 1
    %v889 = vadd.f32 %v887, %v888
    %v890 = vrot.slane %v865, 4
    %v891 = vadd.f32 %v865, %v890
    %v892 = vrot.slane %v891, 2
    %v893 = vadd.f32 %v891, %v892
    %v894 = vrot.slane %v893, 1
    %v895 = vadd.f32 %v893, %v894
    %v896 = vmul.f32 %v871, %v855
    %v897 = vmul.f32 %v877, %v855
    %v898 = vmul.f32 %v883, %v855
    %v899 = vmul.f32 %v889, %v855
    %v900 = vmul.f32 %v895, %v855
    %v901 = vmul.f32 %v856, %v856
    %v902 = vmul.f32 %v857, %v857
    %v903 = vmul.f32 %v858, %v858
    %v904 = vmul.f32 %v859, %v859
    %v905 = vmul.f32 %v860, %v860
    %v906 = vsub.f32 %v896, %v901
    %v907 = vsub.f32 %v897, %v902
    %v908 = vsub.f32 %v898, %v903
    %v909 = vsub.f32 %v899, %v904
    %v910 = vsub.f32 %v900, %v905
    %v911 = vadd.f32 %v906, 1e-05
    %v912 = vadd.f32 %v907, 1e-05
    %v913 = vadd.f32 %v908, 1e-05
    %v914 = vadd.f32 %v909, 1e-05
    %v915 = vadd.f32 %v910, 1e-05
    %v916 = vrsqrt.pop %v911
    %v917 = vrsqrt.pop %v912
    %v918 = vrsqrt.pop %v913
    %v919 = vrsqrt.pop %v914
    %v920 = vrsqrt.pop %v915
    %v921 = vmul.f32 %v155, %v916
    %v922 = vmul.f32 %v156, %v917
    %v923 = vmul.f32 %v157, %v918
    %v924 = vmul.f32 %v158, %v919
    %v925 = vmul.f32 %v159, %v920
    %v926 = vlaneseq
    %v927 = vshrl.u32 %v926, 7
    %v928 = vsub.s32 1, %v927
    %v929 = vrot.slane %v921, %v928
    %v930 = vlaneseq
    %v931 = vshrl.u32 %v930, 7
    %v932 = vsub.s32 1, %v931
    %v933 = vrot.slane %v922, %v932
    %v934 = vlaneseq
    %v935 = vshrl.u32 %v934, 7
    %v936 = vsub.s32 1, %v935
    %v937 = vrot.slane %v923, %v936
    %v938 = vlaneseq
    %v939 = vshrl.u32 %v938, 7
    %v940 = vsub.s32 1, %v939
    %v941 = vrot.slane %v924, %v940
    %v942 = vlaneseq
    %v943 = vshrl.u32 %v942, 7
    %v944 = vsub.s32 1, %v943
    %v945 = vrot.slane %v925, %v944
    %v946 = vmul.f32 %v738, %v929
    %v947 = vmul.f32 %v740, %v933
    %v948 = vmul.f32 %v779, %v937
    %v949 = vmul.f32 %v781, %v941
    %v950 = vmul.f32 %v820, %v945
    %v951 = vmul.f32 %v856, %v921
    %v952 = vmul.f32 %v857, %v922
    %v953 = vmul.f32 %v858, %v923
    %v954 = vmul.f32 %v859, %v924
    %v955 = vmul.f32 %v860, %v925
    %v961 = vrot.slane %v951, 7
    %v962 = vrot.slane %v952, 7
    %v963 = vrot.slane %v953, 7
    %v964 = vrot.slane %v954, 7
    %v965 = vrot.slane %v955, 7
    %v971 = vsub.f32 %v155, %v961
    %v972 = vsub.f32 %v156, %v962
    %v973 = vsub.f32 %v157, %v963
    %v974 = vsub.f32 %v158, %v964
    %v975 = vsub.f32 %v159, %v965
    %v976 = vlaneseq
    %v977 = vshrl.u32 %v976, 7
    %v978 = vsub.s32 2, %v977
    %v979 = vrot.slane %v971, %v978
    %v980 = vlaneseq
    %v981 = vshrl.u32 %v980, 7
    %v982 = vsub.s32 2, %v981
    %v983 = vrot.slane %v972, %v982
    %v984 = vlaneseq
    %v985 = vshrl.u32 %v984, 7
    %v986 = vsub.s32 2, %v985
    %v987 = vrot.slane %v973, %v986
    %v988 = vlaneseq
    %v989 = vshrl.u32 %v988, 7
    %v990 = vsub.s32 2, %v989
    %v991 = vrot.slane %v974, %v990
    %v992 = vlaneseq
    %v993 = vshrl.u32 %v992, 7
    %v994 = vsub.s32 2, %v993
    %v995 = vrot.slane %v975, %v994
    %v996 = vadd.f32 %v946, %v979
    %v997 = vadd.f32 %v947, %v983
    %v998 = vadd.f32 %v948, %v987
    %v999 = vadd.f32 %v949, %v991
    %v1000 = vadd.f32 %v950, %v995
    %v1001 = vmin.f32 %v996, 20.0
    %v1002 = vmin.f32 %v997, 20.0
    %v1003 = vmin.f32 %v998, 20.0
    %v1004 = vmin.f32 %v999, 20.0
    %v1005 = vmin.f32 %v1000, 20.0
    %vm1006 = vcmp.gt.f32.partialorder %v996, 20.0
    %vm1007 = vcmp.gt.f32.partialorder %v997, 20.0
    %vm1008 = vcmp.gt.f32.partialorder %v998, 20.0
    %vm1009 = vcmp.gt.f32.partialorder %v999, 20.0
    %vm1010 = vcmp.gt.f32.partialorder %v1000, 20.0
    %v1011 = vmul.f32 %v1001, 1.442695
    %v1012 = vpow.pop %v1011
    %v1013 = vmul.f32 %v1002, 1.442695
    %v1014 = vpow.pop %v1013
    %v1015 = vmul.f32 %v1003, 1.442695
    %v1016 = vpow.pop %v1015
    %v1017 = vmul.f32 %v1004, 1.442695
    %v1018 = vpow.pop %v1017
    %v1019 = vmul.f32 %v1005, 1.442695
    %v1020 = vpow.pop %v1019
    %v1021 = vadd.f32 %v1012, 1.0
    %v1022 = vlog2.pop %v1021
    %v1023 = vmul.f32 %v1022, 0.6931472
    %v1024 = vmul.f32 -0.5, %v1012
    %v1025 = vadd.f32 %v1024, 1.0
    %v1026 = vmul.f32 %v1025, %v1012
    %v1027 = vand.u32 2147483647, %v1012
    %vm1028 = vcmp.lt.f32.partialorder %v1027, 0.0004427343
    %v1029 = vsel %vm1028, %v1026, %v1023
    %v1030 = vadd.f32 %v1014, 1.0
    %v1031 = vlog2.pop %v1030
    %v1032 = vmul.f32 %v1031, 0.6931472
    %v1033 = vmul.f32 -0.5, %v1014
    %v1034 = vadd.f32 %v1033, 1.0
    %v1035 = vmul.f32 %v1034, %v1014
    %v1036 = vand.u32 2147483647, %v1014
    %vm1037 = vcmp.lt.f32.partialorder %v1036, 0.0004427343
    %v1038 = vsel %vm1037, %v1035, %v1032
    %v1039 = vadd.f32 %v1016, 1.0
    %v1040 = vlog2.pop %v1039
    %v1041 = vmul.f32 %v1040, 0.6931472
    %v1042 = vmul.f32 -0.5, %v1016
    %v1043 = vadd.f32 %v1042, 1.0
    %v1044 = vmul.f32 %v1043, %v1016
    %v1045 = vand.u32 2147483647, %v1016
    %vm1046 = vcmp.lt.f32.partialorder %v1045, 0.0004427343
    %v1047 = vsel %vm1046, %v1044, %v1041
    %v1048 = vadd.f32 %v1018, 1.0
    %v1049 = vlog2.pop %v1048
    %v1050 = vmul.f32 %v1049, 0.6931472
    %v1051 = vmul.f32 -0.5, %v1018
    %v1052 = vadd.f32 %v1051, 1.0
    %v1053 = vmul.f32 %v1052, %v1018
    %v1054 = vand.u32 2147483647, %v1018
    %vm1055 = vcmp.lt.f32.partialorder %v1054, 0.0004427343
    %v1056 = vsel %vm1055, %v1053, %v1050
    %v1057 = vadd.f32 %v1020, 1.0
    %v1058 = vlog2.pop %v1057
    %v1059 = vmul.f32 %v1058, 0.6931472
    %v1060 = vmul.f32 -0.5, %v1020
    %v1061 = vadd.f32 %v1060, 1.0
    %v1062 = vmul.f32 %v1061, %v1020
    %v1063 = vand.u32 2147483647, %v1020
    %vm1064 = vcmp.lt.f32.partialorder %v1063, 0.0004427343
    %v1065 = vsel %vm1064, %v1062, %v1059
    %v1066 = vsel %vm1006, %v996, %v1029
    %v1067 = vsel %vm1007, %v997, %v1038
    %v1068 = vsel %vm1008, %v998, %v1047
    %v1069 = vsel %vm1009, %v999, %v1056
    %v1070 = vsel %vm1010, %v1000, %v1065
    %v1071 = vpack.c.bf16 %v1066, %v1066
    %v1072 = vpack.c.bf16 %v1067, %v1067
    %v1073 = vpack.c.bf16 %v1068, %v1068
    %v1074 = vpack.c.bf16 %v1069, %v1069
    %v1075 = vpack.c.bf16 %v1070, %v1070
    %s1076 = smul.u32 4, 80
    %s1077 = smul.u32 %s1076, 5
    %s1078 = sshll.u32 %s1077, 4
    %1079 = dma.done [#allocation7], %s1078
    %v1080 = vld [vmem:[#allocation2] sm:$0xff]
    %v1081 = vld [vmem:[#allocation2 + $0x8] sm:$0xff]
    %v1082 = vld [vmem:[#allocation2 + $0x10] sm:$0xf]
    %v1083 = vld [vmem:[#allocation2 + $0x14] sm:$0xff]
    %v1084 = vld [vmem:[#allocation2 + $0x1c] sm:$0xff]
    %v1085 = vld [vmem:[#allocation2 + $0x24] sm:$0xf]
    %v1086 = vld [vmem:[#allocation2 + $0x28] sm:$0xff]
    %v1087 = vld [vmem:[#allocation2 + $0x30] sm:$0xff]
    %v1088 = vld [vmem:[#allocation2 + $0x38] sm:$0xf]
    %v1089 = vld [vmem:[#allocation2 + $0x3c] sm:$0xff]
    %v1090 = vld [vmem:[#allocation2 + $0x44] sm:$0xff]
    %v1091 = vld [vmem:[#allocation2 + $0x4c] sm:$0xf]
    %v1092 = vld [vmem:[#allocation2 + $0x50] sm:$0xff]
    %v1093 = vld [vmem:[#allocation2 + $0x58] sm:$0xff]
    %v1094 = vld [vmem:[#allocation2 + $0x60] sm:$0xf]
    %v1095 = vld [vmem:[#allocation2 + $0x64] sm:$0xff]
    %v1096 = vld [vmem:[#allocation2 + $0x6c] sm:$0xff]
    %v1097 = vld [vmem:[#allocation2 + $0x74] sm:$0xf]
    %v1098 = vld [vmem:[#allocation2 + $0x78] sm:$0xff]
    %v1099 = vld [vmem:[#allocation2 + $0x80] sm:$0xff]
    %v1100 = vld [vmem:[#allocation2 + $0x88] sm:$0xf]
    %v1101 = vld [vmem:[#allocation2 + $0x8c] sm:$0xff]
    %v1102 = vld [vmem:[#allocation2 + $0x94] sm:$0xff]
    %v1103 = vld [vmem:[#allocation2 + $0x9c] sm:$0xf]
    %v1104 = vld [vmem:[#allocation2 + $0xa0] sm:$0xff]
    %v1105 = vld [vmem:[#allocation2 + $0xa8] sm:$0xff]
    %v1106 = vld [vmem:[#allocation2 + $0xb0] sm:$0xf]
    %v1107 = vld [vmem:[#allocation2 + $0xb4] sm:$0xff]
    %v1108 = vld [vmem:[#allocation2 + $0xbc] sm:$0xff]
    %v1109 = vld [vmem:[#allocation2 + $0xc4] sm:$0xf]
    %v1110 = vld [vmem:[#allocation2 + $0xc8] sm:$0xff]
    %v1111 = vld [vmem:[#allocation2 + $0xd0] sm:$0xff]
    %v1112 = vld [vmem:[#allocation2 + $0xd8] sm:$0xf]
    %v1113 = vld [vmem:[#allocation2 + $0xdc] sm:$0xff]
    %v1114 = vld [vmem:[#allocation2 + $0xe4] sm:$0xff]
    %v1115 = vld [vmem:[#allocation2 + $0xec] sm:$0xf]
    %v1116 = vld [vmem:[#allocation2 + $0xf0] sm:$0xff]
    %v1117 = vld [vmem:[#allocation2 + $0xf8] sm:$0xff]
    %v1118 = vld [vmem:[#allocation2 + $0x100] sm:$0xf]
    %v1119 = vld [vmem:[#allocation2 + $0x104] sm:$0xff]
    %v1120 = vld [vmem:[#allocation2 + $0x10c] sm:$0xff]
    %v1121 = vld [vmem:[#allocation2 + $0x114] sm:$0xf]
    %v1122 = vld [vmem:[#allocation2 + $0x118] sm:$0xff]
    %v1123 = vld [vmem:[#allocation2 + $0x120] sm:$0xff]
    %v1124 = vld [vmem:[#allocation2 + $0x128] sm:$0xf]
    %v1125 = vld [vmem:[#allocation2 + $0x12c] sm:$0xff]
    %v1126 = vld [vmem:[#allocation2 + $0x134] sm:$0xff]
    %v1127 = vld [vmem:[#allocation2 + $0x13c] sm:$0xf]
    %v1128 = vld [vmem:[#allocation2 + $0x140] sm:$0xff]
    %v1129 = vld [vmem:[#allocation2 + $0x148] sm:$0xff]
    %v1130 = vld [vmem:[#allocation2 + $0x150] sm:$0xf]
    %v1131 = vld [vmem:[#allocation2 + $0x154] sm:$0xff]
    %v1132 = vld [vmem:[#allocation2 + $0x15c] sm:$0xff]
    %v1133 = vld [vmem:[#allocation2 + $0x164] sm:$0xf]
    %v1134 = vld [vmem:[#allocation2 + $0x168] sm:$0xff]
    %v1135 = vld [vmem:[#allocation2 + $0x170] sm:$0xff]
    %v1136 = vld [vmem:[#allocation2 + $0x178] sm:$0xf]
    %v1137 = vld [vmem:[#allocation2 + $0x17c] sm:$0xff]
    %v1138 = vld [vmem:[#allocation2 + $0x184] sm:$0xff]
    %v1139 = vld [vmem:[#allocation2 + $0x18c] sm:$0xf]
    %v1140 = vld [vmem:[#allocation2 + $0x190] sm:$0xff]
    %v1141 = vld [vmem:[#allocation2 + $0x198] sm:$0xff]
    %v1142 = vld [vmem:[#allocation2 + $0x1a0] sm:$0xf]
    %v1143 = vld [vmem:[#allocation2 + $0x1a4] sm:$0xff]
    %v1144 = vld [vmem:[#allocation2 + $0x1ac] sm:$0xff]
    %v1145 = vld [vmem:[#allocation2 + $0x1b4] sm:$0xf]
    %v1146 = vld [vmem:[#allocation2 + $0x1b8] sm:$0xff]
    %v1147 = vld [vmem:[#allocation2 + $0x1c0] sm:$0xff]
    %v1148 = vld [vmem:[#allocation2 + $0x1c8] sm:$0xf]
    %v1149 = vld [vmem:[#allocation2 + $0x1cc] sm:$0xff]
    %v1150 = vld [vmem:[#allocation2 + $0x1d4] sm:$0xff]
    %v1151 = vld [vmem:[#allocation2 + $0x1dc] sm:$0xf]
    %v1152 = vld [vmem:[#allocation2 + $0x1e0] sm:$0xff]
    %v1153 = vld [vmem:[#allocation2 + $0x1e8] sm:$0xff]
    %v1154 = vld [vmem:[#allocation2 + $0x1f0] sm:$0xf]
    %v1155 = vld [vmem:[#allocation2 + $0x1f4] sm:$0xff]
    %v1156 = vld [vmem:[#allocation2 + $0x1fc] sm:$0xff]
    %v1157 = vld [vmem:[#allocation2 + $0x204] sm:$0xf]
    %v1158 = vld [vmem:[#allocation2 + $0x208] sm:$0xff]
    %v1159 = vld [vmem:[#allocation2 + $0x210] sm:$0xff]
    %v1160 = vld [vmem:[#allocation2 + $0x218] sm:$0xf]
    %v1161 = vld [vmem:[#allocation2 + $0x21c] sm:$0xff]
    %v1162 = vld [vmem:[#allocation2 + $0x224] sm:$0xff]
    %v1163 = vld [vmem:[#allocation2 + $0x22c] sm:$0xf]
    %v1164 = vld [vmem:[#allocation2 + $0x230] sm:$0xff]
    %v1165 = vld [vmem:[#allocation2 + $0x238] sm:$0xff]
    %v1166 = vld [vmem:[#allocation2 + $0x240] sm:$0xf]
    %v1167 = vld [vmem:[#allocation2 + $0x244] sm:$0xff]
    %v1168 = vld [vmem:[#allocation2 + $0x24c] sm:$0xff]
    %v1169 = vld [vmem:[#allocation2 + $0x254] sm:$0xf]
    %v1170 = vld [vmem:[#allocation2 + $0x258] sm:$0xff]
    %v1171 = vld [vmem:[#allocation2 + $0x260] sm:$0xff]
    %v1172 = vld [vmem:[#allocation2 + $0x268] sm:$0xf]
    %v1173 = vld [vmem:[#allocation2 + $0x26c] sm:$0xff]
    %v1174 = vld [vmem:[#allocation2 + $0x274] sm:$0xff]
    %v1175 = vld [vmem:[#allocation2 + $0x27c] sm:$0xf]
    %v1176 = vld [vmem:[#allocation2 + $0x280] sm:$0xff]
    %v1177 = vld [vmem:[#allocation2 + $0x288] sm:$0xff]
    %v1178 = vld [vmem:[#allocation2 + $0x290] sm:$0xf]
    %v1179 = vld [vmem:[#allocation2 + $0x294] sm:$0xff]
    %v1180 = vld [vmem:[#allocation2 + $0x29c] sm:$0xff]
    %v1181 = vld [vmem:[#allocation2 + $0x2a4] sm:$0xf]
    %v1182 = vld [vmem:[#allocation2 + $0x2a8] sm:$0xff]
    %v1183 = vld [vmem:[#allocation2 + $0x2b0] sm:$0xff]
    %v1184 = vld [vmem:[#allocation2 + $0x2b8] sm:$0xf]
    %v1185 = vld [vmem:[#allocation2 + $0x2bc] sm:$0xff]
    %v1186 = vld [vmem:[#allocation2 + $0x2c4] sm:$0xff]
    %v1187 = vld [vmem:[#allocation2 + $0x2cc] sm:$0xf]
    %v1188 = vld [vmem:[#allocation2 + $0x2d0] sm:$0xff]
    %v1189 = vld [vmem:[#allocation2 + $0x2d8] sm:$0xff]
    %v1190 = vld [vmem:[#allocation2 + $0x2e0] sm:$0xf]
    %v1191 = vld [vmem:[#allocation2 + $0x2e4] sm:$0xff]
    %v1192 = vld [vmem:[#allocation2 + $0x2ec] sm:$0xff]
    %v1193 = vld [vmem:[#allocation2 + $0x2f4] sm:$0xf]
    %v1194 = vld [vmem:[#allocation2 + $0x2f8] sm:$0xff]
    %v1195 = vld [vmem:[#allocation2 + $0x300] sm:$0xff]
    %v1196 = vld [vmem:[#allocation2 + $0x308] sm:$0xf]
    %v1197 = vld [vmem:[#allocation2 + $0x30c] sm:$0xff]
    %v1198 = vld [vmem:[#allocation2 + $0x314] sm:$0xff]
    %v1199 = vld [vmem:[#allocation2 + $0x31c] sm:$0xf]
    %v1200 = vld [vmem:[#allocation2 + $0x320] sm:$0xff]
    %v1201 = vld [vmem:[#allocation2 + $0x328] sm:$0xff]
    %v1202 = vld [vmem:[#allocation2 + $0x330] sm:$0xf]
    %v1203 = vld [vmem:[#allocation2 + $0x334] sm:$0xff]
    %v1204 = vld [vmem:[#allocation2 + $0x33c] sm:$0xff]
    %v1205 = vld [vmem:[#allocation2 + $0x344] sm:$0xf]
    %v1206 = vld [vmem:[#allocation2 + $0x348] sm:$0xff]
    %v1207 = vld [vmem:[#allocation2 + $0x350] sm:$0xff]
    %v1208 = vld [vmem:[#allocation2 + $0x358] sm:$0xf]
    %v1209 = vld [vmem:[#allocation2 + $0x35c] sm:$0xff]
    %v1210 = vld [vmem:[#allocation2 + $0x364] sm:$0xff]
    %v1211 = vld [vmem:[#allocation2 + $0x36c] sm:$0xf]
    %v1212 = vld [vmem:[#allocation2 + $0x370] sm:$0xff]
    %v1213 = vld [vmem:[#allocation2 + $0x378] sm:$0xff]
    %v1214 = vld [vmem:[#allocation2 + $0x380] sm:$0xf]
    %v1215 = vld [vmem:[#allocation2 + $0x384] sm:$0xff]
    %v1216 = vld [vmem:[#allocation2 + $0x38c] sm:$0xff]
    %v1217 = vld [vmem:[#allocation2 + $0x394] sm:$0xf]
    %v1218 = vld [vmem:[#allocation2 + $0x398] sm:$0xff]
    %v1219 = vld [vmem:[#allocation2 + $0x3a0] sm:$0xff]
    %v1220 = vld [vmem:[#allocation2 + $0x3a8] sm:$0xf]
    %v1221 = vld [vmem:[#allocation2 + $0x3ac] sm:$0xff]
    %v1222 = vld [vmem:[#allocation2 + $0x3b4] sm:$0xff]
    %v1223 = vld [vmem:[#allocation2 + $0x3bc] sm:$0xf]
    %v1224 = vld [vmem:[#allocation2 + $0x3c0] sm:$0xff]
    %v1225 = vld [vmem:[#allocation2 + $0x3c8] sm:$0xff]
    %v1226 = vld [vmem:[#allocation2 + $0x3d0] sm:$0xf]
    %v1227 = vld [vmem:[#allocation2 + $0x3d4] sm:$0xff]
    %v1228 = vld [vmem:[#allocation2 + $0x3dc] sm:$0xff]
    %v1229 = vld [vmem:[#allocation2 + $0x3e4] sm:$0xf]
    %v1230 = vld [vmem:[#allocation2 + $0x3e8] sm:$0xff]
    %v1231 = vld [vmem:[#allocation2 + $0x3f0] sm:$0xff]
    %v1232 = vld [vmem:[#allocation2 + $0x3f8] sm:$0xf]
    %v1233 = vld [vmem:[#allocation2 + $0x3fc] sm:$0xff]
    %v1234 = vld [vmem:[#allocation2 + $0x404] sm:$0xff]
    %v1235 = vld [vmem:[#allocation2 + $0x40c] sm:$0xf]
    %v1236 = vld [vmem:[#allocation2 + $0x410] sm:$0xff]
    %v1237 = vld [vmem:[#allocation2 + $0x418] sm:$0xff]
    %v1238 = vld [vmem:[#allocation2 + $0x420] sm:$0xf]
    %v1239 = vld [vmem:[#allocation2 + $0x424] sm:$0xff]
    %v1240 = vld [vmem:[#allocation2 + $0x42c] sm:$0xff]
    %v1241 = vld [vmem:[#allocation2 + $0x434] sm:$0xf]
    %v1242 = vld [vmem:[#allocation2 + $0x438] sm:$0xff]
    %v1243 = vld [vmem:[#allocation2 + $0x440] sm:$0xff]
    %v1244 = vld [vmem:[#allocation2 + $0x448] sm:$0xf]
    %v1245 = vld [vmem:[#allocation2 + $0x44c] sm:$0xff]
    %v1246 = vld [vmem:[#allocation2 + $0x454] sm:$0xff]
    %v1247 = vld [vmem:[#allocation2 + $0x45c] sm:$0xf]
    %v1248 = vld [vmem:[#allocation2 + $0x460] sm:$0xff]
    %v1249 = vld [vmem:[#allocation2 + $0x468] sm:$0xff]
    %v1250 = vld [vmem:[#allocation2 + $0x470] sm:$0xf]
    %v1251 = vld [vmem:[#allocation2 + $0x474] sm:$0xff]
    %v1252 = vld [vmem:[#allocation2 + $0x47c] sm:$0xff]
    %v1253 = vld [vmem:[#allocation2 + $0x484] sm:$0xf]
    %v1254 = vld [vmem:[#allocation2 + $0x488] sm:$0xff]
    %v1255 = vld [vmem:[#allocation2 + $0x490] sm:$0xff]
    %v1256 = vld [vmem:[#allocation2 + $0x498] sm:$0xf]
    %v1257 = vld [vmem:[#allocation2 + $0x49c] sm:$0xff]
    %v1258 = vld [vmem:[#allocation2 + $0x4a4] sm:$0xff]
    %v1259 = vld [vmem:[#allocation2 + $0x4ac] sm:$0xf]
    %v1260 = vld [vmem:[#allocation2 + $0x4b0] sm:$0xff]
    %v1261 = vld [vmem:[#allocation2 + $0x4b8] sm:$0xff]
    %v1262 = vld [vmem:[#allocation2 + $0x4c0] sm:$0xf]
    %v1263 = vld [vmem:[#allocation2 + $0x4c4] sm:$0xff]
    %v1264 = vld [vmem:[#allocation2 + $0x4cc] sm:$0xff]
    %v1265 = vld [vmem:[#allocation2 + $0x4d4] sm:$0xf]
    %v1266 = vld [vmem:[#allocation2 + $0x4d8] sm:$0xff]
    %v1267 = vld [vmem:[#allocation2 + $0x4e0] sm:$0xff]
    %v1268 = vld [vmem:[#allocation2 + $0x4e8] sm:$0xf]
    %v1269 = vld [vmem:[#allocation2 + $0x4ec] sm:$0xff]
    %v1270 = vld [vmem:[#allocation2 + $0x4f4] sm:$0xff]
    %v1271 = vld [vmem:[#allocation2 + $0x4fc] sm:$0xf]
    %v1272 = vld [vmem:[#allocation2 + $0x500] sm:$0xff]
    %v1273 = vld [vmem:[#allocation2 + $0x508] sm:$0xff]
    %v1274 = vld [vmem:[#allocation2 + $0x510] sm:$0xf]
    %v1275 = vld [vmem:[#allocation2 + $0x514] sm:$0xff]
    %v1276 = vld [vmem:[#allocation2 + $0x51c] sm:$0xff]
    %v1277 = vld [vmem:[#allocation2 + $0x524] sm:$0xf]
    %v1278 = vld [vmem:[#allocation2 + $0x528] sm:$0xff]
    %v1279 = vld [vmem:[#allocation2 + $0x530] sm:$0xff]
    %v1280 = vld [vmem:[#allocation2 + $0x538] sm:$0xf]
    %v1281 = vld [vmem:[#allocation2 + $0x53c] sm:$0xff]
    %v1282 = vld [vmem:[#allocation2 + $0x544] sm:$0xff]
    %v1283 = vld [vmem:[#allocation2 + $0x54c] sm:$0xf]
    %v1284 = vld [vmem:[#allocation2 + $0x550] sm:$0xff]
    %v1285 = vld [vmem:[#allocation2 + $0x558] sm:$0xff]
    %v1286 = vld [vmem:[#allocation2 + $0x560] sm:$0xf]
    %v1287 = vld [vmem:[#allocation2 + $0x564] sm:$0xff]
    %v1288 = vld [vmem:[#allocation2 + $0x56c] sm:$0xff]
    %v1289 = vld [vmem:[#allocation2 + $0x574] sm:$0xf]
    %v1290 = vld [vmem:[#allocation2 + $0x578] sm:$0xff]
    %v1291 = vld [vmem:[#allocation2 + $0x580] sm:$0xff]
    %v1292 = vld [vmem:[#allocation2 + $0x588] sm:$0xf]
    %v1293 = vld [vmem:[#allocation2 + $0x58c] sm:$0xff]
    %v1294 = vld [vmem:[#allocation2 + $0x594] sm:$0xff]
    %v1295 = vld [vmem:[#allocation2 + $0x59c] sm:$0xf]
    %v1296 = vld [vmem:[#allocation2 + $0x5a0] sm:$0xff]
    %v1297 = vld [vmem:[#allocation2 + $0x5a8] sm:$0xff]
    %v1298 = vld [vmem:[#allocation2 + $0x5b0] sm:$0xf]
    %v1299 = vld [vmem:[#allocation2 + $0x5b4] sm:$0xff]
    %v1300 = vld [vmem:[#allocation2 + $0x5bc] sm:$0xff]
    %v1301 = vld [vmem:[#allocation2 + $0x5c4] sm:$0xf]
    %v1302 = vld [vmem:[#allocation2 + $0x5c8] sm:$0xff]
    %v1303 = vld [vmem:[#allocation2 + $0x5d0] sm:$0xff]
    %v1304 = vld [vmem:[#allocation2 + $0x5d8] sm:$0xf]
    %v1305 = vld [vmem:[#allocation2 + $0x5dc] sm:$0xff]
    %v1306 = vld [vmem:[#allocation2 + $0x5e4] sm:$0xff]
    %v1307 = vld [vmem:[#allocation2 + $0x5ec] sm:$0xf]
    %v1308 = vld [vmem:[#allocation2 + $0x5f0] sm:$0xff]
    %v1309 = vld [vmem:[#allocation2 + $0x5f8] sm:$0xff]
    %v1310 = vld [vmem:[#allocation2 + $0x600] sm:$0xf]
    %v1311 = vld [vmem:[#allocation2 + $0x604] sm:$0xff]
    %v1312 = vld [vmem:[#allocation2 + $0x60c] sm:$0xff]
    %v1313 = vld [vmem:[#allocation2 + $0x614] sm:$0xf]
    %v1314 = vld [vmem:[#allocation2 + $0x618] sm:$0xff]
    %v1315 = vld [vmem:[#allocation2 + $0x620] sm:$0xff]
    %v1316 = vld [vmem:[#allocation2 + $0x628] sm:$0xf]
    %v1317 = vld [vmem:[#allocation2 + $0x62c] sm:$0xff]
    %v1318 = vld [vmem:[#allocation2 + $0x634] sm:$0xff]
    %v1319 = vld [vmem:[#allocation2 + $0x63c] sm:$0xf]
    %v1320 = vlaneseq
    %v1321 = vshrl.u32 %v1320, 7
    %v1322 = vsub.s32 3, %v1321
    %v1323 = vrot.slane %v155, %v1322
    %v1324 = vlaneseq
    %v1325 = vshrl.u32 %v1324, 7
    %v1326 = vsub.s32 3, %v1325
    %v1327 = vrot.slane %v156, %v1326
    %v1328 = vlaneseq
    %v1329 = vshrl.u32 %v1328, 7
    %v1330 = vsub.s32 3, %v1329
    %v1331 = vrot.slane %v157, %v1330
    %v1332 = vlaneseq
    %v1333 = vshrl.u32 %v1332, 7
    %v1334 = vsub.s32 3, %v1333
    %v1335 = vrot.slane %v158, %v1334
    %v1336 = vlaneseq
    %v1337 = vshrl.u32 %v1336, 7
    %v1338 = vsub.s32 3, %v1337
    %v1339 = vrot.slane %v159, %v1338
    %v1580 = vunpack.c.l.b16 %v1080
    %v1581 = vunpack.c.h.b16 %v1080
    %v1582 = vunpack.c.l.b16 %v1081
    %v1583 = vunpack.c.h.b16 %v1081
    %v1584 = vunpack.c.l.b16 %v1082
    %v1585 = vunpack.c.l.b16 %v1083
    %v1586 = vunpack.c.h.b16 %v1083
    %v1587 = vunpack.c.l.b16 %v1084
    %v1588 = vunpack.c.h.b16 %v1084
    %v1589 = vunpack.c.l.b16 %v1085
    %v1590 = vunpack.c.l.b16 %v1086
    %v1591 = vunpack.c.h.b16 %v1086
    %v1592 = vunpack.c.l.b16 %v1087
    %v1593 = vunpack.c.h.b16 %v1087
    %v1594 = vunpack.c.l.b16 %v1088
    %v1595 = vunpack.c.l.b16 %v1089
    %v1596 = vunpack.c.h.b16 %v1089
    %v1597 = vunpack.c.l.b16 %v1090
    %v1598 = vunpack.c.h.b16 %v1090
    %v1599 = vunpack.c.l.b16 %v1091
    %v1600 = vunpack.c.l.b16 %v1092
    %v1601 = vunpack.c.h.b16 %v1092
    %v1602 = vunpack.c.l.b16 %v1093
    %v1603 = vunpack.c.h.b16 %v1093
    %v1604 = vunpack.c.l.b16 %v1094
    %v1605 = vunpack.c.l.b16 %v1095
    %v1606 = vunpack.c.h.b16 %v1095
    %v1607 = vunpack.c.l.b16 %v1096
    %v1608 = vunpack.c.h.b16 %v1096
    %v1609 = vunpack.c.l.b16 %v1097
    %v1610 = vunpack.c.l.b16 %v1098
    %v1611 = vunpack.c.h.b16 %v1098
    %v1612 = vunpack.c.l.b16 %v1099
    %v1613 = vunpack.c.h.b16 %v1099
    %v1614 = vunpack.c.l.b16 %v1100
    %v1615 = vunpack.c.l.b16 %v1101
    %v1616 = vunpack.c.h.b16 %v1101
    %v1617 = vunpack.c.l.b16 %v1102
    %v1618 = vunpack.c.h.b16 %v1102
    %v1619 = vunpack.c.l.b16 %v1103
    %v1620 = vunpack.c.l.b16 %v1104
    %v1621 = vunpack.c.h.b16 %v1104
    %v1622 = vunpack.c.l.b16 %v1105
    %v1623 = vunpack.c.h.b16 %v1105
    %v1624 = vunpack.c.l.b16 %v1106
    %v1625 = vunpack.c.l.b16 %v1107
    %v1626 = vunpack.c.h.b16 %v1107
    %v1627 = vunpack.c.l.b16 %v1108
    %v1628 = vunpack.c.h.b16 %v1108
    %v1629 = vunpack.c.l.b16 %v1109
    %v1630 = vunpack.c.l.b16 %v1110
    %v1631 = vunpack.c.h.b16 %v1110
    %v1632 = vunpack.c.l.b16 %v1111
    %v1633 = vunpack.c.h.b16 %v1111
    %v1634 = vunpack.c.l.b16 %v1112
    %v1635 = vunpack.c.l.b16 %v1113
    %v1636 = vunpack.c.h.b16 %v1113
    %v1637 = vunpack.c.l.b16 %v1114
    %v1638 = vunpack.c.h.b16 %v1114
    %v1639 = vunpack.c.l.b16 %v1115
    %v1640 = vunpack.c.l.b16 %v1116
    %v1641 = vunpack.c.h.b16 %v1116
    %v1642 = vunpack.c.l.b16 %v1117
    %v1643 = vunpack.c.h.b16 %v1117
    %v1644 = vunpack.c.l.b16 %v1118
    %v1645 = vunpack.c.l.b16 %v1119
    %v1646 = vunpack.c.h.b16 %v1119
    %v1647 = vunpack.c.l.b16 %v1120
    %v1648 = vunpack.c.h.b16 %v1120
    %v1649 = vunpack.c.l.b16 %v1121
    %v1650 = vunpack.c.l.b16 %v1122
    %v1651 = vunpack.c.h.b16 %v1122
    %v1652 = vunpack.c.l.b16 %v1123
    %v1653 = vunpack.c.h.b16 %v1123
    %v1654 = vunpack.c.l.b16 %v1124
    %v1655 = vunpack.c.l.b16 %v1125
    %v1656 = vunpack.c.h.b16 %v1125
    %v1657 = vunpack.c.l.b16 %v1126
    %v1658 = vunpack.c.h.b16 %v1126
    %v1659 = vunpack.c.l.b16 %v1127
    %v1660 = vunpack.c.l.b16 %v1128
    %v1661 = vunpack.c.h.b16 %v1128
    %v1662 = vunpack.c.l.b16 %v1129
    %v1663 = vunpack.c.h.b16 %v1129
    %v1664 = vunpack.c.l.b16 %v1130
    %v1665 = vunpack.c.l.b16 %v1131
    %v1666 = vunpack.c.h.b16 %v1131
    %v1667 = vunpack.c.l.b16 %v1132
    %v1668 = vunpack.c.h.b16 %v1132
    %v1669 = vunpack.c.l.b16 %v1133
    %v1670 = vunpack.c.l.b16 %v1134
    %v1671 = vunpack.c.h.b16 %v1134
    %v1672 = vunpack.c.l.b16 %v1135
    %v1673 = vunpack.c.h.b16 %v1135
    %v1674 = vunpack.c.l.b16 %v1136
    %v1675 = vunpack.c.l.b16 %v1137
    %v1676 = vunpack.c.h.b16 %v1137
    %v1677 = vunpack.c.l.b16 %v1138
    %v1678 = vunpack.c.h.b16 %v1138
    %v1679 = vunpack.c.l.b16 %v1139
    %v1680 = vunpack.c.l.b16 %v1140
    %v1681 = vunpack.c.h.b16 %v1140
    %v1682 = vunpack.c.l.b16 %v1141
    %v1683 = vunpack.c.h.b16 %v1141
    %v1684 = vunpack.c.l.b16 %v1142
    %v1685 = vunpack.c.l.b16 %v1143
    %v1686 = vunpack.c.h.b16 %v1143
    %v1687 = vunpack.c.l.b16 %v1144
    %v1688 = vunpack.c.h.b16 %v1144
    %v1689 = vunpack.c.l.b16 %v1145
    %v1690 = vunpack.c.l.b16 %v1146
    %v1691 = vunpack.c.h.b16 %v1146
    %v1692 = vunpack.c.l.b16 %v1147
    %v1693 = vunpack.c.h.b16 %v1147
    %v1694 = vunpack.c.l.b16 %v1148
    %v1695 = vunpack.c.l.b16 %v1149
    %v1696 = vunpack.c.h.b16 %v1149
    %v1697 = vunpack.c.l.b16 %v1150
    %v1698 = vunpack.c.h.b16 %v1150
    %v1699 = vunpack.c.l.b16 %v1151
    %v1700 = vunpack.c.l.b16 %v1152
    %v1701 = vunpack.c.h.b16 %v1152
    %v1702 = vunpack.c.l.b16 %v1153
    %v1703 = vunpack.c.h.b16 %v1153
    %v1704 = vunpack.c.l.b16 %v1154
    %v1705 = vunpack.c.l.b16 %v1155
    %v1706 = vunpack.c.h.b16 %v1155
    %v1707 = vunpack.c.l.b16 %v1156
    %v1708 = vunpack.c.h.b16 %v1156
    %v1709 = vunpack.c.l.b16 %v1157
    %v1710 = vunpack.c.l.b16 %v1158
    %v1711 = vunpack.c.h.b16 %v1158
    %v1712 = vunpack.c.l.b16 %v1159
    %v1713 = vunpack.c.h.b16 %v1159
    %v1714 = vunpack.c.l.b16 %v1160
    %v1715 = vunpack.c.l.b16 %v1161
    %v1716 = vunpack.c.h.b16 %v1161
    %v1717 = vunpack.c.l.b16 %v1162
    %v1718 = vunpack.c.h.b16 %v1162
    %v1719 = vunpack.c.l.b16 %v1163
    %v1720 = vunpack.c.l.b16 %v1164
    %v1721 = vunpack.c.h.b16 %v1164
    %v1722 = vunpack.c.l.b16 %v1165
    %v1723 = vunpack.c.h.b16 %v1165
    %v1724 = vunpack.c.l.b16 %v1166
    %v1725 = vunpack.c.l.b16 %v1167
    %v1726 = vunpack.c.h.b16 %v1167
    %v1727 = vunpack.c.l.b16 %v1168
    %v1728 = vunpack.c.h.b16 %v1168
    %v1729 = vunpack.c.l.b16 %v1169
    %v1730 = vunpack.c.l.b16 %v1170
    %v1731 = vunpack.c.h.b16 %v1170
    %v1732 = vunpack.c.l.b16 %v1171
    %v1733 = vunpack.c.h.b16 %v1171
    %v1734 = vunpack.c.l.b16 %v1172
    %v1735 = vunpack.c.l.b16 %v1173
    %v1736 = vunpack.c.h.b16 %v1173
    %v1737 = vunpack.c.l.b16 %v1174
    %v1738 = vunpack.c.h.b16 %v1174
    %v1739 = vunpack.c.l.b16 %v1175
    %v1740 = vunpack.c.l.b16 %v1176
    %v1741 = vunpack.c.h.b16 %v1176
    %v1742 = vunpack.c.l.b16 %v1177
    %v1743 = vunpack.c.h.b16 %v1177
    %v1744 = vunpack.c.l.b16 %v1178
    %v1745 = vunpack.c.l.b16 %v1179
    %v1746 = vunpack.c.h.b16 %v1179
    %v1747 = vunpack.c.l.b16 %v1180
    %v1748 = vunpack.c.h.b16 %v1180
    %v1749 = vunpack.c.l.b16 %v1181
    %v1750 = vunpack.c.l.b16 %v1182
    %v1751 = vunpack.c.h.b16 %v1182
    %v1752 = vunpack.c.l.b16 %v1183
    %v1753 = vunpack.c.h.b16 %v1183
    %v1754 = vunpack.c.l.b16 %v1184
    %v1755 = vunpack.c.l.b16 %v1185
    %v1756 = vunpack.c.h.b16 %v1185
    %v1757 = vunpack.c.l.b16 %v1186
    %v1758 = vunpack.c.h.b16 %v1186
    %v1759 = vunpack.c.l.b16 %v1187
    %v1760 = vunpack.c.l.b16 %v1188
    %v1761 = vunpack.c.h.b16 %v1188
    %v1762 = vunpack.c.l.b16 %v1189
    %v1763 = vunpack.c.h.b16 %v1189
    %v1764 = vunpack.c.l.b16 %v1190
    %v1765 = vunpack.c.l.b16 %v1191
    %v1766 = vunpack.c.h.b16 %v1191
    %v1767 = vunpack.c.l.b16 %v1192
    %v1768 = vunpack.c.h.b16 %v1192
    %v1769 = vunpack.c.l.b16 %v1193
    %v1770 = vunpack.c.l.b16 %v1194
    %v1771 = vunpack.c.h.b16 %v1194
    %v1772 = vunpack.c.l.b16 %v1195
    %v1773 = vunpack.c.h.b16 %v1195
    %v1774 = vunpack.c.l.b16 %v1196
    %v1775 = vunpack.c.l.b16 %v1197
    %v1776 = vunpack.c.h.b16 %v1197
    %v1777 = vunpack.c.l.b16 %v1198
    %v1778 = vunpack.c.h.b16 %v1198
    %v1779 = vunpack.c.l.b16 %v1199
    %v1780 = vunpack.c.l.b16 %v1200
    %v1781 = vunpack.c.h.b16 %v1200
    %v1782 = vunpack.c.l.b16 %v1201
    %v1783 = vunpack.c.h.b16 %v1201
    %v1784 = vunpack.c.l.b16 %v1202
    %v1785 = vunpack.c.l.b16 %v1203
    %v1786 = vunpack.c.h.b16 %v1203
    %v1787 = vunpack.c.l.b16 %v1204
    %v1788 = vunpack.c.h.b16 %v1204
    %v1789 = vunpack.c.l.b16 %v1205
    %v1790 = vunpack.c.l.b16 %v1206
    %v1791 = vunpack.c.h.b16 %v1206
    %v1792 = vunpack.c.l.b16 %v1207
    %v1793 = vunpack.c.h.b16 %v1207
    %v1794 = vunpack.c.l.b16 %v1208
    %v1795 = vunpack.c.l.b16 %v1209
    %v1796 = vunpack.c.h.b16 %v1209
    %v1797 = vunpack.c.l.b16 %v1210
    %v1798 = vunpack.c.h.b16 %v1210
    %v1799 = vunpack.c.l.b16 %v1211
    %v1800 = vunpack.c.l.b16 %v1212
    %v1801 = vunpack.c.h.b16 %v1212
    %v1802 = vunpack.c.l.b16 %v1213
    %v1803 = vunpack.c.h.b16 %v1213
    %v1804 = vunpack.c.l.b16 %v1214
    %v1805 = vunpack.c.l.b16 %v1215
    %v1806 = vunpack.c.h.b16 %v1215
    %v1807 = vunpack.c.l.b16 %v1216
    %v1808 = vunpack.c.h.b16 %v1216
    %v1809 = vunpack.c.l.b16 %v1217
    %v1810 = vunpack.c.l.b16 %v1218
    %v1811 = vunpack.c.h.b16 %v1218
    %v1812 = vunpack.c.l.b16 %v1219
    %v1813 = vunpack.c.h.b16 %v1219
    %v1814 = vunpack.c.l.b16 %v1220
    %v1815 = vunpack.c.l.b16 %v1221
    %v1816 = vunpack.c.h.b16 %v1221
    %v1817 = vunpack.c.l.b16 %v1222
    %v1818 = vunpack.c.h.b16 %v1222
    %v1819 = vunpack.c.l.b16 %v1223
    %v1820 = vunpack.c.l.b16 %v1224
    %v1821 = vunpack.c.h.b16 %v1224
    %v1822 = vunpack.c.l.b16 %v1225
    %v1823 = vunpack.c.h.b16 %v1225
    %v1824 = vunpack.c.l.b16 %v1226
    %v1825 = vunpack.c.l.b16 %v1227
    %v1826 = vunpack.c.h.b16 %v1227
    %v1827 = vunpack.c.l.b16 %v1228
    %v1828 = vunpack.c.h.b16 %v1228
    %v1829 = vunpack.c.l.b16 %v1229
    %v1830 = vunpack.c.l.b16 %v1230
    %v1831 = vunpack.c.h.b16 %v1230
    %v1832 = vunpack.c.l.b16 %v1231
    %v1833 = vunpack.c.h.b16 %v1231
    %v1834 = vunpack.c.l.b16 %v1232
    %v1835 = vunpack.c.l.b16 %v1233
    %v1836 = vunpack.c.h.b16 %v1233
    %v1837 = vunpack.c.l.b16 %v1234
    %v1838 = vunpack.c.h.b16 %v1234
    %v1839 = vunpack.c.l.b16 %v1235
    %v1840 = vunpack.c.l.b16 %v1236
    %v1841 = vunpack.c.h.b16 %v1236
    %v1842 = vunpack.c.l.b16 %v1237
    %v1843 = vunpack.c.h.b16 %v1237
    %v1844 = vunpack.c.l.b16 %v1238
    %v1845 = vunpack.c.l.b16 %v1239
    %v1846 = vunpack.c.h.b16 %v1239
    %v1847 = vunpack.c.l.b16 %v1240
    %v1848 = vunpack.c.h.b16 %v1240
    %v1849 = vunpack.c.l.b16 %v1241
    %v1850 = vunpack.c.l.b16 %v1242
    %v1851 = vunpack.c.h.b16 %v1242
    %v1852 = vunpack.c.l.b16 %v1243
    %v1853 = vunpack.c.h.b16 %v1243
    %v1854 = vunpack.c.l.b16 %v1244
    %v1855 = vunpack.c.l.b16 %v1245
    %v1856 = vunpack.c.h.b16 %v1245
    %v1857 = vunpack.c.l.b16 %v1246
    %v1858 = vunpack.c.h.b16 %v1246
    %v1859 = vunpack.c.l.b16 %v1247
    %v1860 = vunpack.c.l.b16 %v1248
    %v1861 = vunpack.c.h.b16 %v1248
    %v1862 = vunpack.c.l.b16 %v1249
    %v1863 = vunpack.c.h.b16 %v1249
    %v1864 = vunpack.c.l.b16 %v1250
    %v1865 = vunpack.c.l.b16 %v1251
    %v1866 = vunpack.c.h.b16 %v1251
    %v1867 = vunpack.c.l.b16 %v1252
    %v1868 = vunpack.c.h.b16 %v1252
    %v1869 = vunpack.c.l.b16 %v1253
    %v1870 = vunpack.c.l.b16 %v1254
    %v1871 = vunpack.c.h.b16 %v1254
    %v1872 = vunpack.c.l.b16 %v1255
    %v1873 = vunpack.c.h.b16 %v1255
    %v1874 = vunpack.c.l.b16 %v1256
    %v1875 = vunpack.c.l.b16 %v1257
    %v1876 = vunpack.c.h.b16 %v1257
    %v1877 = vunpack.c.l.b16 %v1258
    %v1878 = vunpack.c.h.b16 %v1258
    %v1879 = vunpack.c.l.b16 %v1259
    %v1880 = vunpack.c.l.b16 %v1260
    %v1881 = vunpack.c.h.b16 %v1260
    %v1882 = vunpack.c.l.b16 %v1261
    %v1883 = vunpack.c.h.b16 %v1261
    %v1884 = vunpack.c.l.b16 %v1262
    %v1885 = vunpack.c.l.b16 %v1263
    %v1886 = vunpack.c.h.b16 %v1263
    %v1887 = vunpack.c.l.b16 %v1264
    %v1888 = vunpack.c.h.b16 %v1264
    %v1889 = vunpack.c.l.b16 %v1265
    %v1890 = vunpack.c.l.b16 %v1266
    %v1891 = vunpack.c.h.b16 %v1266
    %v1892 = vunpack.c.l.b16 %v1267
    %v1893 = vunpack.c.h.b16 %v1267
    %v1894 = vunpack.c.l.b16 %v1268
    %v1895 = vunpack.c.l.b16 %v1269
    %v1896 = vunpack.c.h.b16 %v1269
    %v1897 = vunpack.c.l.b16 %v1270
    %v1898 = vunpack.c.h.b16 %v1270
    %v1899 = vunpack.c.l.b16 %v1271
    %v1900 = vunpack.c.l.b16 %v1272
    %v1901 = vunpack.c.h.b16 %v1272
    %v1902 = vunpack.c.l.b16 %v1273
    %v1903 = vunpack.c.h.b16 %v1273
    %v1904 = vunpack.c.l.b16 %v1274
    %v1905 = vunpack.c.l.b16 %v1275
    %v1906 = vunpack.c.h.b16 %v1275
    %v1907 = vunpack.c.l.b16 %v1276
    %v1908 = vunpack.c.h.b16 %v1276
    %v1909 = vunpack.c.l.b16 %v1277
    %v1910 = vunpack.c.l.b16 %v1278
    %v1911 = vunpack.c.h.b16 %v1278
    %v1912 = vunpack.c.l.b16 %v1279
    %v1913 = vunpack.c.h.b16 %v1279
    %v1914 = vunpack.c.l.b16 %v1280
    %v1915 = vunpack.c.l.b16 %v1281
    %v1916 = vunpack.c.h.b16 %v1281
    %v1917 = vunpack.c.l.b16 %v1282
    %v1918 = vunpack.c.h.b16 %v1282
    %v1919 = vunpack.c.l.b16 %v1283
    %v1920 = vunpack.c.l.b16 %v1284
    %v1921 = vunpack.c.h.b16 %v1284
    %v1922 = vunpack.c.l.b16 %v1285
    %v1923 = vunpack.c.h.b16 %v1285
    %v1924 = vunpack.c.l.b16 %v1286
    %v1925 = vunpack.c.l.b16 %v1287
    %v1926 = vunpack.c.h.b16 %v1287
    %v1927 = vunpack.c.l.b16 %v1288
    %v1928 = vunpack.c.h.b16 %v1288
    %v1929 = vunpack.c.l.b16 %v1289
    %v1930 = vunpack.c.l.b16 %v1290
    %v1931 = vunpack.c.h.b16 %v1290
    %v1932 = vunpack.c.l.b16 %v1291
    %v1933 = vunpack.c.h.b16 %v1291
    %v1934 = vunpack.c.l.b16 %v1292
    %v1935 = vunpack.c.l.b16 %v1293
    %v1936 = vunpack.c.h.b16 %v1293
    %v1937 = vunpack.c.l.b16 %v1294
    %v1938 = vunpack.c.h.b16 %v1294
    %v1939 = vunpack.c.l.b16 %v1295
    %v1940 = vunpack.c.l.b16 %v1296
    %v1941 = vunpack.c.h.b16 %v1296
    %v1942 = vunpack.c.l.b16 %v1297
    %v1943 = vunpack.c.h.b16 %v1297
    %v1944 = vunpack.c.l.b16 %v1298
    %v1945 = vunpack.c.l.b16 %v1299
    %v1946 = vunpack.c.h.b16 %v1299
    %v1947 = vunpack.c.l.b16 %v1300
    %v1948 = vunpack.c.h.b16 %v1300
    %v1949 = vunpack.c.l.b16 %v1301
    %v1950 = vunpack.c.l.b16 %v1302
    %v1951 = vunpack.c.h.b16 %v1302
    %v1952 = vunpack.c.l.b16 %v1303
    %v1953 = vunpack.c.h.b16 %v1303
    %v1954 = vunpack.c.l.b16 %v1304
    %v1955 = vunpack.c.l.b16 %v1305
    %v1956 = vunpack.c.h.b16 %v1305
    %v1957 = vunpack.c.l.b16 %v1306
    %v1958 = vunpack.c.h.b16 %v1306
    %v1959 = vunpack.c.l.b16 %v1307
    %v1960 = vunpack.c.l.b16 %v1308
    %v1961 = vunpack.c.h.b16 %v1308
    %v1962 = vunpack.c.l.b16 %v1309
    %v1963 = vunpack.c.h.b16 %v1309
    %v1964 = vunpack.c.l.b16 %v1310
    %v1965 = vunpack.c.l.b16 %v1311
    %v1966 = vunpack.c.h.b16 %v1311
    %v1967 = vunpack.c.l.b16 %v1312
    %v1968 = vunpack.c.h.b16 %v1312
    %v1969 = vunpack.c.l.b16 %v1313
    %v1970 = vunpack.c.l.b16 %v1314
    %v1971 = vunpack.c.h.b16 %v1314
    %v1972 = vunpack.c.l.b16 %v1315
    %v1973 = vunpack.c.h.b16 %v1315
    %v1974 = vunpack.c.l.b16 %v1316
    %v1975 = vunpack.c.l.b16 %v1317
    %v1976 = vunpack.c.h.b16 %v1317
    %v1977 = vunpack.c.l.b16 %v1318
    %v1978 = vunpack.c.h.b16 %v1318
    %v1979 = vunpack.c.l.b16 %v1319
    %v1980 = vpack.c.b16 %v1585, %v1580
    %v1981 = vpack.c.b16 %v1586, %v1581
    %v1982 = vpack.c.b16 %v1587, %v1582
    %v1983 = vpack.c.b16 %v1588, %v1583
    %v1984 = vpack.c.b16 %v1589, %v1584
    %v1985 = vpack.c.b16 %v1595, %v1590
    %v1986 = vpack.c.b16 %v1596, %v1591
    %v1987 = vpack.c.b16 %v1597, %v1592
    %v1988 = vpack.c.b16 %v1598, %v1593
    %v1989 = vpack.c.b16 %v1599, %v1594
    %v1990 = vpack.c.b16 %v1605, %v1600
    %v1991 = vpack.c.b16 %v1606, %v1601
    %v1992 = vpack.c.b16 %v1607, %v1602
    %v1993 = vpack.c.b16 %v1608, %v1603
    %v1994 = vpack.c.b16 %v1609, %v1604
    %v1995 = vpack.c.b16 %v1615, %v1610
    %v1996 = vpack.c.b16 %v1616, %v1611
    %v1997 = vpack.c.b16 %v1617, %v1612
    %v1998 = vpack.c.b16 %v1618, %v1613
    %v1999 = vpack.c.b16 %v1619, %v1614
    %v2000 = vpack.c.b16 %v1625, %v1620
    %v2001 = vpack.c.b16 %v1626, %v1621
    %v2002 = vpack.c.b16 %v1627, %v1622
    %v2003 = vpack.c.b16 %v1628, %v1623
    %v2004 = vpack.c.b16 %v1629, %v1624
    %v2005 = vpack.c.b16 %v1635, %v1630
    %v2006 = vpack.c.b16 %v1636, %v1631
    %v2007 = vpack.c.b16 %v1637, %v1632
    %v2008 = vpack.c.b16 %v1638, %v1633
    %v2009 = vpack.c.b16 %v1639, %v1634
    %v2010 = vpack.c.b16 %v1645, %v1640
    %v2011 = vpack.c.b16 %v1646, %v1641
    %v2012 = vpack.c.b16 %v1647, %v1642
    %v2013 = vpack.c.b16 %v1648, %v1643
    %v2014 = vpack.c.b16 %v1649, %v1644
    %v2015 = vpack.c.b16 %v1655, %v1650
    %v2016 = vpack.c.b16 %v1656, %v1651
    %v2017 = vpack.c.b16 %v1657, %v1652
    %v2018 = vpack.c.b16 %v1658, %v1653
    %v2019 = vpack.c.b16 %v1659, %v1654
    %v2020 = vpack.c.b16 %v1665, %v1660
    %v2021 = vpack.c.b16 %v1666, %v1661
    %v2022 = vpack.c.b16 %v1667, %v1662
    %v2023 = vpack.c.b16 %v1668, %v1663
    %v2024 = vpack.c.b16 %v1669, %v1664
    %v2025 = vpack.c.b16 %v1675, %v1670
    %v2026 = vpack.c.b16 %v1676, %v1671
    %v2027 = vpack.c.b16 %v1677, %v1672
    %v2028 = vpack.c.b16 %v1678, %v1673
    %v2029 = vpack.c.b16 %v1679, %v1674
    %v2030 = vpack.c.b16 %v1685, %v1680
    %v2031 = vpack.c.b16 %v1686, %v1681
    %v2032 = vpack.c.b16 %v1687, %v1682
    %v2033 = vpack.c.b16 %v1688, %v1683
    %v2034 = vpack.c.b16 %v1689, %v1684
    %v2035 = vpack.c.b16 %v1695, %v1690
    %v2036 = vpack.c.b16 %v1696, %v1691
    %v2037 = vpack.c.b16 %v1697, %v1692
    %v2038 = vpack.c.b16 %v1698, %v1693
    %v2039 = vpack.c.b16 %v1699, %v1694
    %v2040 = vpack.c.b16 %v1705, %v1700
    %v2041 = vpack.c.b16 %v1706, %v1701
    %v2042 = vpack.c.b16 %v1707, %v1702
    %v2043 = vpack.c.b16 %v1708, %v1703
    %v2044 = vpack.c.b16 %v1709, %v1704
    %v2045 = vpack.c.b16 %v1715, %v1710
    %v2046 = vpack.c.b16 %v1716, %v1711
    %v2047 = vpack.c.b16 %v1717, %v1712
    %v2048 = vpack.c.b16 %v1718, %v1713
    %v2049 = vpack.c.b16 %v1719, %v1714
    %v2050 = vpack.c.b16 %v1725, %v1720
    %v2051 = vpack.c.b16 %v1726, %v1721
    %v2052 = vpack.c.b16 %v1727, %v1722
    %v2053 = vpack.c.b16 %v1728, %v1723
    %v2054 = vpack.c.b16 %v1729, %v1724
    %v2055 = vpack.c.b16 %v1735, %v1730
    %v2056 = vpack.c.b16 %v1736, %v1731
    %v2057 = vpack.c.b16 %v1737, %v1732
    %v2058 = vpack.c.b16 %v1738, %v1733
    %v2059 = vpack.c.b16 %v1739, %v1734
    %v2060 = vpack.c.b16 %v1745, %v1740
    %v2061 = vpack.c.b16 %v1746, %v1741
    %v2062 = vpack.c.b16 %v1747, %v1742
    %v2063 = vpack.c.b16 %v1748, %v1743
    %v2064 = vpack.c.b16 %v1749, %v1744
    %v2065 = vpack.c.b16 %v1755, %v1750
    %v2066 = vpack.c.b16 %v1756, %v1751
    %v2067 = vpack.c.b16 %v1757, %v1752
    %v2068 = vpack.c.b16 %v1758, %v1753
    %v2069 = vpack.c.b16 %v1759, %v1754
    %v2070 = vpack.c.b16 %v1765, %v1760
    %v2071 = vpack.c.b16 %v1766, %v1761
    %v2072 = vpack.c.b16 %v1767, %v1762
    %v2073 = vpack.c.b16 %v1768, %v1763
    %v2074 = vpack.c.b16 %v1769, %v1764
    %v2075 = vpack.c.b16 %v1775, %v1770
    %v2076 = vpack.c.b16 %v1776, %v1771
    %v2077 = vpack.c.b16 %v1777, %v1772
    %v2078 = vpack.c.b16 %v1778, %v1773
    %v2079 = vpack.c.b16 %v1779, %v1774
    %v2080 = vpack.c.b16 %v1785, %v1780
    %v2081 = vpack.c.b16 %v1786, %v1781
    %v2082 = vpack.c.b16 %v1787, %v1782
    %v2083 = vpack.c.b16 %v1788, %v1783
    %v2084 = vpack.c.b16 %v1789, %v1784
    %v2085 = vpack.c.b16 %v1795, %v1790
    %v2086 = vpack.c.b16 %v1796, %v1791
    %v2087 = vpack.c.b16 %v1797, %v1792
    %v2088 = vpack.c.b16 %v1798, %v1793
    %v2089 = vpack.c.b16 %v1799, %v1794
    %v2090 = vpack.c.b16 %v1805, %v1800
    %v2091 = vpack.c.b16 %v1806, %v1801
    %v2092 = vpack.c.b16 %v1807, %v1802
    %v2093 = vpack.c.b16 %v1808, %v1803
    %v2094 = vpack.c.b16 %v1809, %v1804
    %v2095 = vpack.c.b16 %v1815, %v1810
    %v2096 = vpack.c.b16 %v1816, %v1811
    %v2097 = vpack.c.b16 %v1817, %v1812
    %v2098 = vpack.c.b16 %v1818, %v1813
    %v2099 = vpack.c.b16 %v1819, %v1814
    %v2100 = vpack.c.b16 %v1825, %v1820
    %v2101 = vpack.c.b16 %v1826, %v1821
    %v2102 = vpack.c.b16 %v1827, %v1822
    %v2103 = vpack.c.b16 %v1828, %v1823
    %v2104 = vpack.c.b16 %v1829, %v1824
    %v2105 = vpack.c.b16 %v1835, %v1830
    %v2106 = vpack.c.b16 %v1836, %v1831
    %v2107 = vpack.c.b16 %v1837, %v1832
    %v2108 = vpack.c.b16 %v1838, %v1833
    %v2109 = vpack.c.b16 %v1839, %v1834
    %v2110 = vpack.c.b16 %v1845, %v1840
    %v2111 = vpack.c.b16 %v1846, %v1841
    %v2112 = vpack.c.b16 %v1847, %v1842
    %v2113 = vpack.c.b16 %v1848, %v1843
    %v2114 = vpack.c.b16 %v1849, %v1844
    %v2115 = vpack.c.b16 %v1855, %v1850
    %v2116 = vpack.c.b16 %v1856, %v1851
    %v2117 = vpack.c.b16 %v1857, %v1852
    %v2118 = vpack.c.b16 %v1858, %v1853
    %v2119 = vpack.c.b16 %v1859, %v1854
    %v2120 = vpack.c.b16 %v1865, %v1860
    %v2121 = vpack.c.b16 %v1866, %v1861
    %v2122 = vpack.c.b16 %v1867, %v1862
    %v2123 = vpack.c.b16 %v1868, %v1863
    %v2124 = vpack.c.b16 %v1869, %v1864
    %v2125 = vpack.c.b16 %v1875, %v1870
    %v2126 = vpack.c.b16 %v1876, %v1871
    %v2127 = vpack.c.b16 %v1877, %v1872
    %v2128 = vpack.c.b16 %v1878, %v1873
    %v2129 = vpack.c.b16 %v1879, %v1874
    %v2130 = vpack.c.b16 %v1885, %v1880
    %v2131 = vpack.c.b16 %v1886, %v1881
    %v2132 = vpack.c.b16 %v1887, %v1882
    %v2133 = vpack.c.b16 %v1888, %v1883
    %v2134 = vpack.c.b16 %v1889, %v1884
    %v2135 = vpack.c.b16 %v1895, %v1890
    %v2136 = vpack.c.b16 %v1896, %v1891
    %v2137 = vpack.c.b16 %v1897, %v1892
    %v2138 = vpack.c.b16 %v1898, %v1893
    %v2139 = vpack.c.b16 %v1899, %v1894
    %v2140 = vpack.c.b16 %v1905, %v1900
    %v2141 = vpack.c.b16 %v1906, %v1901
    %v2142 = vpack.c.b16 %v1907, %v1902
    %v2143 = vpack.c.b16 %v1908, %v1903
    %v2144 = vpack.c.b16 %v1909, %v1904
    %v2145 = vpack.c.b16 %v1915, %v1910
    %v2146 = vpack.c.b16 %v1916, %v1911
    %v2147 = vpack.c.b16 %v1917, %v1912
    %v2148 = vpack.c.b16 %v1918, %v1913
    %v2149 = vpack.c.b16 %v1919, %v1914
    %v2150 = vpack.c.b16 %v1925, %v1920
    %v2151 = vpack.c.b16 %v1926, %v1921
    %v2152 = vpack.c.b16 %v1927, %v1922
    %v2153 = vpack.c.b16 %v1928, %v1923
    %v2154 = vpack.c.b16 %v1929, %v1924
    %v2155 = vpack.c.b16 %v1935, %v1930
    %v2156 = vpack.c.b16 %v1936, %v1931
    %v2157 = vpack.c.b16 %v1937, %v1932
    %v2158 = vpack.c.b16 %v1938, %v1933
    %v2159 = vpack.c.b16 %v1939, %v1934
    %v2160 = vpack.c.b16 %v1945, %v1940
    %v2161 = vpack.c.b16 %v1946, %v1941
    %v2162 = vpack.c.b16 %v1947, %v1942
    %v2163 = vpack.c.b16 %v1948, %v1943
    %v2164 = vpack.c.b16 %v1949, %v1944
    %v2165 = vpack.c.b16 %v1955, %v1950
    %v2166 = vpack.c.b16 %v1956, %v1951
    %v2167 = vpack.c.b16 %v1957, %v1952
    %v2168 = vpack.c.b16 %v1958, %v1953
    %v2169 = vpack.c.b16 %v1959, %v1954
    %v2170 = vpack.c.b16 %v1965, %v1960
    %v2171 = vpack.c.b16 %v1966, %v1961
    %v2172 = vpack.c.b16 %v1967, %v1962
    %v2173 = vpack.c.b16 %v1968, %v1963
    %v2174 = vpack.c.b16 %v1969, %v1964
    %v2175 = vpack.c.b16 %v1975, %v1970
    %v2176 = vpack.c.b16 %v1976, %v1971
    %v2177 = vpack.c.b16 %v1977, %v1972
    %v2178 = vpack.c.b16 %v1978, %v1973
    %v2179 = vpack.c.b16 %v1979, %v1974
    %2380 = vmatprep.subr.bf16.mxu0 %v2016
    %2381 = vmatpush1.bf16.msra.mxu0 %v2015
    %2382 = vmatprep.subr.bf16.mxu0 %v2011
    %2383 = vmatpush1.bf16.msra.mxu0 %v2010
    %2384 = vmatprep.subr.bf16.mxu0 %v2006
    %2385 = vmatpush1.bf16.msra.mxu0 %v2005
    %2386 = vmatprep.subr.bf16.mxu0 %v2001
    %2387 = vmatpush1.bf16.msra.mxu0 %v2000
    %2388 = vmatprep.subr.bf16.mxu0 %v1996
    %2389 = vmatpush1.bf16.msra.mxu0 %v1995
    %2390 = vmatprep.subr.bf16.mxu0 %v1991
    %2391 = vmatpush1.bf16.msra.mxu0 %v1990
    %2392 = vmatprep.subr.bf16.mxu0 %v1986
    %2393 = vmatpush1.bf16.msra.mxu0 %v1985
    %2394 = vmatprep.subr.bf16.mxu0 %v1981
    %2395 = vmatpush1.bf16.msra.mxu0 %v1980
    %2396 = vmatprep.subr.bf16.mxu0 %v2056
    %2397 = vmatpush2.bf16.msra.mxu0 %v2055
    %2398 = vmatprep.subr.bf16.mxu0 %v2051
    %2399 = vmatpush2.bf16.msra.mxu0 %v2050
    %2400 = vmatprep.subr.bf16.mxu0 %v2046
    %2401 = vmatpush2.bf16.msra.mxu0 %v2045
    %2402 = vmatprep.subr.bf16.mxu0 %v2041
    %2403 = vmatpush2.bf16.msra.mxu0 %v2040
    %2404 = vmatprep.subr.bf16.mxu0 %v2036
    %2405 = vmatpush2.bf16.msra.mxu0 %v2035
    %2406 = vmatprep.subr.bf16.mxu0 %v2031
    %2407 = vmatpush2.bf16.msra.mxu0 %v2030
    %2408 = vmatprep.subr.bf16.mxu0 %v2026
    %2409 = vmatpush2.bf16.msra.mxu0 %v2025
    %2410 = vmatprep.subr.bf16.mxu0 %v2021
    %2411 = vmatpush2.bf16.msra.mxu0 %v2020
    %2412 = vmatprep.mubr.bf16.mxu0 %v1072
    %2413 = vmatmul.mubr.bf16.gmra.mxu0 %v1071
    %v2414 = vpop.f32.mrf.mxu0
    %v2415 = vadd.f32 %v1323, %v2414
    %v2416 = vpop.f32.mrf.mxu0
    %v2417 = vadd.f32 %v1327, %v2416
    %v2418 = vpop.f32.mrf.mxu0
    %v2419 = vpop.f32.mrf.mxu0
    %2420 = vdwg.mxu0
    %2421 = vmatprep.subr.bf16.mxu0 %v2096
    %2422 = vmatpush1.bf16.msra.mxu0 %v2095
    %2423 = vmatprep.subr.bf16.mxu0 %v2091
    %2424 = vmatpush1.bf16.msra.mxu0 %v2090
    %2425 = vmatprep.subr.bf16.mxu0 %v2086
    %2426 = vmatpush1.bf16.msra.mxu0 %v2085
    %2427 = vmatprep.subr.bf16.mxu0 %v2081
    %2428 = vmatpush1.bf16.msra.mxu0 %v2080
    %2429 = vmatprep.subr.bf16.mxu0 %v2076
    %2430 = vmatpush1.bf16.msra.mxu0 %v2075
    %2431 = vmatprep.subr.bf16.mxu0 %v2071
    %2432 = vmatpush1.bf16.msra.mxu0 %v2070
    %2433 = vmatprep.subr.bf16.mxu0 %v2066
    %2434 = vmatpush1.bf16.msra.mxu0 %v2065
    %2435 = vmatprep.subr.bf16.mxu0 %v2061
    %2436 = vmatpush1.bf16.msra.mxu0 %v2060
    %2437 = vmatprep.subr.bf16.mxu0 %v2136
    %2438 = vmatpush2.bf16.msra.mxu0 %v2135
    %2439 = vmatprep.subr.bf16.mxu0 %v2131
    %2440 = vmatpush2.bf16.msra.mxu0 %v2130
    %2441 = vmatprep.subr.bf16.mxu0 %v2126
    %2442 = vmatpush2.bf16.msra.mxu0 %v2125
    %2443 = vmatprep.subr.bf16.mxu0 %v2121
    %2444 = vmatpush2.bf16.msra.mxu0 %v2120
    %2445 = vmatprep.subr.bf16.mxu0 %v2116
    %2446 = vmatpush2.bf16.msra.mxu0 %v2115
    %2447 = vmatprep.subr.bf16.mxu0 %v2111
    %2448 = vmatpush2.bf16.msra.mxu0 %v2110
    %2449 = vmatprep.subr.bf16.mxu0 %v2106
    %2450 = vmatpush2.bf16.msra.mxu0 %v2105
    %2451 = vmatprep.subr.bf16.mxu0 %v2101
    %2452 = vmatpush2.bf16.msra.mxu0 %v2100
    %2453 = vmatprep.mubr.bf16.mxu0 %v1074
    %2454 = vmatmul.mubr.bf16.gmra.mxu0 %v1073
    %v2455 = vpop.f32.mrf.mxu0
    %v2456 = vadd.f32 %v2415, %v2455
    %v2457 = vpop.f32.mrf.mxu0
    %v2458 = vadd.f32 %v2417, %v2457
    %v2459 = vpop.f32.mrf.mxu0
    %v2460 = vpop.f32.mrf.mxu0
    %2461 = vdwg.mxu0
    %2462 = vmatprep.subr.bf16.mxu0 %v2176
    %2463 = vmatpush1.bf16.msra.mxu0 %v2175
    %2464 = vmatprep.subr.bf16.mxu0 %v2171
    %2465 = vmatpush1.bf16.msra.mxu0 %v2170
    %2466 = vmatprep.subr.bf16.mxu0 %v2166
    %2467 = vmatpush1.bf16.msra.mxu0 %v2165
    %2468 = vmatprep.subr.bf16.mxu0 %v2161
    %2469 = vmatpush1.bf16.msra.mxu0 %v2160
    %2470 = vmatprep.subr.bf16.mxu0 %v2156
    %2471 = vmatpush1.bf16.msra.mxu0 %v2155
    %2472 = vmatprep.subr.bf16.mxu0 %v2151
    %2473 = vmatpush1.bf16.msra.mxu0 %v2150
    %2474 = vmatprep.subr.bf16.mxu0 %v2146
    %2475 = vmatpush1.bf16.msra.mxu0 %v2145
    %2476 = vmatprep.subr.bf16.mxu0 %v2141
    %2477 = vmatpush1.bf16.msra.mxu0 %v2140
    %2478 = vmatprep.subr.bf16.mxu0 0
    %2479 = vmatpush2.bf16.msra.mxu0 0
    %2480 = vmatprep.subr.bf16.mxu0 0
    %2481 = vmatpush2.bf16.msra.mxu0 0
    %2482 = vmatprep.subr.bf16.mxu0 0
    %2483 = vmatpush2.bf16.msra.mxu0 0
    %2484 = vmatprep.subr.bf16.mxu0 0
    %2485 = vmatpush2.bf16.msra.mxu0 0
    %2486 = vmatprep.subr.bf16.mxu0 0
    %2487 = vmatpush2.bf16.msra.mxu0 0
    %2488 = vmatprep.subr.bf16.mxu0 0
    %2489 = vmatpush2.bf16.msra.mxu0 0
    %2490 = vmatprep.subr.bf16.mxu0 0
    %2491 = vmatpush2.bf16.msra.mxu0 0
    %2492 = vmatprep.subr.bf16.mxu0 0
    %2493 = vmatpush2.bf16.msra.mxu0 0
    %2494 = vmatprep.mubr.bf16.mxu0 0
    %2495 = vmatmul.mubr.bf16.gmra.mxu0 %v1075
    %v2496 = vpop.f32.mrf.mxu0
    %v2497 = vadd.f32 %v2456, %v2496
    %v2498 = vpop.f32.mrf.mxu0
    %v2499 = vadd.f32 %v2458, %v2498
    %v2500 = vpop.f32.mrf.mxu0
    %v2501 = vpop.f32.mrf.mxu0
    %2502 = vdwg.mxu0
    %2503 = vmatprep.subr.bf16.mxu0 %v2018
    %2504 = vmatpush1.bf16.msra.mxu0 %v2017
    %2505 = vmatprep.subr.bf16.mxu0 %v2013
    %2506 = vmatpush1.bf16.msra.mxu0 %v2012
    %2507 = vmatprep.subr.bf16.mxu0 %v2008
    %2508 = vmatpush1.bf16.msra.mxu0 %v2007
    %2509 = vmatprep.subr.bf16.mxu0 %v2003
    %2510 = vmatpush1.bf16.msra.mxu0 %v2002
    %2511 = vmatprep.subr.bf16.mxu0 %v1998
    %2512 = vmatpush1.bf16.msra.mxu0 %v1997
    %2513 = vmatprep.subr.bf16.mxu0 %v1993
    %2514 = vmatpush1.bf16.msra.mxu0 %v1992
    %2515 = vmatprep.subr.bf16.mxu0 %v1988
    %2516 = vmatpush1.bf16.msra.mxu0 %v1987
    %2517 = vmatprep.subr.bf16.mxu0 %v1983
    %2518 = vmatpush1.bf16.msra.mxu0 %v1982
    %2519 = vmatprep.subr.bf16.mxu0 %v2058
    %2520 = vmatpush2.bf16.msra.mxu0 %v2057
    %2521 = vmatprep.subr.bf16.mxu0 %v2053
    %2522 = vmatpush2.bf16.msra.mxu0 %v2052
    %2523 = vmatprep.subr.bf16.mxu0 %v2048
    %2524 = vmatpush2.bf16.msra.mxu0 %v2047
    %2525 = vmatprep.subr.bf16.mxu0 %v2043
    %2526 = vmatpush2.bf16.msra.mxu0 %v2042
    %2527 = vmatprep.subr.bf16.mxu0 %v2038
    %2528 = vmatpush2.bf16.msra.mxu0 %v2037
    %2529 = vmatprep.subr.bf16.mxu0 %v2033
    %2530 = vmatpush2.bf16.msra.mxu0 %v2032
    %2531 = vmatprep.subr.bf16.mxu0 %v2028
    %2532 = vmatpush2.bf16.msra.mxu0 %v2027
    %2533 = vmatprep.subr.bf16.mxu0 %v2023
    %2534 = vmatpush2.bf16.msra.mxu0 %v2022
    %2535 = vmatprep.mubr.bf16.mxu0 %v1072
    %2536 = vmatmul.mubr.bf16.gmra.mxu0 %v1071
    %v2537 = vpop.f32.mrf.mxu0
    %v2538 = vadd.f32 %v1331, %v2537
    %v2539 = vpop.f32.mrf.mxu0
    %v2540 = vadd.f32 %v1335, %v2539
    %v2541 = vpop.f32.mrf.mxu0
    %v2542 = vpop.f32.mrf.mxu0
    %2543 = vdwg.mxu0
    %2544 = vmatprep.subr.bf16.mxu0 %v2098
    %2545 = vmatpush1.bf16.msra.mxu0 %v2097
    %2546 = vmatprep.subr.bf16.mxu0 %v2093
    %2547 = vmatpush1.bf16.msra.mxu0 %v2092
    %2548 = vmatprep.subr.bf16.mxu0 %v2088
    %2549 = vmatpush1.bf16.msra.mxu0 %v2087
    %2550 = vmatprep.subr.bf16.mxu0 %v2083
    %2551 = vmatpush1.bf16.msra.mxu0 %v2082
    %2552 = vmatprep.subr.bf16.mxu0 %v2078
    %2553 = vmatpush1.bf16.msra.mxu0 %v2077
    %2554 = vmatprep.subr.bf16.mxu0 %v2073
    %2555 = vmatpush1.bf16.msra.mxu0 %v2072
    %2556 = vmatprep.subr.bf16.mxu0 %v2068
    %2557 = vmatpush1.bf16.msra.mxu0 %v2067
    %2558 = vmatprep.subr.bf16.mxu0 %v2063
    %2559 = vmatpush1.bf16.msra.mxu0 %v2062
    %2560 = vmatprep.subr.bf16.mxu0 %v2138
    %2561 = vmatpush2.bf16.msra.mxu0 %v2137
    %2562 = vmatprep.subr.bf16.mxu0 %v2133
    %2563 = vmatpush2.bf16.msra.mxu0 %v2132
    %2564 = vmatprep.subr.bf16.mxu0 %v2128
    %2565 = vmatpush2.bf16.msra.mxu0 %v2127
    %2566 = vmatprep.subr.bf16.mxu0 %v2123
    %2567 = vmatpush2.bf16.msra.mxu0 %v2122
    %2568 = vmatprep.subr.bf16.mxu0 %v2118
    %2569 = vmatpush2.bf16.msra.mxu0 %v2117
    %2570 = vmatprep.subr.bf16.mxu0 %v2113
    %2571 = vmatpush2.bf16.msra.mxu0 %v2112
    %2572 = vmatprep.subr.bf16.mxu0 %v2108
    %2573 = vmatpush2.bf16.msra.mxu0 %v2107
    %2574 = vmatprep.subr.bf16.mxu0 %v2103
    %2575 = vmatpush2.bf16.msra.mxu0 %v2102
    %2576 = vmatprep.mubr.bf16.mxu0 %v1074
    %2577 = vmatmul.mubr.bf16.gmra.mxu0 %v1073
    %v2578 = vpop.f32.mrf.mxu0
    %v2579 = vadd.f32 %v2538, %v2578
    %v2580 = vpop.f32.mrf.mxu0
    %v2581 = vadd.f32 %v2540, %v2580
    %v2582 = vpop.f32.mrf.mxu0
    %v2583 = vpop.f32.mrf.mxu0
    %2584 = vdwg.mxu0
    %2585 = vmatprep.subr.bf16.mxu0 %v2178
    %2586 = vmatpush1.bf16.msra.mxu0 %v2177
    %2587 = vmatprep.subr.bf16.mxu0 %v2173
    %2588 = vmatpush1.bf16.msra.mxu0 %v2172
    %2589 = vmatprep.subr.bf16.mxu0 %v2168
    %2590 = vmatpush1.bf16.msra.mxu0 %v2167
    %2591 = vmatprep.subr.bf16.mxu0 %v2163
    %2592 = vmatpush1.bf16.msra.mxu0 %v2162
    %2593 = vmatprep.subr.bf16.mxu0 %v2158
    %2594 = vmatpush1.bf16.msra.mxu0 %v2157
    %2595 = vmatprep.subr.bf16.mxu0 %v2153
    %2596 = vmatpush1.bf16.msra.mxu0 %v2152
    %2597 = vmatprep.subr.bf16.mxu0 %v2148
    %2598 = vmatpush1.bf16.msra.mxu0 %v2147
    %2599 = vmatprep.subr.bf16.mxu0 %v2143
    %2600 = vmatpush1.bf16.msra.mxu0 %v2142
    %2601 = vmatprep.subr.bf16.mxu0 0
    %2602 = vmatpush2.bf16.msra.mxu0 0
    %2603 = vmatprep.subr.bf16.mxu0 0
    %2604 = vmatpush2.bf16.msra.mxu0 0
    %2605 = vmatprep.subr.bf16.mxu0 0
    %2606 = vmatpush2.bf16.msra.mxu0 0
    %2607 = vmatprep.subr.bf16.mxu0 0
    %2608 = vmatpush2.bf16.msra.mxu0 0
    %2609 = vmatprep.subr.bf16.mxu0 0
    %2610 = vmatpush2.bf16.msra.mxu0 0
    %2611 = vmatprep.subr.bf16.mxu0 0
    %2612 = vmatpush2.bf16.msra.mxu0 0
    %2613 = vmatprep.subr.bf16.mxu0 0
    %2614 = vmatpush2.bf16.msra.mxu0 0
    %2615 = vmatprep.subr.bf16.mxu0 0
    %2616 = vmatpush2.bf16.msra.mxu0 0
    %2617 = vmatprep.mubr.bf16.mxu0 0
    %2618 = vmatmul.mubr.bf16.gmra.mxu0 %v1075
    %v2619 = vpop.f32.mrf.mxu0
    %v2620 = vadd.f32 %v2579, %v2619
    %v2621 = vpop.f32.mrf.mxu0
    %v2622 = vadd.f32 %v2581, %v2621
    %v2623 = vpop.f32.mrf.mxu0
    %v2624 = vpop.f32.mrf.mxu0
    %2625 = vdwg.mxu0
    %2626 = vmatprep.subr.bf16.mxu0 0
    %2627 = vmatpush1.bf16.msra.mxu0 %v2019
    %2628 = vmatprep.subr.bf16.mxu0 0
    %2629 = vmatpush1.bf16.msra.mxu0 %v2014
    %2630 = vmatprep.subr.bf16.mxu0 0
    %2631 = vmatpush1.bf16.msra.mxu0 %v2009
    %2632 = vmatprep.subr.bf16.mxu0 0
    %2633 = vmatpush1.bf16.msra.mxu0 %v2004
    %2634 = vmatprep.subr.bf16.mxu0 0
    %2635 = vmatpush1.bf16.msra.mxu0 %v1999
    %2636 = vmatprep.subr.bf16.mxu0 0
    %2637 = vmatpush1.bf16.msra.mxu0 %v1994
    %2638 = vmatprep.subr.bf16.mxu0 0
    %2639 = vmatpush1.bf16.msra.mxu0 %v1989
    %2640 = vmatprep.subr.bf16.mxu0 0
    %2641 = vmatpush1.bf16.msra.mxu0 %v1984
    %2642 = vmatprep.subr.bf16.mxu0 0
    %2643 = vmatpush2.bf16.msra.mxu0 %v2059
    %2644 = vmatprep.subr.bf16.mxu0 0
    %2645 = vmatpush2.bf16.msra.mxu0 %v2054
    %2646 = vmatprep.subr.bf16.mxu0 0
    %2647 = vmatpush2.bf16.msra.mxu0 %v2049
    %2648 = vmatprep.subr.bf16.mxu0 0
    %2649 = vmatpush2.bf16.msra.mxu0 %v2044
    %2650 = vmatprep.subr.bf16.mxu0 0
    %2651 = vmatpush2.bf16.msra.mxu0 %v2039
    %2652 = vmatprep.subr.bf16.mxu0 0
    %2653 = vmatpush2.bf16.msra.mxu0 %v2034
    %2654 = vmatprep.subr.bf16.mxu0 0
    %2655 = vmatpush2.bf16.msra.mxu0 %v2029
    %2656 = vmatprep.subr.bf16.mxu0 0
    %2657 = vmatpush2.bf16.msra.mxu0 %v2024
    %2658 = vmatprep.mubr.bf16.mxu0 %v1072
    %2659 = vmatmul.mubr.bf16.gmra.mxu0 %v1071
    %v2660 = vpop.f32.mrf.mxu0
    %v2661 = vadd.f32 %v1339, %v2660
    %v2662 = vpop.f32.mrf.mxu0
    %v2663 = vpop.f32.mrf.mxu0
    %v2664 = vpop.f32.mrf.mxu0
    %2665 = vdwg.mxu0
    %2666 = vmatprep.subr.bf16.mxu0 0
    %2667 = vmatpush1.bf16.msra.mxu0 %v2099
    %2668 = vmatprep.subr.bf16.mxu0 0
    %2669 = vmatpush1.bf16.msra.mxu0 %v2094
    %2670 = vmatprep.subr.bf16.mxu0 0
    %2671 = vmatpush1.bf16.msra.mxu0 %v2089
    %2672 = vmatprep.subr.bf16.mxu0 0
    %2673 = vmatpush1.bf16.msra.mxu0 %v2084
    %2674 = vmatprep.subr.bf16.mxu0 0
    %2675 = vmatpush1.bf16.msra.mxu0 %v2079
    %2676 = vmatprep.subr.bf16.mxu0 0
    %2677 = vmatpush1.bf16.msra.mxu0 %v2074
    %2678 = vmatprep.subr.bf16.mxu0 0
    %2679 = vmatpush1.bf16.msra.mxu0 %v2069
    %2680 = vmatprep.subr.bf16.mxu0 0
    %2681 = vmatpush1.bf16.msra.mxu0 %v2064
    %2682 = vmatprep.subr.bf16.mxu0 0
    %2683 = vmatpush2.bf16.msra.mxu0 %v2139
    %2684 = vmatprep.subr.bf16.mxu0 0
    %2685 = vmatpush2.bf16.msra.mxu0 %v2134
    %2686 = vmatprep.subr.bf16.mxu0 0
    %2687 = vmatpush2.bf16.msra.mxu0 %v2129
    %2688 = vmatprep.subr.bf16.mxu0 0
    %2689 = vmatpush2.bf16.msra.mxu0 %v2124
    %2690 = vmatprep.subr.bf16.mxu0 0
    %2691 = vmatpush2.bf16.msra.mxu0 %v2119
    %2692 = vmatprep.subr.bf16.mxu0 0
    %2693 = vmatpush2.bf16.msra.mxu0 %v2114
    %2694 = vmatprep.subr.bf16.mxu0 0
    %2695 = vmatpush2.bf16.msra.mxu0 %v2109
    %2696 = vmatprep.subr.bf16.mxu0 0
    %2697 = vmatpush2.bf16.msra.mxu0 %v2104
    %2698 = vmatprep.mubr.bf16.mxu0 %v1074
    %2699 = vmatmul.mubr.bf16.gmra.mxu0 %v1073
    %v2700 = vpop.f32.mrf.mxu0
    %v2701 = vadd.f32 %v2661, %v2700
    %v2702 = vpop.f32.mrf.mxu0
    %v2703 = vpop.f32.mrf.mxu0
    %v2704 = vpop.f32.mrf.mxu0
    %2705 = vdwg.mxu0
    %2706 = vmatprep.subr.bf16.mxu0 0
    %2707 = vmatpush1.bf16.msra.mxu0 %v2179
    %2708 = vmatprep.subr.bf16.mxu0 0
    %2709 = vmatpush1.bf16.msra.mxu0 %v2174
    %2710 = vmatprep.subr.bf16.mxu0 0
    %2711 = vmatpush1.bf16.msra.mxu0 %v2169
    %2712 = vmatprep.subr.bf16.mxu0 0
    %2713 = vmatpush1.bf16.msra.mxu0 %v2164
    %2714 = vmatprep.subr.bf16.mxu0 0
    %2715 = vmatpush1.bf16.msra.mxu0 %v2159
    %2716 = vmatprep.subr.bf16.mxu0 0
    %2717 = vmatpush1.bf16.msra.mxu0 %v2154
    %2718 = vmatprep.subr.bf16.mxu0 0
    %2719 = vmatpush1.bf16.msra.mxu0 %v2149
    %2720 = vmatprep.subr.bf16.mxu0 0
    %2721 = vmatpush1.bf16.msra.mxu0 %v2144
    %2722 = vmatprep.subr.bf16.mxu0 0
    %2723 = vmatpush2.bf16.msra.mxu0 0
    %2724 = vmatprep.subr.bf16.mxu0 0
    %2725 = vmatpush2.bf16.msra.mxu0 0
    %2726 = vmatprep.subr.bf16.mxu0 0
    %2727 = vmatpush2.bf16.msra.mxu0 0
    %2728 = vmatprep.subr.bf16.mxu0 0
    %2729 = vmatpush2.bf16.msra.mxu0 0
    %2730 = vmatprep.subr.bf16.mxu0 0
    %2731 = vmatpush2.bf16.msra.mxu0 0
    %2732 = vmatprep.subr.bf16.mxu0 0
    %2733 = vmatpush2.bf16.msra.mxu0 0
    %2734 = vmatprep.subr.bf16.mxu0 0
    %2735 = vmatpush2.bf16.msra.mxu0 0
    %2736 = vmatprep.subr.bf16.mxu0 0
    %2737 = vmatpush2.bf16.msra.mxu0 0
    %2738 = vmatprep.mubr.bf16.mxu0 0
    %2739 = vmatmul.mubr.bf16.gmra.mxu0 %v1075
    %v2740 = vpop.f32.mrf.mxu0
    %v2741 = vadd.f32 %v2701, %v2740
    %v2742 = vpop.f32.mrf.mxu0
    %v2743 = vpop.f32.mrf.mxu0
    %v2744 = vpop.f32.mrf.mxu0
    %2745 = vdwg.mxu0
    %v2746 = vrot.slane %v2497, 4
    %v2747 = vadd.f32 %v2497, %v2746
    %v2748 = vrot.slane %v2747, 2
    %v2749 = vadd.f32 %v2747, %v2748
    %v2750 = vrot.slane %v2749, 1
    %v2751 = vadd.f32 %v2749, %v2750
    %v2752 = vrot.slane %v2499, 4
    %v2753 = vadd.f32 %v2499, %v2752
    %v2754 = vrot.slane %v2753, 2
    %v2755 = vadd.f32 %v2753, %v2754
    %v2756 = vrot.slane %v2755, 1
    %v2757 = vadd.f32 %v2755, %v2756
    %v2758 = vrot.slane %v2620, 4
    %v2759 = vadd.f32 %v2620, %v2758
    %v2760 = vrot.slane %v2759, 2
    %v2761 = vadd.f32 %v2759, %v2760
    %v2762 = vrot.slane %v2761, 1
    %v2763 = vadd.f32 %v2761, %v2762
    %v2764 = vrot.slane %v2622, 4
    %v2765 = vadd.f32 %v2622, %v2764
    %v2766 = vrot.slane %v2765, 2
    %v2767 = vadd.f32 %v2765, %v2766
    %v2768 = vrot.slane %v2767, 1
    %v2769 = vadd.f32 %v2767, %v2768
    %v2770 = vrot.slane %v2741, 4
    %v2771 = vadd.f32 %v2741, %v2770
    %v2772 = vrot.slane %v2771, 2
    %v2773 = vadd.f32 %v2771, %v2772
    %v2774 = vrot.slane %v2773, 1
    %v2775 = vadd.f32 %v2773, %v2774
    %v2776 = vmul.f32 %v2751, %v855
    %v2777 = vmul.f32 %v2757, %v855
    %v2778 = vmul.f32 %v2763, %v855
    %v2779 = vmul.f32 %v2769, %v855
    %v2780 = vmul.f32 %v2775, %v855
    %v2781 = vmul.f32 %v2497, %v2497
    %v2782 = vmul.f32 %v2499, %v2499
    %v2783 = vmul.f32 %v2620, %v2620
    %v2784 = vmul.f32 %v2622, %v2622
    %v2785 = vmul.f32 %v2741, %v2741
    %v2786 = vrot.slane %v2781, 4
    %v2787 = vadd.f32 %v2781, %v2786
    %v2788 = vrot.slane %v2787, 2
    %v2789 = vadd.f32 %v2787, %v2788
    %v2790 = vrot.slane %v2789, 1
    %v2791 = vadd.f32 %v2789, %v2790
    %v2792 = vrot.slane %v2782, 4
    %v2793 = vadd.f32 %v2782, %v2792
    %v2794 = vrot.slane %v2793, 2
    %v2795 = vadd.f32 %v2793, %v2794
    %v2796 = vrot.slane %v2795, 1
    %v2797 = vadd.f32 %v2795, %v2796
    %v2798 = vrot.slane %v2783, 4
    %v2799 = vadd.f32 %v2783, %v2798
    %v2800 = vrot.slane %v2799, 2
    %v2801 = vadd.f32 %v2799, %v2800
    %v2802 = vrot.slane %v2801, 1
    %v2803 = vadd.f32 %v2801, %v2802
    %v2804 = vrot.slane %v2784, 4
    %v2805 = vadd.f32 %v2784, %v2804
    %v2806 = vrot.slane %v2805, 2
    %v2807 = vadd.f32 %v2805, %v2806
    %v2808 = vrot.slane %v2807, 1
    %v2809 = vadd.f32 %v2807, %v2808
    %v2810 = vrot.slane %v2785, 4
    %v2811 = vadd.f32 %v2785, %v2810
    %v2812 = vrot.slane %v2811, 2
    %v2813 = vadd.f32 %v2811, %v2812
    %v2814 = vrot.slane %v2813, 1
    %v2815 = vadd.f32 %v2813, %v2814
    %v2816 = vmul.f32 %v2791, %v855
    %v2817 = vmul.f32 %v2797, %v855
    %v2818 = vmul.f32 %v2803, %v855
    %v2819 = vmul.f32 %v2809, %v855
    %v2820 = vmul.f32 %v2815, %v855
    %v2821 = vmul.f32 %v2776, %v2776
    %v2822 = vmul.f32 %v2777, %v2777
    %v2823 = vmul.f32 %v2778, %v2778
    %v2824 = vmul.f32 %v2779, %v2779
    %v2825 = vmul.f32 %v2780, %v2780
    %v2826 = vsub.f32 %v2816, %v2821
    %v2827 = vsub.f32 %v2817, %v2822
    %v2828 = vsub.f32 %v2818, %v2823
    %v2829 = vsub.f32 %v2819, %v2824
    %v2830 = vsub.f32 %v2820, %v2825
    %v2831 = vadd.f32 %v2826, 1e-05
    %v2832 = vadd.f32 %v2827, 1e-05
    %v2833 = vadd.f32 %v2828, 1e-05
    %v2834 = vadd.f32 %v2829, 1e-05
    %v2835 = vadd.f32 %v2830, 1e-05
    %v2836 = vrsqrt.pop %v2831
    %v2837 = vrsqrt.pop %v2832
    %v2838 = vrsqrt.pop %v2833
    %v2839 = vrsqrt.pop %v2834
    %v2840 = vrsqrt.pop %v2835
    %v2841 = vmul.f32 %v155, %v2836
    %v2842 = vmul.f32 %v156, %v2837
    %v2843 = vmul.f32 %v157, %v2838
    %v2844 = vmul.f32 %v158, %v2839
    %v2845 = vmul.f32 %v159, %v2840
    %v2846 = vlaneseq
    %v2847 = vshrl.u32 %v2846, 7
    %v2848 = vsub.s32 4, %v2847
    %v2849 = vrot.slane %v2841, %v2848
    %v2850 = vlaneseq
    %v2851 = vshrl.u32 %v2850, 7
    %v2852 = vsub.s32 4, %v2851
    %v2853 = vrot.slane %v2842, %v2852
    %v2854 = vlaneseq
    %v2855 = vshrl.u32 %v2854, 7
    %v2856 = vsub.s32 4, %v2855
    %v2857 = vrot.slane %v2843, %v2856
    %v2858 = vlaneseq
    %v2859 = vshrl.u32 %v2858, 7
    %v2860 = vsub.s32 4, %v2859
    %v2861 = vrot.slane %v2844, %v2860
    %v2862 = vlaneseq
    %v2863 = vshrl.u32 %v2862, 7
    %v2864 = vsub.s32 4, %v2863
    %v2865 = vrot.slane %v2845, %v2864
    %v2866 = vmul.f32 %v2497, %v2849
    %v2867 = vmul.f32 %v2499, %v2853
    %v2868 = vmul.f32 %v2620, %v2857
    %v2869 = vmul.f32 %v2622, %v2861
    %v2870 = vmul.f32 %v2741, %v2865
    %v2871 = vmul.f32 %v2776, %v2841
    %v2872 = vmul.f32 %v2777, %v2842
    %v2873 = vmul.f32 %v2778, %v2843
    %v2874 = vmul.f32 %v2779, %v2844
    %v2875 = vmul.f32 %v2780, %v2845
    %v2881 = vrot.slane %v2871, 7
    %v2882 = vrot.slane %v2872, 7
    %v2883 = vrot.slane %v2873, 7
    %v2884 = vrot.slane %v2874, 7
    %v2885 = vrot.slane %v2875, 7
    %v2891 = vsub.f32 %v155, %v2881
    %v2892 = vsub.f32 %v156, %v2882
    %v2893 = vsub.f32 %v157, %v2883
    %v2894 = vsub.f32 %v158, %v2884
    %v2895 = vsub.f32 %v159, %v2885
    %v2896 = vlaneseq
    %v2897 = vshrl.u32 %v2896, 7
    %v2898 = vsub.s32 5, %v2897
    %v2899 = vrot.slane %v2891, %v2898
    %v2900 = vlaneseq
    %v2901 = vshrl.u32 %v2900, 7
    %v2902 = vsub.s32 5, %v2901
    %v2903 = vrot.slane %v2892, %v2902
    %v2904 = vlaneseq
    %v2905 = vshrl.u32 %v2904, 7
    %v2906 = vsub.s32 5, %v2905
    %v2907 = vrot.slane %v2893, %v2906
    %v2908 = vlaneseq
    %v2909 = vshrl.u32 %v2908, 7
    %v2910 = vsub.s32 5, %v2909
    %v2911 = vrot.slane %v2894, %v2910
    %v2912 = vlaneseq
    %v2913 = vshrl.u32 %v2912, 7
    %v2914 = vsub.s32 5, %v2913
    %v2915 = vrot.slane %v2895, %v2914
    %v2916 = vadd.f32 %v2866, %v2899
    %v2917 = vadd.f32 %v2867, %v2903
    %v2918 = vadd.f32 %v2868, %v2907
    %v2919 = vadd.f32 %v2869, %v2911
    %v2920 = vadd.f32 %v2870, %v2915
    %v2921 = vmin.f32 %v2916, 20.0
    %v2922 = vmin.f32 %v2917, 20.0
    %v2923 = vmin.f32 %v2918, 20.0
    %v2924 = vmin.f32 %v2919, 20.0
    %v2925 = vmin.f32 %v2920, 20.0
    %vm2926 = vcmp.gt.f32.partialorder %v2916, 20.0
    %vm2927 = vcmp.gt.f32.partialorder %v2917, 20.0
    %vm2928 = vcmp.gt.f32.partialorder %v2918, 20.0
    %vm2929 = vcmp.gt.f32.partialorder %v2919, 20.0
    %vm2930 = vcmp.gt.f32.partialorder %v2920, 20.0
    %v2931 = vmul.f32 %v2921, 1.442695
    %v2932 = vpow.pop %v2931
    %v2933 = vmul.f32 %v2922, 1.442695
    %v2934 = vpow.pop %v2933
    %v2935 = vmul.f32 %v2923, 1.442695
    %v2936 = vpow.pop %v2935
    %v2937 = vmul.f32 %v2924, 1.442695
    %v2938 = vpow.pop %v2937
    %v2939 = vmul.f32 %v2925, 1.442695
    %v2940 = vpow.pop %v2939
    %v2941 = vadd.f32 %v2932, 1.0
    %v2942 = vlog2.pop %v2941
    %v2943 = vmul.f32 %v2942, 0.6931472
    %v2944 = vmul.f32 -0.5, %v2932
    %v2945 = vadd.f32 %v2944, 1.0
    %v2946 = vmul.f32 %v2945, %v2932
    %v2947 = vand.u32 2147483647, %v2932
    %vm2948 = vcmp.lt.f32.partialorder %v2947, 0.0004427343
    %v2949 = vsel %vm2948, %v2946, %v2943
    %v2950 = vadd.f32 %v2934, 1.0
    %v2951 = vlog2.pop %v2950
    %v2952 = vmul.f32 %v2951, 0.6931472
    %v2953 = vmul.f32 -0.5, %v2934
    %v2954 = vadd.f32 %v2953, 1.0
    %v2955 = vmul.f32 %v2954, %v2934
    %v2956 = vand.u32 2147483647, %v2934
    %vm2957 = vcmp.lt.f32.partialorder %v2956, 0.0004427343
    %v2958 = vsel %vm2957, %v2955, %v2952
    %v2959 = vadd.f32 %v2936, 1.0
    %v2960 = vlog2.pop %v2959
    %v2961 = vmul.f32 %v2960, 0.6931472
    %v2962 = vmul.f32 -0.5, %v2936
    %v2963 = vadd.f32 %v2962, 1.0
    %v2964 = vmul.f32 %v2963, %v2936
    %v2965 = vand.u32 2147483647, %v2936
    %vm2966 = vcmp.lt.f32.partialorder %v2965, 0.0004427343
    %v2967 = vsel %vm2966, %v2964, %v2961
    %v2968 = vadd.f32 %v2938, 1.0
    %v2969 = vlog2.pop %v2968
    %v2970 = vmul.f32 %v2969, 0.6931472
    %v2971 = vmul.f32 -0.5, %v2938
    %v2972 = vadd.f32 %v2971, 1.0
    %v2973 = vmul.f32 %v2972, %v2938
    %v2974 = vand.u32 2147483647, %v2938
    %vm2975 = vcmp.lt.f32.partialorder %v2974, 0.0004427343
    %v2976 = vsel %vm2975, %v2973, %v2970
    %v2977 = vadd.f32 %v2940, 1.0
    %v2978 = vlog2.pop %v2977
    %v2979 = vmul.f32 %v2978, 0.6931472
    %v2980 = vmul.f32 -0.5, %v2940
    %v2981 = vadd.f32 %v2980, 1.0
    %v2982 = vmul.f32 %v2981, %v2940
    %v2983 = vand.u32 2147483647, %v2940
    %vm2984 = vcmp.lt.f32.partialorder %v2983, 0.0004427343
    %v2985 = vsel %vm2984, %v2982, %v2979
    %v2986 = vsel %vm2926, %v2916, %v2949
    %v2987 = vsel %vm2927, %v2917, %v2958
    %v2988 = vsel %vm2928, %v2918, %v2967
    %v2989 = vsel %vm2929, %v2919, %v2976
    %v2990 = vsel %vm2930, %v2920, %v2985
    %v2991 = vpack.c.bf16 %v2986, %v2986
    %v2992 = vpack.c.bf16 %v2987, %v2987
    %v2993 = vpack.c.bf16 %v2988, %v2988
    %v2994 = vpack.c.bf16 %v2989, %v2989
    %v2995 = vpack.c.bf16 %v2990, %v2990
    %s2996 = smul.u32 %s1076, 2
    %s2997 = sshll.u32 %s2996, 4
    %2998 = dma.done %s107, %s2997
    %v2999 = vld [vmem:[#allocation3] sm:$0xff]
    %v3000 = vld [vmem:[#allocation3 + $0x8] sm:$0xff]
    %v3001 = vld [vmem:[#allocation3 + $0x10] sm:$0xff]
    %v3002 = vld [vmem:[#allocation3 + $0x18] sm:$0xff]
    %v3003 = vld [vmem:[#allocation3 + $0x20] sm:$0xff]
    %v3004 = vld [vmem:[#allocation3 + $0x28] sm:$0xff]
    %v3005 = vld [vmem:[#allocation3 + $0x30] sm:$0xff]
    %v3006 = vld [vmem:[#allocation3 + $0x38] sm:$0xff]
    %v3007 = vld [vmem:[#allocation3 + $0x40] sm:$0xff]
    %v3008 = vld [vmem:[#allocation3 + $0x48] sm:$0xff]
    %v3009 = vld [vmem:[#allocation3 + $0x50] sm:$0xff]
    %v3010 = vld [vmem:[#allocation3 + $0x58] sm:$0xff]
    %v3011 = vld [vmem:[#allocation3 + $0x60] sm:$0xff]
    %v3012 = vld [vmem:[#allocation3 + $0x68] sm:$0xff]
    %v3013 = vld [vmem:[#allocation3 + $0x70] sm:$0xff]
    %v3014 = vld [vmem:[#allocation3 + $0x78] sm:$0xff]
    %v3015 = vld [vmem:[#allocation3 + $0x80] sm:$0xff]
    %v3016 = vld [vmem:[#allocation3 + $0x88] sm:$0xff]
    %v3017 = vld [vmem:[#allocation3 + $0x90] sm:$0xff]
    %v3018 = vld [vmem:[#allocation3 + $0x98] sm:$0xff]
    %v3019 = vld [vmem:[#allocation3 + $0xa0] sm:$0xff]
    %v3020 = vld [vmem:[#allocation3 + $0xa8] sm:$0xff]
    %v3021 = vld [vmem:[#allocation3 + $0xb0] sm:$0xff]
    %v3022 = vld [vmem:[#allocation3 + $0xb8] sm:$0xff]
    %v3023 = vld [vmem:[#allocation3 + $0xc0] sm:$0xff]
    %v3024 = vld [vmem:[#allocation3 + $0xc8] sm:$0xff]
    %v3025 = vld [vmem:[#allocation3 + $0xd0] sm:$0xff]
    %v3026 = vld [vmem:[#allocation3 + $0xd8] sm:$0xff]
    %v3027 = vld [vmem:[#allocation3 + $0xe0] sm:$0xff]
    %v3028 = vld [vmem:[#allocation3 + $0xe8] sm:$0xff]
    %v3029 = vld [vmem:[#allocation3 + $0xf0] sm:$0xff]
    %v3030 = vld [vmem:[#allocation3 + $0xf8] sm:$0xff]
    %v3031 = vld [vmem:[#allocation3 + $0x100] sm:$0xff]
    %v3032 = vld [vmem:[#allocation3 + $0x108] sm:$0xff]
    %v3033 = vld [vmem:[#allocation3 + $0x110] sm:$0xff]
    %v3034 = vld [vmem:[#allocation3 + $0x118] sm:$0xff]
    %v3035 = vld [vmem:[#allocation3 + $0x120] sm:$0xff]
    %v3036 = vld [vmem:[#allocation3 + $0x128] sm:$0xff]
    %v3037 = vld [vmem:[#allocation3 + $0x130] sm:$0xff]
    %v3038 = vld [vmem:[#allocation3 + $0x138] sm:$0xff]
    %v3039 = vld [vmem:[#allocation3 + $0x140] sm:$0xff]
    %v3040 = vld [vmem:[#allocation3 + $0x148] sm:$0xff]
    %v3041 = vld [vmem:[#allocation3 + $0x150] sm:$0xff]
    %v3042 = vld [vmem:[#allocation3 + $0x158] sm:$0xff]
    %v3043 = vld [vmem:[#allocation3 + $0x160] sm:$0xff]
    %v3044 = vld [vmem:[#allocation3 + $0x168] sm:$0xff]
    %v3045 = vld [vmem:[#allocation3 + $0x170] sm:$0xff]
    %v3046 = vld [vmem:[#allocation3 + $0x178] sm:$0xff]
    %v3047 = vld [vmem:[#allocation3 + $0x180] sm:$0xff]
    %v3048 = vld [vmem:[#allocation3 + $0x188] sm:$0xff]
    %v3049 = vld [vmem:[#allocation3 + $0x190] sm:$0xff]
    %v3050 = vld [vmem:[#allocation3 + $0x198] sm:$0xff]
    %v3051 = vld [vmem:[#allocation3 + $0x1a0] sm:$0xff]
    %v3052 = vld [vmem:[#allocation3 + $0x1a8] sm:$0xff]
    %v3053 = vld [vmem:[#allocation3 + $0x1b0] sm:$0xff]
    %v3054 = vld [vmem:[#allocation3 + $0x1b8] sm:$0xff]
    %v3055 = vld [vmem:[#allocation3 + $0x1c0] sm:$0xff]
    %v3056 = vld [vmem:[#allocation3 + $0x1c8] sm:$0xff]
    %v3057 = vld [vmem:[#allocation3 + $0x1d0] sm:$0xff]
    %v3058 = vld [vmem:[#allocation3 + $0x1d8] sm:$0xff]
    %v3059 = vld [vmem:[#allocation3 + $0x1e0] sm:$0xff]
    %v3060 = vld [vmem:[#allocation3 + $0x1e8] sm:$0xff]
    %v3061 = vld [vmem:[#allocation3 + $0x1f0] sm:$0xff]
    %v3062 = vld [vmem:[#allocation3 + $0x1f8] sm:$0xff]
    %v3063 = vld [vmem:[#allocation3 + $0x200] sm:$0xff]
    %v3064 = vld [vmem:[#allocation3 + $0x208] sm:$0xff]
    %v3065 = vld [vmem:[#allocation3 + $0x210] sm:$0xff]
    %v3066 = vld [vmem:[#allocation3 + $0x218] sm:$0xff]
    %v3067 = vld [vmem:[#allocation3 + $0x220] sm:$0xff]
    %v3068 = vld [vmem:[#allocation3 + $0x228] sm:$0xff]
    %v3069 = vld [vmem:[#allocation3 + $0x230] sm:$0xff]
    %v3070 = vld [vmem:[#allocation3 + $0x238] sm:$0xff]
    %v3071 = vld [vmem:[#allocation3 + $0x240] sm:$0xff]
    %v3072 = vld [vmem:[#allocation3 + $0x248] sm:$0xff]
    %v3073 = vld [vmem:[#allocation3 + $0x250] sm:$0xff]
    %v3074 = vld [vmem:[#allocation3 + $0x258] sm:$0xff]
    %v3075 = vld [vmem:[#allocation3 + $0x260] sm:$0xff]
    %v3076 = vld [vmem:[#allocation3 + $0x268] sm:$0xff]
    %v3077 = vld [vmem:[#allocation3 + $0x270] sm:$0xff]
    %v3078 = vld [vmem:[#allocation3 + $0x278] sm:$0xff]
    %v3079 = vlaneseq
    %v3080 = vshrl.u32 %v3079, 7
    %v3081 = vsub.s32 0, %v3080
    %v3082 = vrot.slane %v165, %v3081
    %v3083 = vlaneseq
    %v3084 = vshrl.u32 %v3083, 7
    %v3085 = vsub.s32 0, %v3084
    %v3086 = vrot.slane %v166, %v3085
    %v3167 = vunpack.c.l.b16 %v2999
    %v3168 = vunpack.c.h.b16 %v2999
    %v3169 = vunpack.c.l.b16 %v3000
    %v3170 = vunpack.c.h.b16 %v3000
    %v3171 = vunpack.c.l.b16 %v3001
    %v3172 = vunpack.c.h.b16 %v3001
    %v3173 = vunpack.c.l.b16 %v3002
    %v3174 = vunpack.c.h.b16 %v3002
    %v3175 = vunpack.c.l.b16 %v3003
    %v3176 = vunpack.c.h.b16 %v3003
    %v3177 = vunpack.c.l.b16 %v3004
    %v3178 = vunpack.c.h.b16 %v3004
    %v3179 = vunpack.c.l.b16 %v3005
    %v3180 = vunpack.c.h.b16 %v3005
    %v3181 = vunpack.c.l.b16 %v3006
    %v3182 = vunpack.c.h.b16 %v3006
    %v3183 = vunpack.c.l.b16 %v3007
    %v3184 = vunpack.c.h.b16 %v3007
    %v3185 = vunpack.c.l.b16 %v3008
    %v3186 = vunpack.c.h.b16 %v3008
    %v3187 = vunpack.c.l.b16 %v3009
    %v3188 = vunpack.c.h.b16 %v3009
    %v3189 = vunpack.c.l.b16 %v3010
    %v3190 = vunpack.c.h.b16 %v3010
    %v3191 = vunpack.c.l.b16 %v3011
    %v3192 = vunpack.c.h.b16 %v3011
    %v3193 = vunpack.c.l.b16 %v3012
    %v3194 = vunpack.c.h.b16 %v3012
    %v3195 = vunpack.c.l.b16 %v3013
    %v3196 = vunpack.c.h.b16 %v3013
    %v3197 = vunpack.c.l.b16 %v3014
    %v3198 = vunpack.c.h.b16 %v3014
    %v3199 = vunpack.c.l.b16 %v3015
    %v3200 = vunpack.c.h.b16 %v3015
    %v3201 = vunpack.c.l.b16 %v3016
    %v3202 = vunpack.c.h.b16 %v3016
    %v3203 = vunpack.c.l.b16 %v3017
    %v3204 = vunpack.c.h.b16 %v3017
    %v3205 = vunpack.c.l.b16 %v3018
    %v3206 = vunpack.c.h.b16 %v3018
    %v3207 = vunpack.c.l.b16 %v3019
    %v3208 = vunpack.c.h.b16 %v3019
    %v3209 = vunpack.c.l.b16 %v3020
    %v3210 = vunpack.c.h.b16 %v3020
    %v3211 = vunpack.c.l.b16 %v3021
    %v3212 = vunpack.c.h.b16 %v3021
    %v3213 = vunpack.c.l.b16 %v3022
    %v3214 = vunpack.c.h.b16 %v3022
    %v3215 = vunpack.c.l.b16 %v3023
    %v3216 = vunpack.c.h.b16 %v3023
    %v3217 = vunpack.c.l.b16 %v3024
    %v3218 = vunpack.c.h.b16 %v3024
    %v3219 = vunpack.c.l.b16 %v3025
    %v3220 = vunpack.c.h.b16 %v3025
    %v3221 = vunpack.c.l.b16 %v3026
    %v3222 = vunpack.c.h.b16 %v3026
    %v3223 = vunpack.c.l.b16 %v3027
    %v3224 = vunpack.c.h.b16 %v3027
    %v3225 = vunpack.c.l.b16 %v3028
    %v3226 = vunpack.c.h.b16 %v3028
    %v3227 = vunpack.c.l.b16 %v3029
    %v3228 = vunpack.c.h.b16 %v3029
    %v3229 = vunpack.c.l.b16 %v3030
    %v3230 = vunpack.c.h.b16 %v3030
    %v3231 = vunpack.c.l.b16 %v3031
    %v3232 = vunpack.c.h.b16 %v3031
    %v3233 = vunpack.c.l.b16 %v3032
    %v3234 = vunpack.c.h.b16 %v3032
    %v3235 = vunpack.c.l.b16 %v3033
    %v3236 = vunpack.c.h.b16 %v3033
    %v3237 = vunpack.c.l.b16 %v3034
    %v3238 = vunpack.c.h.b16 %v3034
    %v3239 = vunpack.c.l.b16 %v3035
    %v3240 = vunpack.c.h.b16 %v3035
    %v3241 = vunpack.c.l.b16 %v3036
    %v3242 = vunpack.c.h.b16 %v3036
    %v3243 = vunpack.c.l.b16 %v3037
    %v3244 = vunpack.c.h.b16 %v3037
    %v3245 = vunpack.c.l.b16 %v3038
    %v3246 = vunpack.c.h.b16 %v3038
    %v3247 = vunpack.c.l.b16 %v3039
    %v3248 = vunpack.c.h.b16 %v3039
    %v3249 = vunpack.c.l.b16 %v3040
    %v3250 = vunpack.c.h.b16 %v3040
    %v3251 = vunpack.c.l.b16 %v3041
    %v3252 = vunpack.c.h.b16 %v3041
    %v3253 = vunpack.c.l.b16 %v3042
    %v3254 = vunpack.c.h.b16 %v3042
    %v3255 = vunpack.c.l.b16 %v3043
    %v3256 = vunpack.c.h.b16 %v3043
    %v3257 = vunpack.c.l.b16 %v3044
    %v3258 = vunpack.c.h.b16 %v3044
    %v3259 = vunpack.c.l.b16 %v3045
    %v3260 = vunpack.c.h.b16 %v3045
    %v3261 = vunpack.c.l.b16 %v3046
    %v3262 = vunpack.c.h.b16 %v3046
    %v3263 = vunpack.c.l.b16 %v3047
    %v3264 = vunpack.c.h.b16 %v3047
    %v3265 = vunpack.c.l.b16 %v3048
    %v3266 = vunpack.c.h.b16 %v3048
    %v3267 = vunpack.c.l.b16 %v3049
    %v3268 = vunpack.c.h.b16 %v3049
    %v3269 = vunpack.c.l.b16 %v3050
    %v3270 = vunpack.c.h.b16 %v3050
    %v3271 = vunpack.c.l.b16 %v3051
    %v3272 = vunpack.c.h.b16 %v3051
    %v3273 = vunpack.c.l.b16 %v3052
    %v3274 = vunpack.c.h.b16 %v3052
    %v3275 = vunpack.c.l.b16 %v3053
    %v3276 = vunpack.c.h.b16 %v3053
    %v3277 = vunpack.c.l.b16 %v3054
    %v3278 = vunpack.c.h.b16 %v3054
    %v3279 = vunpack.c.l.b16 %v3055
    %v3280 = vunpack.c.h.b16 %v3055
    %v3281 = vunpack.c.l.b16 %v3056
    %v3282 = vunpack.c.h.b16 %v3056
    %v3283 = vunpack.c.l.b16 %v3057
    %v3284 = vunpack.c.h.b16 %v3057
    %v3285 = vunpack.c.l.b16 %v3058
    %v3286 = vunpack.c.h.b16 %v3058
    %v3287 = vunpack.c.l.b16 %v3059
    %v3288 = vunpack.c.h.b16 %v3059
    %v3289 = vunpack.c.l.b16 %v3060
    %v3290 = vunpack.c.h.b16 %v3060
    %v3291 = vunpack.c.l.b16 %v3061
    %v3292 = vunpack.c.h.b16 %v3061
    %v3293 = vunpack.c.l.b16 %v3062
    %v3294 = vunpack.c.h.b16 %v3062
    %v3295 = vunpack.c.l.b16 %v3063
    %v3296 = vunpack.c.h.b16 %v3063
    %v3297 = vunpack.c.l.b16 %v3064
    %v3298 = vunpack.c.h.b16 %v3064
    %v3299 = vunpack.c.l.b16 %v3065
    %v3300 = vunpack.c.h.b16 %v3065
    %v3301 = vunpack.c.l.b16 %v3066
    %v3302 = vunpack.c.h.b16 %v3066
    %v3303 = vunpack.c.l.b16 %v3067
    %v3304 = vunpack.c.h.b16 %v3067
    %v3305 = vunpack.c.l.b16 %v3068
    %v3306 = vunpack.c.h.b16 %v3068
    %v3307 = vunpack.c.l.b16 %v3069
    %v3308 = vunpack.c.h.b16 %v3069
    %v3309 = vunpack.c.l.b16 %v3070
    %v3310 = vunpack.c.h.b16 %v3070
    %v3311 = vunpack.c.l.b16 %v3071
    %v3312 = vunpack.c.h.b16 %v3071
    %v3313 = vunpack.c.l.b16 %v3072
    %v3314 = vunpack.c.h.b16 %v3072
    %v3315 = vunpack.c.l.b16 %v3073
    %v3316 = vunpack.c.h.b16 %v3073
    %v3317 = vunpack.c.l.b16 %v3074
    %v3318 = vunpack.c.h.b16 %v3074
    %v3319 = vunpack.c.l.b16 %v3075
    %v3320 = vunpack.c.h.b16 %v3075
    %v3321 = vunpack.c.l.b16 %v3076
    %v3322 = vunpack.c.h.b16 %v3076
    %v3323 = vunpack.c.l.b16 %v3077
    %v3324 = vunpack.c.h.b16 %v3077
    %v3325 = vunpack.c.l.b16 %v3078
    %v3326 = vunpack.c.h.b16 %v3078
    %v3327 = vpack.c.b16 %v3169, %v3167
    %v3328 = vpack.c.b16 %v3170, %v3168
    %v3329 = vpack.c.b16 %v3173, %v3171
    %v3330 = vpack.c.b16 %v3174, %v3172
    %v3331 = vpack.c.b16 %v3177, %v3175
    %v3332 = vpack.c.b16 %v3178, %v3176
    %v3333 = vpack.c.b16 %v3181, %v3179
    %v3334 = vpack.c.b16 %v3182, %v3180
    %v3335 = vpack.c.b16 %v3185, %v3183
    %v3336 = vpack.c.b16 %v3186, %v3184
    %v3337 = vpack.c.b16 %v3189, %v3187
    %v3338 = vpack.c.b16 %v3190, %v3188
    %v3339 = vpack.c.b16 %v3193, %v3191
    %v3340 = vpack.c.b16 %v3194, %v3192
    %v3341 = vpack.c.b16 %v3197, %v3195
    %v3342 = vpack.c.b16 %v3198, %v3196
    %v3343 = vpack.c.b16 %v3201, %v3199
    %v3344 = vpack.c.b16 %v3202, %v3200
    %v3345 = vpack.c.b16 %v3205, %v3203
    %v3346 = vpack.c.b16 %v3206, %v3204
    %v3347 = vpack.c.b16 %v3209, %v3207
    %v3348 = vpack.c.b16 %v3210, %v3208
    %v3349 = vpack.c.b16 %v3213, %v3211
    %v3350 = vpack.c.b16 %v3214, %v3212
    %v3351 = vpack.c.b16 %v3217, %v3215
    %v3352 = vpack.c.b16 %v3218, %v3216
    %v3353 = vpack.c.b16 %v3221, %v3219
    %v3354 = vpack.c.b16 %v3222, %v3220
    %v3355 = vpack.c.b16 %v3225, %v3223
    %v3356 = vpack.c.b16 %v3226, %v3224
    %v3357 = vpack.c.b16 %v3229, %v3227
    %v3358 = vpack.c.b16 %v3230, %v3228
    %v3359 = vpack.c.b16 %v3233, %v3231
    %v3360 = vpack.c.b16 %v3234, %v3232
    %v3361 = vpack.c.b16 %v3237, %v3235
    %v3362 = vpack.c.b16 %v3238, %v3236
    %v3363 = vpack.c.b16 %v3241, %v3239
    %v3364 = vpack.c.b16 %v3242, %v3240
    %v3365 = vpack.c.b16 %v3245, %v3243
    %v3366 = vpack.c.b16 %v3246, %v3244
    %v3367 = vpack.c.b16 %v3249, %v3247
    %v3368 = vpack.c.b16 %v3250, %v3248
    %v3369 = vpack.c.b16 %v3253, %v3251
    %v3370 = vpack.c.b16 %v3254, %v3252
    %v3371 = vpack.c.b16 %v3257, %v3255
    %v3372 = vpack.c.b16 %v3258, %v3256
    %v3373 = vpack.c.b16 %v3261, %v3259
    %v3374 = vpack.c.b16 %v3262, %v3260
    %v3375 = vpack.c.b16 %v3265, %v3263
    %v3376 = vpack.c.b16 %v3266, %v3264
    %v3377 = vpack.c.b16 %v3269, %v3267
    %v3378 = vpack.c.b16 %v3270, %v3268
    %v3379 = vpack.c.b16 %v3273, %v3271
    %v3380 = vpack.c.b16 %v3274, %v3272
    %v3381 = vpack.c.b16 %v3277, %v3275
    %v3382 = vpack.c.b16 %v3278, %v3276
    %v3383 = vpack.c.b16 %v3281, %v3279
    %v3384 = vpack.c.b16 %v3282, %v3280
    %v3385 = vpack.c.b16 %v3285, %v3283
    %v3386 = vpack.c.b16 %v3286, %v3284
    %v3387 = vpack.c.b16 %v3289, %v3287
    %v3388 = vpack.c.b16 %v3290, %v3288
    %v3389 = vpack.c.b16 %v3293, %v3291
    %v3390 = vpack.c.b16 %v3294, %v3292
    %v3391 = vpack.c.b16 %v3297, %v3295
    %v3392 = vpack.c.b16 %v3298, %v3296
    %v3393 = vpack.c.b16 %v3301, %v3299
    %v3394 = vpack.c.b16 %v3302, %v3300
    %v3395 = vpack.c.b16 %v3305, %v3303
    %v3396 = vpack.c.b16 %v3306, %v3304
    %v3397 = vpack.c.b16 %v3309, %v3307
    %v3398 = vpack.c.b16 %v3310, %v3308
    %v3399 = vpack.c.b16 %v3313, %v3311
    %v3400 = vpack.c.b16 %v3314, %v3312
    %v3401 = vpack.c.b16 %v3317, %v3315
    %v3402 = vpack.c.b16 %v3318, %v3316
    %v3403 = vpack.c.b16 %v3321, %v3319
    %v3404 = vpack.c.b16 %v3322, %v3320
    %v3405 = vpack.c.b16 %v3325, %v3323
    %v3406 = vpack.c.b16 %v3326, %v3324
    %3487 = vmatprep.subr.bf16.mxu0 %v3342
    %3488 = vmatpush1.bf16.msra.mxu0 %v3341
    %3489 = vmatprep.subr.bf16.mxu0 %v3340
    %3490 = vmatpush1.bf16.msra.mxu0 %v3339
    %3491 = vmatprep.subr.bf16.mxu0 %v3338
    %3492 = vmatpush1.bf16.msra.mxu0 %v3337
    %3493 = vmatprep.subr.bf16.mxu0 %v3336
    %3494 = vmatpush1.bf16.msra.mxu0 %v3335
    %3495 = vmatprep.subr.bf16.mxu0 %v3334
    %3496 = vmatpush1.bf16.msra.mxu0 %v3333
    %3497 = vmatprep.subr.bf16.mxu0 %v3332
    %3498 = vmatpush1.bf16.msra.mxu0 %v3331
    %3499 = vmatprep.subr.bf16.mxu0 %v3330
    %3500 = vmatpush1.bf16.msra.mxu0 %v3329
    %3501 = vmatprep.subr.bf16.mxu0 %v3328
    %3502 = vmatpush1.bf16.msra.mxu0 %v3327
    %3503 = vmatprep.subr.bf16.mxu0 %v3358
    %3504 = vmatpush2.bf16.msra.mxu0 %v3357
    %3505 = vmatprep.subr.bf16.mxu0 %v3356
    %3506 = vmatpush2.bf16.msra.mxu0 %v3355
    %3507 = vmatprep.subr.bf16.mxu0 %v3354
    %3508 = vmatpush2.bf16.msra.mxu0 %v3353
    %3509 = vmatprep.subr.bf16.mxu0 %v3352
    %3510 = vmatpush2.bf16.msra.mxu0 %v3351
    %3511 = vmatprep.subr.bf16.mxu0 %v3350
    %3512 = vmatpush2.bf16.msra.mxu0 %v3349
    %3513 = vmatprep.subr.bf16.mxu0 %v3348
    %3514 = vmatpush2.bf16.msra.mxu0 %v3347
    %3515 = vmatprep.subr.bf16.mxu0 %v3346
    %3516 = vmatpush2.bf16.msra.mxu0 %v3345
    %3517 = vmatprep.subr.bf16.mxu0 %v3344
    %3518 = vmatpush2.bf16.msra.mxu0 %v3343
    %3519 = vmatprep.mubr.bf16.mxu0 %v2992
    %3520 = vmatmul.mubr.bf16.gmra.mxu0 %v2991
    %v3521 = vpop.f32.mrf.mxu0
    %v3522 = vadd.f32 %v3082, %v3521
    %v3523 = vpop.f32.mrf.mxu0
    %v3524 = vadd.f32 %v3086, %v3523
    %v3525 = vpop.f32.mrf.mxu0
    %v3526 = vpop.f32.mrf.mxu0
    %3527 = vdwg.mxu0
    %3528 = vmatprep.subr.bf16.mxu0 %v3374
    %3529 = vmatpush1.bf16.msra.mxu0 %v3373
    %3530 = vmatprep.subr.bf16.mxu0 %v3372
    %3531 = vmatpush1.bf16.msra.mxu0 %v3371
    %3532 = vmatprep.subr.bf16.mxu0 %v3370
    %3533 = vmatpush1.bf16.msra.mxu0 %v3369
    %3534 = vmatprep.subr.bf16.mxu0 %v3368
    %3535 = vmatpush1.bf16.msra.mxu0 %v3367
    %3536 = vmatprep.subr.bf16.mxu0 %v3366
    %3537 = vmatpush1.bf16.msra.mxu0 %v3365
    %3538 = vmatprep.subr.bf16.mxu0 %v3364
    %3539 = vmatpush1.bf16.msra.mxu0 %v3363
    %3540 = vmatprep.subr.bf16.mxu0 %v3362
    %3541 = vmatpush1.bf16.msra.mxu0 %v3361
    %3542 = vmatprep.subr.bf16.mxu0 %v3360
    %3543 = vmatpush1.bf16.msra.mxu0 %v3359
    %3544 = vmatprep.subr.bf16.mxu0 %v3390
    %3545 = vmatpush2.bf16.msra.mxu0 %v3389
    %3546 = vmatprep.subr.bf16.mxu0 %v3388
    %3547 = vmatpush2.bf16.msra.mxu0 %v3387
    %3548 = vmatprep.subr.bf16.mxu0 %v3386
    %3549 = vmatpush2.bf16.msra.mxu0 %v3385
    %3550 = vmatprep.subr.bf16.mxu0 %v3384
    %3551 = vmatpush2.bf16.msra.mxu0 %v3383
    %3552 = vmatprep.subr.bf16.mxu0 %v3382
    %3553 = vmatpush2.bf16.msra.mxu0 %v3381
    %3554 = vmatprep.subr.bf16.mxu0 %v3380
    %3555 = vmatpush2.bf16.msra.mxu0 %v3379
    %3556 = vmatprep.subr.bf16.mxu0 %v3378
    %3557 = vmatpush2.bf16.msra.mxu0 %v3377
    %3558 = vmatprep.subr.bf16.mxu0 %v3376
    %3559 = vmatpush2.bf16.msra.mxu0 %v3375
    %3560 = vmatprep.mubr.bf16.mxu0 %v2994
    %3561 = vmatmul.mubr.bf16.gmra.mxu0 %v2993
    %v3562 = vpop.f32.mrf.mxu0
    %v3563 = vadd.f32 %v3522, %v3562
    %v3564 = vpop.f32.mrf.mxu0
    %v3565 = vadd.f32 %v3524, %v3564
    %v3566 = vpop.f32.mrf.mxu0
    %v3567 = vpop.f32.mrf.mxu0
    %3568 = vdwg.mxu0
    %3569 = vmatprep.subr.bf16.mxu0 %v3406
    %3570 = vmatpush1.bf16.msra.mxu0 %v3405
    %3571 = vmatprep.subr.bf16.mxu0 %v3404
    %3572 = vmatpush1.bf16.msra.mxu0 %v3403
    %3573 = vmatprep.subr.bf16.mxu0 %v3402
    %3574 = vmatpush1.bf16.msra.mxu0 %v3401
    %3575 = vmatprep.subr.bf16.mxu0 %v3400
    %3576 = vmatpush1.bf16.msra.mxu0 %v3399
    %3577 = vmatprep.subr.bf16.mxu0 %v3398
    %3578 = vmatpush1.bf16.msra.mxu0 %v3397
    %3579 = vmatprep.subr.bf16.mxu0 %v3396
    %3580 = vmatpush1.bf16.msra.mxu0 %v3395
    %3581 = vmatprep.subr.bf16.mxu0 %v3394
    %3582 = vmatpush1.bf16.msra.mxu0 %v3393
    %3583 = vmatprep.subr.bf16.mxu0 %v3392
    %3584 = vmatpush1.bf16.msra.mxu0 %v3391
    %3585 = vmatprep.subr.bf16.mxu0 0
    %3586 = vmatpush2.bf16.msra.mxu0 0
    %3587 = vmatprep.subr.bf16.mxu0 0
    %3588 = vmatpush2.bf16.msra.mxu0 0
    %3589 = vmatprep.subr.bf16.mxu0 0
    %3590 = vmatpush2.bf16.msra.mxu0 0
    %3591 = vmatprep.subr.bf16.mxu0 0
    %3592 = vmatpush2.bf16.msra.mxu0 0
    %3593 = vmatprep.subr.bf16.mxu0 0
    %3594 = vmatpush2.bf16.msra.mxu0 0
    %3595 = vmatprep.subr.bf16.mxu0 0
    %3596 = vmatpush2.bf16.msra.mxu0 0
    %3597 = vmatprep.subr.bf16.mxu0 0
    %3598 = vmatpush2.bf16.msra.mxu0 0
    %3599 = vmatprep.subr.bf16.mxu0 0
    %3600 = vmatpush2.bf16.msra.mxu0 0
    %3601 = vmatprep.mubr.bf16.mxu0 0
    %3602 = vmatmul.mubr.bf16.gmra.mxu0 %v2995
    %v3603 = vpop.f32.mrf.mxu0
    %v3604 = vadd.f32 %v3563, %v3603
    %v3605 = vpop.f32.mrf.mxu0
    %v3606 = vadd.f32 %v3565, %v3605
    %v3607 = vpop.f32.mrf.mxu0
    %v3608 = vpop.f32.mrf.mxu0
    %3609 = vdwg.mxu0
    %v3610 = vrot.slane %v3604, 4
    %v3611 = vadd.f32 %v3604, %v3610
    %v3612 = vrot.slane %v3611, 2
    %v3613 = vadd.f32 %v3611, %v3612
    %v3614 = vrot.slane %v3613, 1
    %v3615 = vadd.f32 %v3613, %v3614
    %v3616 = vrot.slane %v3606, 4
    %v3617 = vadd.f32 %v3606, %v3616
    %v3618 = vrot.slane %v3617, 2
    %v3619 = vadd.f32 %v3617, %v3618
    %v3620 = vrot.slane %v3619, 1
    %v3621 = vadd.f32 %v3619, %v3620
    %v3622 = vmul.f32 %v3615, %v855
    %v3623 = vmul.f32 %v3621, %v855
    %v3624 = vmul.f32 %v3604, %v3604
    %v3625 = vmul.f32 %v3606, %v3606
    %v3626 = vrot.slane %v3624, 4
    %v3627 = vadd.f32 %v3624, %v3626
    %v3628 = vrot.slane %v3627, 2
    %v3629 = vadd.f32 %v3627, %v3628
    %v3630 = vrot.slane %v3629, 1
    %v3631 = vadd.f32 %v3629, %v3630
    %v3632 = vrot.slane %v3625, 4
    %v3633 = vadd.f32 %v3625, %v3632
    %v3634 = vrot.slane %v3633, 2
    %v3635 = vadd.f32 %v3633, %v3634
    %v3636 = vrot.slane %v3635, 1
    %v3637 = vadd.f32 %v3635, %v3636
    %v3638 = vmul.f32 %v3631, %v855
    %v3639 = vmul.f32 %v3637, %v855
    %v3640 = vmul.f32 %v3622, %v3622
    %v3641 = vmul.f32 %v3623, %v3623
    %v3642 = vsub.f32 %v3638, %v3640
    %v3643 = vsub.f32 %v3639, %v3641
    %v3644 = vadd.f32 %v3642, 1e-05
    %v3645 = vadd.f32 %v3643, 1e-05
    %v3646 = vrsqrt.pop %v3644
    %v3647 = vrsqrt.pop %v3645
    %v3648 = vmul.f32 %v165, %v3646
    %v3649 = vmul.f32 %v166, %v3647
    %v3650 = vlaneseq
    %v3651 = vshrl.u32 %v3650, 7
    %v3652 = vsub.s32 1, %v3651
    %v3653 = vrot.slane %v3648, %v3652
    %v3654 = vlaneseq
    %v3655 = vshrl.u32 %v3654, 7
    %v3656 = vsub.s32 1, %v3655
    %v3657 = vrot.slane %v3649, %v3656
    %v3658 = vmul.f32 %v3604, %v3653
    %v3659 = vmul.f32 %v3606, %v3657
    %v3660 = vmul.f32 %v3622, %v3648
    %v3661 = vmul.f32 %v3623, %v3649
    %v3664 = vrot.slane %v3660, 7
    %v3665 = vrot.slane %v3661, 7
    %v3668 = vsub.f32 %v165, %v3664
    %v3669 = vsub.f32 %v166, %v3665
    %v3670 = vlaneseq
    %v3671 = vshrl.u32 %v3670, 7
    %v3672 = vsub.s32 2, %v3671
    %v3673 = vrot.slane %v3668, %v3672
    %v3674 = vlaneseq
    %v3675 = vshrl.u32 %v3674, 7
    %v3676 = vsub.s32 2, %v3675
    %v3677 = vrot.slane %v3669, %v3676
    %v3678 = vadd.f32 %v3658, %v3673
    %v3679 = vadd.f32 %v3659, %v3677
    %v3680 = vld [vmem:[#allocation11] sm:$0xff]
    %v3681 = vmul.f32 %v3679, 0.5
    %v3682 = vmul.f32 %v3681, 1.442695
    %v3683 = vpow.pop %v3682
    %v3684 = vmul.f32 %v3680, %v3683
    %v3685 = vadd.f32 %v3678, %v3684
    %v3686 = vpack.c.bf16 %v3685, %v3685
    %s3687 = smul.u32 4, 16
    %s3688 = smul.u32 %s3687, 5
    %s3689 = sshll.u32 %s3688, 4
    %3690 = dma.done %s119, %s3689
    %v3691 = vld [vmem:[#allocation4] sm:$0xff]
    %v3692 = vld [vmem:[#allocation4 + $0x8] sm:$0xff]
    %v3693 = vld [vmem:[#allocation4 + $0x10] sm:$0xf]
    %v3694 = vld [vmem:[#allocation4 + $0x14] sm:$0xff]
    %v3695 = vld [vmem:[#allocation4 + $0x1c] sm:$0xff]
    %v3696 = vld [vmem:[#allocation4 + $0x24] sm:$0xf]
    %v3697 = vld [vmem:[#allocation4 + $0x28] sm:$0xff]
    %v3698 = vld [vmem:[#allocation4 + $0x30] sm:$0xff]
    %v3699 = vld [vmem:[#allocation4 + $0x38] sm:$0xf]
    %v3700 = vld [vmem:[#allocation4 + $0x3c] sm:$0xff]
    %v3701 = vld [vmem:[#allocation4 + $0x44] sm:$0xff]
    %v3702 = vld [vmem:[#allocation4 + $0x4c] sm:$0xf]
    %v3703 = vld [vmem:[#allocation4 + $0x50] sm:$0xff]
    %v3704 = vld [vmem:[#allocation4 + $0x58] sm:$0xff]
    %v3705 = vld [vmem:[#allocation4 + $0x60] sm:$0xf]
    %v3706 = vld [vmem:[#allocation4 + $0x64] sm:$0xff]
    %v3707 = vld [vmem:[#allocation4 + $0x6c] sm:$0xff]
    %v3708 = vld [vmem:[#allocation4 + $0x74] sm:$0xf]
    %v3709 = vld [vmem:[#allocation4 + $0x78] sm:$0xff]
    %v3710 = vld [vmem:[#allocation4 + $0x80] sm:$0xff]
    %v3711 = vld [vmem:[#allocation4 + $0x88] sm:$0xf]
    %v3712 = vld [vmem:[#allocation4 + $0x8c] sm:$0xff]
    %v3713 = vld [vmem:[#allocation4 + $0x94] sm:$0xff]
    %v3714 = vld [vmem:[#allocation4 + $0x9c] sm:$0xf]
    %v3715 = vld [vmem:[#allocation4 + $0xa0] sm:$0xff]
    %v3716 = vld [vmem:[#allocation4 + $0xa8] sm:$0xff]
    %v3717 = vld [vmem:[#allocation4 + $0xb0] sm:$0xf]
    %v3718 = vld [vmem:[#allocation4 + $0xb4] sm:$0xff]
    %v3719 = vld [vmem:[#allocation4 + $0xbc] sm:$0xff]
    %v3720 = vld [vmem:[#allocation4 + $0xc4] sm:$0xf]
    %v3721 = vld [vmem:[#allocation4 + $0xc8] sm:$0xff]
    %v3722 = vld [vmem:[#allocation4 + $0xd0] sm:$0xff]
    %v3723 = vld [vmem:[#allocation4 + $0xd8] sm:$0xf]
    %v3724 = vld [vmem:[#allocation4 + $0xdc] sm:$0xff]
    %v3725 = vld [vmem:[#allocation4 + $0xe4] sm:$0xff]
    %v3726 = vld [vmem:[#allocation4 + $0xec] sm:$0xf]
    %v3727 = vld [vmem:[#allocation4 + $0xf0] sm:$0xff]
    %v3728 = vld [vmem:[#allocation4 + $0xf8] sm:$0xff]
    %v3729 = vld [vmem:[#allocation4 + $0x100] sm:$0xf]
    %v3730 = vld [vmem:[#allocation4 + $0x104] sm:$0xff]
    %v3731 = vld [vmem:[#allocation4 + $0x10c] sm:$0xff]
    %v3732 = vld [vmem:[#allocation4 + $0x114] sm:$0xf]
    %v3733 = vld [vmem:[#allocation4 + $0x118] sm:$0xff]
    %v3734 = vld [vmem:[#allocation4 + $0x120] sm:$0xff]
    %v3735 = vld [vmem:[#allocation4 + $0x128] sm:$0xf]
    %v3736 = vld [vmem:[#allocation4 + $0x12c] sm:$0xff]
    %v3737 = vld [vmem:[#allocation4 + $0x134] sm:$0xff]
    %v3738 = vld [vmem:[#allocation4 + $0x13c] sm:$0xf]
    %v3739 = vlaneseq
    %v3740 = vshrl.u32 %v3739, 7
    %v3741 = vsub.s32 6, %v3740
    %v3742 = vrot.slane %v155, %v3741
    %v3743 = vlaneseq
    %v3744 = vshrl.u32 %v3743, 7
    %v3745 = vsub.s32 6, %v3744
    %v3746 = vrot.slane %v156, %v3745
    %v3747 = vlaneseq
    %v3748 = vshrl.u32 %v3747, 7
    %v3749 = vsub.s32 6, %v3748
    %v3750 = vrot.slane %v157, %v3749
    %v3751 = vlaneseq
    %v3752 = vshrl.u32 %v3751, 7
    %v3753 = vsub.s32 6, %v3752
    %v3754 = vrot.slane %v158, %v3753
    %v3755 = vlaneseq
    %v3756 = vshrl.u32 %v3755, 7
    %v3757 = vsub.s32 6, %v3756
    %v3758 = vrot.slane %v159, %v3757
    %v3807 = vunpack.c.l.b16 %v3691
    %v3808 = vunpack.c.h.b16 %v3691
    %v3809 = vunpack.c.l.b16 %v3692
    %v3810 = vunpack.c.h.b16 %v3692
    %v3811 = vunpack.c.l.b16 %v3693
    %v3812 = vunpack.c.l.b16 %v3694
    %v3813 = vunpack.c.h.b16 %v3694
    %v3814 = vunpack.c.l.b16 %v3695
    %v3815 = vunpack.c.h.b16 %v3695
    %v3816 = vunpack.c.l.b16 %v3696
    %v3817 = vunpack.c.l.b16 %v3697
    %v3818 = vunpack.c.h.b16 %v3697
    %v3819 = vunpack.c.l.b16 %v3698
    %v3820 = vunpack.c.h.b16 %v3698
    %v3821 = vunpack.c.l.b16 %v3699
    %v3822 = vunpack.c.l.b16 %v3700
    %v3823 = vunpack.c.h.b16 %v3700
    %v3824 = vunpack.c.l.b16 %v3701
    %v3825 = vunpack.c.h.b16 %v3701
    %v3826 = vunpack.c.l.b16 %v3702
    %v3827 = vunpack.c.l.b16 %v3703
    %v3828 = vunpack.c.h.b16 %v3703
    %v3829 = vunpack.c.l.b16 %v3704
    %v3830 = vunpack.c.h.b16 %v3704
    %v3831 = vunpack.c.l.b16 %v3705
    %v3832 = vunpack.c.l.b16 %v3706
    %v3833 = vunpack.c.h.b16 %v3706
    %v3834 = vunpack.c.l.b16 %v3707
    %v3835 = vunpack.c.h.b16 %v3707
    %v3836 = vunpack.c.l.b16 %v3708
    %v3837 = vunpack.c.l.b16 %v3709
    %v3838 = vunpack.c.h.b16 %v3709
    %v3839 = vunpack.c.l.b16 %v3710
    %v3840 = vunpack.c.h.b16 %v3710
    %v3841 = vunpack.c.l.b16 %v3711
    %v3842 = vunpack.c.l.b16 %v3712
    %v3843 = vunpack.c.h.b16 %v3712
    %v3844 = vunpack.c.l.b16 %v3713
    %v3845 = vunpack.c.h.b16 %v3713
    %v3846 = vunpack.c.l.b16 %v3714
    %v3847 = vunpack.c.l.b16 %v3715
    %v3848 = vunpack.c.h.b16 %v3715
    %v3849 = vunpack.c.l.b16 %v3716
    %v3850 = vunpack.c.h.b16 %v3716
    %v3851 = vunpack.c.l.b16 %v3717
    %v3852 = vunpack.c.l.b16 %v3718
    %v3853 = vunpack.c.h.b16 %v3718
    %v3854 = vunpack.c.l.b16 %v3719
    %v3855 = vunpack.c.h.b16 %v3719
    %v3856 = vunpack.c.l.b16 %v3720
    %v3857 = vunpack.c.l.b16 %v3721
    %v3858 = vunpack.c.h.b16 %v3721
    %v3859 = vunpack.c.l.b16 %v3722
    %v3860 = vunpack.c.h.b16 %v3722
    %v3861 = vunpack.c.l.b16 %v3723
    %v3862 = vunpack.c.l.b16 %v3724
    %v3863 = vunpack.c.h.b16 %v3724
    %v3864 = vunpack.c.l.b16 %v3725
    %v3865 = vunpack.c.h.b16 %v3725
    %v3866 = vunpack.c.l.b16 %v3726
    %v3867 = vunpack.c.l.b16 %v3727
    %v3868 = vunpack.c.h.b16 %v3727
    %v3869 = vunpack.c.l.b16 %v3728
    %v3870 = vunpack.c.h.b16 %v3728
    %v3871 = vunpack.c.l.b16 %v3729
    %v3872 = vunpack.c.l.b16 %v3730
    %v3873 = vunpack.c.h.b16 %v3730
    %v3874 = vunpack.c.l.b16 %v3731
    %v3875 = vunpack.c.h.b16 %v3731
    %v3876 = vunpack.c.l.b16 %v3732
    %v3877 = vunpack.c.l.b16 %v3733
    %v3878 = vunpack.c.h.b16 %v3733
    %v3879 = vunpack.c.l.b16 %v3734
    %v3880 = vunpack.c.h.b16 %v3734
    %v3881 = vunpack.c.l.b16 %v3735
    %v3882 = vunpack.c.l.b16 %v3736
    %v3883 = vunpack.c.h.b16 %v3736
    %v3884 = vunpack.c.l.b16 %v3737
    %v3885 = vunpack.c.h.b16 %v3737
    %v3886 = vunpack.c.l.b16 %v3738
    %v3887 = vpack.c.b16 %v3812, %v3807
    %v3888 = vpack.c.b16 %v3813, %v3808
    %v3889 = vpack.c.b16 %v3814, %v3809
    %v3890 = vpack.c.b16 %v3815, %v3810
    %v3891 = vpack.c.b16 %v3816, %v3811
    %v3892 = vpack.c.b16 %v3822, %v3817
    %v3893 = vpack.c.b16 %v3823, %v3818
    %v3894 = vpack.c.b16 %v3824, %v3819
    %v3895 = vpack.c.b16 %v3825, %v3820
    %v3896 = vpack.c.b16 %v3826, %v3821
    %v3897 = vpack.c.b16 %v3832, %v3827
    %v3898 = vpack.c.b16 %v3833, %v3828
    %v3899 = vpack.c.b16 %v3834, %v3829
    %v3900 = vpack.c.b16 %v3835, %v3830
    %v3901 = vpack.c.b16 %v3836, %v3831
    %v3902 = vpack.c.b16 %v3842, %v3837
    %v3903 = vpack.c.b16 %v3843, %v3838
    %v3904 = vpack.c.b16 %v3844, %v3839
    %v3905 = vpack.c.b16 %v3845, %v3840
    %v3906 = vpack.c.b16 %v3846, %v3841
    %v3907 = vpack.c.b16 %v3852, %v3847
    %v3908 = vpack.c.b16 %v3853, %v3848
    %v3909 = vpack.c.b16 %v3854, %v3849
    %v3910 = vpack.c.b16 %v3855, %v3850
    %v3911 = vpack.c.b16 %v3856, %v3851
    %v3912 = vpack.c.b16 %v3862, %v3857
    %v3913 = vpack.c.b16 %v3863, %v3858
    %v3914 = vpack.c.b16 %v3864, %v3859
    %v3915 = vpack.c.b16 %v3865, %v3860
    %v3916 = vpack.c.b16 %v3866, %v3861
    %v3917 = vpack.c.b16 %v3872, %v3867
    %v3918 = vpack.c.b16 %v3873, %v3868
    %v3919 = vpack.c.b16 %v3874, %v3869
    %v3920 = vpack.c.b16 %v3875, %v3870
    %v3921 = vpack.c.b16 %v3876, %v3871
    %v3922 = vpack.c.b16 %v3882, %v3877
    %v3923 = vpack.c.b16 %v3883, %v3878
    %v3924 = vpack.c.b16 %v3884, %v3879
    %v3925 = vpack.c.b16 %v3885, %v3880
    %v3926 = vpack.c.b16 %v3886, %v3881
    %3967 = vmatprep.subr.bf16.mxu0 %v3923
    %3968 = vmatpush1.bf16.msra.mxu0 %v3922
    %3969 = vmatprep.subr.bf16.mxu0 %v3918
    %3970 = vmatpush1.bf16.msra.mxu0 %v3917
    %3971 = vmatprep.subr.bf16.mxu0 %v3913
    %3972 = vmatpush1.bf16.msra.mxu0 %v3912
    %3973 = vmatprep.subr.bf16.mxu0 %v3908
    %3974 = vmatpush1.bf16.msra.mxu0 %v3907
    %3975 = vmatprep.subr.bf16.mxu0 %v3903
    %3976 = vmatpush1.bf16.msra.mxu0 %v3902
    %3977 = vmatprep.subr.bf16.mxu0 %v3898
    %3978 = vmatpush1.bf16.msra.mxu0 %v3897
    %3979 = vmatprep.subr.bf16.mxu0 %v3893
    %3980 = vmatpush1.bf16.msra.mxu0 %v3892
    %3981 = vmatprep.subr.bf16.mxu0 %v3888
    %3982 = vmatpush1.bf16.msra.mxu0 %v3887
    %3983 = vmatprep.subr.bf16.mxu0 0
    %3984 = vmatpush2.bf16.msra.mxu0 0
    %3985 = vmatprep.subr.bf16.mxu0 0
    %3986 = vmatpush2.bf16.msra.mxu0 0
    %3987 = vmatprep.subr.bf16.mxu0 0
    %3988 = vmatpush2.bf16.msra.mxu0 0
    %3989 = vmatprep.subr.bf16.mxu0 0
    %3990 = vmatpush2.bf16.msra.mxu0 0
    %3991 = vmatprep.subr.bf16.mxu0 0
    %3992 = vmatpush2.bf16.msra.mxu0 0
    %3993 = vmatprep.subr.bf16.mxu0 0
    %3994 = vmatpush2.bf16.msra.mxu0 0
    %3995 = vmatprep.subr.bf16.mxu0 0
    %3996 = vmatpush2.bf16.msra.mxu0 0
    %3997 = vmatprep.subr.bf16.mxu0 0
    %3998 = vmatpush2.bf16.msra.mxu0 0
    %3999 = vmatprep.mubr.bf16.mxu0 0
    %4000 = vmatmul.mubr.bf16.gmra.mxu0 %v3686
    %v4001 = vpop.f32.mrf.mxu0
    %v4002 = vadd.f32 %v3742, %v4001
    %v4003 = vpop.f32.mrf.mxu0
    %v4004 = vadd.f32 %v3746, %v4003
    %v4005 = vpop.f32.mrf.mxu0
    %v4006 = vpop.f32.mrf.mxu0
    %4007 = vdwg.mxu0
    %4008 = vmatprep.subr.bf16.mxu0 %v3925
    %4009 = vmatpush1.bf16.msra.mxu0 %v3924
    %4010 = vmatprep.subr.bf16.mxu0 %v3920
    %4011 = vmatpush1.bf16.msra.mxu0 %v3919
    %4012 = vmatprep.subr.bf16.mxu0 %v3915
    %4013 = vmatpush1.bf16.msra.mxu0 %v3914
    %4014 = vmatprep.subr.bf16.mxu0 %v3910
    %4015 = vmatpush1.bf16.msra.mxu0 %v3909
    %4016 = vmatprep.subr.bf16.mxu0 %v3905
    %4017 = vmatpush1.bf16.msra.mxu0 %v3904
    %4018 = vmatprep.subr.bf16.mxu0 %v3900
    %4019 = vmatpush1.bf16.msra.mxu0 %v3899
    %4020 = vmatprep.subr.bf16.mxu0 %v3895
    %4021 = vmatpush1.bf16.msra.mxu0 %v3894
    %4022 = vmatprep.subr.bf16.mxu0 %v3890
    %4023 = vmatpush1.bf16.msra.mxu0 %v3889
    %4024 = vmatprep.subr.bf16.mxu0 0
    %4025 = vmatpush2.bf16.msra.mxu0 0
    %4026 = vmatprep.subr.bf16.mxu0 0
    %4027 = vmatpush2.bf16.msra.mxu0 0
    %4028 = vmatprep.subr.bf16.mxu0 0
    %4029 = vmatpush2.bf16.msra.mxu0 0
    %4030 = vmatprep.subr.bf16.mxu0 0
    %4031 = vmatpush2.bf16.msra.mxu0 0
    %4032 = vmatprep.subr.bf16.mxu0 0
    %4033 = vmatpush2.bf16.msra.mxu0 0
    %4034 = vmatprep.subr.bf16.mxu0 0
    %4035 = vmatpush2.bf16.msra.mxu0 0
    %4036 = vmatprep.subr.bf16.mxu0 0
    %4037 = vmatpush2.bf16.msra.mxu0 0
    %4038 = vmatprep.subr.bf16.mxu0 0
    %4039 = vmatpush2.bf16.msra.mxu0 0
    %4040 = vmatprep.mubr.bf16.mxu0 0
    %4041 = vmatmul.mubr.bf16.gmra.mxu0 %v3686
    %v4042 = vpop.f32.mrf.mxu0
    %v4043 = vadd.f32 %v3750, %v4042
    %v4044 = vpop.f32.mrf.mxu0
    %v4045 = vadd.f32 %v3754, %v4044
    %v4046 = vpop.f32.mrf.mxu0
    %v4047 = vpop.f32.mrf.mxu0
    %4048 = vdwg.mxu0
    %4049 = vmatprep.subr.bf16.mxu0 0
    %4050 = vmatpush1.bf16.msra.mxu0 %v3926
    %4051 = vmatprep.subr.bf16.mxu0 0
    %4052 = vmatpush1.bf16.msra.mxu0 %v3921
    %4053 = vmatprep.subr.bf16.mxu0 0
    %4054 = vmatpush1.bf16.msra.mxu0 %v3916
    %4055 = vmatprep.subr.bf16.mxu0 0
    %4056 = vmatpush1.bf16.msra.mxu0 %v3911
    %4057 = vmatprep.subr.bf16.mxu0 0
    %4058 = vmatpush1.bf16.msra.mxu0 %v3906
    %4059 = vmatprep.subr.bf16.mxu0 0
    %4060 = vmatpush1.bf16.msra.mxu0 %v3901
    %4061 = vmatprep.subr.bf16.mxu0 0
    %4062 = vmatpush1.bf16.msra.mxu0 %v3896
    %4063 = vmatprep.subr.bf16.mxu0 0
    %4064 = vmatpush1.bf16.msra.mxu0 %v3891
    %4065 = vmatprep.subr.bf16.mxu0 0
    %4066 = vmatpush2.bf16.msra.mxu0 0
    %4067 = vmatprep.subr.bf16.mxu0 0
    %4068 = vmatpush2.bf16.msra.mxu0 0
    %4069 = vmatprep.subr.bf16.mxu0 0
    %4070 = vmatpush2.bf16.msra.mxu0 0
    %4071 = vmatprep.subr.bf16.mxu0 0
    %4072 = vmatpush2.bf16.msra.mxu0 0
    %4073 = vmatprep.subr.bf16.mxu0 0
    %4074 = vmatpush2.bf16.msra.mxu0 0
    %4075 = vmatprep.subr.bf16.mxu0 0
    %4076 = vmatpush2.bf16.msra.mxu0 0
    %4077 = vmatprep.subr.bf16.mxu0 0
    %4078 = vmatpush2.bf16.msra.mxu0 0
    %4079 = vmatprep.subr.bf16.mxu0 0
    %4080 = vmatpush2.bf16.msra.mxu0 0
    %4081 = vmatprep.mubr.bf16.mxu0 0
    %4082 = vmatmul.mubr.bf16.gmra.mxu0 %v3686
    %v4083 = vpop.f32.mrf.mxu0
    %v4084 = vadd.f32 %v3758, %v4083
    %v4085 = vpop.f32.mrf.mxu0
    %v4086 = vpop.f32.mrf.mxu0
    %v4087 = vpop.f32.mrf.mxu0
    %4088 = vdwg.mxu0
    %v4089 = vrot.slane %v4002, 4
    %v4090 = vadd.f32 %v4002, %v4089
    %v4091 = vrot.slane %v4090, 2
    %v4092 = vadd.f32 %v4090, %v4091
    %v4093 = vrot.slane %v4092, 1
    %v4094 = vadd.f32 %v4092, %v4093
    %v4095 = vrot.slane %v4004, 4
    %v4096 = vadd.f32 %v4004, %v4095
    %v4097 = vrot.slane %v4096, 2
    %v4098 = vadd.f32 %v4096, %v4097
    %v4099 = vrot.slane %v4098, 1
    %v4100 = vadd.f32 %v4098, %v4099
    %v4101 = vrot.slane %v4043, 4
    %v4102 = vadd.f32 %v4043, %v4101
    %v4103 = vrot.slane %v4102, 2
    %v4104 = vadd.f32 %v4102, %v4103
    %v4105 = vrot.slane %v4104, 1
    %v4106 = vadd.f32 %v4104, %v4105
    %v4107 = vrot.slane %v4045, 4
    %v4108 = vadd.f32 %v4045, %v4107
    %v4109 = vrot.slane %v4108, 2
    %v4110 = vadd.f32 %v4108, %v4109
    %v4111 = vrot.slane %v4110, 1
    %v4112 = vadd.f32 %v4110, %v4111
    %v4113 = vrot.slane %v4084, 4
    %v4114 = vadd.f32 %v4084, %v4113
    %v4115 = vrot.slane %v4114, 2
    %v4116 = vadd.f32 %v4114, %v4115
    %v4117 = vrot.slane %v4116, 1
    %v4118 = vadd.f32 %v4116, %v4117
    %v4119 = vmul.f32 %v4094, %v855
    %v4120 = vmul.f32 %v4100, %v855
    %v4121 = vmul.f32 %v4106, %v855
    %v4122 = vmul.f32 %v4112, %v855
    %v4123 = vmul.f32 %v4118, %v855
    %v4124 = vmul.f32 %v4002, %v4002
    %v4125 = vmul.f32 %v4004, %v4004
    %v4126 = vmul.f32 %v4043, %v4043
    %v4127 = vmul.f32 %v4045, %v4045
    %v4128 = vmul.f32 %v4084, %v4084
    %v4129 = vrot.slane %v4124, 4
    %v4130 = vadd.f32 %v4124, %v4129
    %v4131 = vrot.slane %v4130, 2
    %v4132 = vadd.f32 %v4130, %v4131
    %v4133 = vrot.slane %v4132, 1
    %v4134 = vadd.f32 %v4132, %v4133
    %v4135 = vrot.slane %v4125, 4
    %v4136 = vadd.f32 %v4125, %v4135
    %v4137 = vrot.slane %v4136, 2
    %v4138 = vadd.f32 %v4136, %v4137
    %v4139 = vrot.slane %v4138, 1
    %v4140 = vadd.f32 %v4138, %v4139
    %v4141 = vrot.slane %v4126, 4
    %v4142 = vadd.f32 %v4126, %v4141
    %v4143 = vrot.slane %v4142, 2
    %v4144 = vadd.f32 %v4142, %v4143
    %v4145 = vrot.slane %v4144, 1
    %v4146 = vadd.f32 %v4144, %v4145
    %v4147 = vrot.slane %v4127, 4
    %v4148 = vadd.f32 %v4127, %v4147
    %v4149 = vrot.slane %v4148, 2
    %v4150 = vadd.f32 %v4148, %v4149
    %v4151 = vrot.slane %v4150, 1
    %v4152 = vadd.f32 %v4150, %v4151
    %v4153 = vrot.slane %v4128, 4
    %v4154 = vadd.f32 %v4128, %v4153
    %v4155 = vrot.slane %v4154, 2
    %v4156 = vadd.f32 %v4154, %v4155
    %v4157 = vrot.slane %v4156, 1
    %v4158 = vadd.f32 %v4156, %v4157
    %v4159 = vmul.f32 %v4134, %v855
    %v4160 = vmul.f32 %v4140, %v855
    %v4161 = vmul.f32 %v4146, %v855
    %v4162 = vmul.f32 %v4152, %v855
    %v4163 = vmul.f32 %v4158, %v855
    %v4164 = vmul.f32 %v4119, %v4119
    %v4165 = vmul.f32 %v4120, %v4120
    %v4166 = vmul.f32 %v4121, %v4121
    %v4167 = vmul.f32 %v4122, %v4122
    %v4168 = vmul.f32 %v4123, %v4123
    %v4169 = vsub.f32 %v4159, %v4164
    %v4170 = vsub.f32 %v4160, %v4165
    %v4171 = vsub.f32 %v4161, %v4166
    %v4172 = vsub.f32 %v4162, %v4167
    %v4173 = vsub.f32 %v4163, %v4168
    %v4174 = vadd.f32 %v4169, 1e-05
    %v4175 = vadd.f32 %v4170, 1e-05
    %v4176 = vadd.f32 %v4171, 1e-05
    %v4177 = vadd.f32 %v4172, 1e-05
    %v4178 = vadd.f32 %v4173, 1e-05
    %v4179 = vrsqrt.pop %v4174
    %v4180 = vrsqrt.pop %v4175
    %v4181 = vrsqrt.pop %v4176
    %v4182 = vrsqrt.pop %v4177
    %v4183 = vrsqrt.pop %v4178
    %v4184 = vmul.f32 %v155, %v4179
    %v4185 = vmul.f32 %v156, %v4180
    %v4186 = vmul.f32 %v157, %v4181
    %v4187 = vmul.f32 %v158, %v4182
    %v4188 = vmul.f32 %v159, %v4183
    %v4189 = vlaneseq
    %v4190 = vshrl.u32 %v4189, 7
    %v4191 = vsub.s32 7, %v4190
    %v4192 = vrot.slane %v4184, %v4191
    %v4193 = vlaneseq
    %v4194 = vshrl.u32 %v4193, 7
    %v4195 = vsub.s32 7, %v4194
    %v4196 = vrot.slane %v4185, %v4195
    %v4197 = vlaneseq
    %v4198 = vshrl.u32 %v4197, 7
    %v4199 = vsub.s32 7, %v4198
    %v4200 = vrot.slane %v4186, %v4199
    %v4201 = vlaneseq
    %v4202 = vshrl.u32 %v4201, 7
    %v4203 = vsub.s32 7, %v4202
    %v4204 = vrot.slane %v4187, %v4203
    %v4205 = vlaneseq
    %v4206 = vshrl.u32 %v4205, 7
    %v4207 = vsub.s32 7, %v4206
    %v4208 = vrot.slane %v4188, %v4207
    %v4209 = vmul.f32 %v4002, %v4192
    %v4210 = vmul.f32 %v4004, %v4196
    %v4211 = vmul.f32 %v4043, %v4200
    %v4212 = vmul.f32 %v4045, %v4204
    %v4213 = vmul.f32 %v4084, %v4208
    %v4214 = vmul.f32 %v4119, %v4184
    %v4215 = vmul.f32 %v4120, %v4185
    %v4216 = vmul.f32 %v4121, %v4186
    %v4217 = vmul.f32 %v4122, %v4187
    %v4218 = vmul.f32 %v4123, %v4188
    %v4224 = vrot.slane %v4214, 7
    %v4225 = vrot.slane %v4215, 7
    %v4226 = vrot.slane %v4216, 7
    %v4227 = vrot.slane %v4217, 7
    %v4228 = vrot.slane %v4218, 7
    %v4234 = vsub.f32 %v160, %v4224
    %v4235 = vsub.f32 %v161, %v4225
    %v4236 = vsub.f32 %v162, %v4226
    %v4237 = vsub.f32 %v163, %v4227
    %v4238 = vsub.f32 %v164, %v4228
    %v4239 = vlaneseq
    %v4240 = vshrl.u32 %v4239, 7
    %v4241 = vsub.s32 0, %v4240
    %v4242 = vrot.slane %v4234, %v4241
    %v4243 = vlaneseq
    %v4244 = vshrl.u32 %v4243, 7
    %v4245 = vsub.s32 0, %v4244
    %v4246 = vrot.slane %v4235, %v4245
    %v4247 = vlaneseq
    %v4248 = vshrl.u32 %v4247, 7
    %v4249 = vsub.s32 0, %v4248
    %v4250 = vrot.slane %v4236, %v4249
    %v4251 = vlaneseq
    %v4252 = vshrl.u32 %v4251, 7
    %v4253 = vsub.s32 0, %v4252
    %v4254 = vrot.slane %v4237, %v4253
    %v4255 = vlaneseq
    %v4256 = vshrl.u32 %v4255, 7
    %v4257 = vsub.s32 0, %v4256
    %v4258 = vrot.slane %v4238, %v4257
    %v4259 = vadd.f32 %v4209, %v4242
    %v4260 = vadd.f32 %v4210, %v4246
    %v4261 = vadd.f32 %v4211, %v4250
    %v4262 = vadd.f32 %v4212, %v4254
    %v4263 = vadd.f32 %v4213, %v4258
    %v4264 = vmin.f32 %v4259, 20.0
    %v4265 = vmin.f32 %v4260, 20.0
    %v4266 = vmin.f32 %v4261, 20.0
    %v4267 = vmin.f32 %v4262, 20.0
    %v4268 = vmin.f32 %v4263, 20.0
    %vm4269 = vcmp.gt.f32.partialorder %v4259, 20.0
    %vm4270 = vcmp.gt.f32.partialorder %v4260, 20.0
    %vm4271 = vcmp.gt.f32.partialorder %v4261, 20.0
    %vm4272 = vcmp.gt.f32.partialorder %v4262, 20.0
    %vm4273 = vcmp.gt.f32.partialorder %v4263, 20.0
    %v4274 = vmul.f32 %v4264, 1.442695
    %v4275 = vpow.pop %v4274
    %v4276 = vmul.f32 %v4265, 1.442695
    %v4277 = vpow.pop %v4276
    %v4278 = vmul.f32 %v4266, 1.442695
    %v4279 = vpow.pop %v4278
    %v4280 = vmul.f32 %v4267, 1.442695
    %v4281 = vpow.pop %v4280
    %v4282 = vmul.f32 %v4268, 1.442695
    %v4283 = vpow.pop %v4282
    %v4284 = vadd.f32 %v4275, 1.0
    %v4285 = vlog2.pop %v4284
    %v4286 = vmul.f32 %v4285, 0.6931472
    %v4287 = vmul.f32 -0.5, %v4275
    %v4288 = vadd.f32 %v4287, 1.0
    %v4289 = vmul.f32 %v4288, %v4275
    %v4290 = vand.u32 2147483647, %v4275
    %vm4291 = vcmp.lt.f32.partialorder %v4290, 0.0004427343
    %v4292 = vsel %vm4291, %v4289, %v4286
    %v4293 = vadd.f32 %v4277, 1.0
    %v4294 = vlog2.pop %v4293
    %v4295 = vmul.f32 %v4294, 0.6931472
    %v4296 = vmul.f32 -0.5, %v4277
    %v4297 = vadd.f32 %v4296, 1.0
    %v4298 = vmul.f32 %v4297, %v4277
    %v4299 = vand.u32 2147483647, %v4277
    %vm4300 = vcmp.lt.f32.partialorder %v4299, 0.0004427343
    %v4301 = vsel %vm4300, %v4298, %v4295
    %v4302 = vadd.f32 %v4279, 1.0
    %v4303 = vlog2.pop %v4302
    %v4304 = vmul.f32 %v4303, 0.6931472
    %v4305 = vmul.f32 -0.5, %v4279
    %v4306 = vadd.f32 %v4305, 1.0
    %v4307 = vmul.f32 %v4306, %v4279
    %v4308 = vand.u32 2147483647, %v4279
    %vm4309 = vcmp.lt.f32.partialorder %v4308, 0.0004427343
    %v4310 = vsel %vm4309, %v4307, %v4304
    %v4311 = vadd.f32 %v4281, 1.0
    %v4312 = vlog2.pop %v4311
    %v4313 = vmul.f32 %v4312, 0.6931472
    %v4314 = vmul.f32 -0.5, %v4281
    %v4315 = vadd.f32 %v4314, 1.0
    %v4316 = vmul.f32 %v4315, %v4281
    %v4317 = vand.u32 2147483647, %v4281
    %vm4318 = vcmp.lt.f32.partialorder %v4317, 0.0004427343
    %v4319 = vsel %vm4318, %v4316, %v4313
    %v4320 = vadd.f32 %v4283, 1.0
    %v4321 = vlog2.pop %v4320
    %v4322 = vmul.f32 %v4321, 0.6931472
    %v4323 = vmul.f32 -0.5, %v4283
    %v4324 = vadd.f32 %v4323, 1.0
    %v4325 = vmul.f32 %v4324, %v4283
    %v4326 = vand.u32 2147483647, %v4283
    %vm4327 = vcmp.lt.f32.partialorder %v4326, 0.0004427343
    %v4328 = vsel %vm4327, %v4325, %v4322
    %v4329 = vsel %vm4269, %v4259, %v4292
    %v4330 = vsel %vm4270, %v4260, %v4301
    %v4331 = vsel %vm4271, %v4261, %v4310
    %v4332 = vsel %vm4272, %v4262, %v4319
    %v4333 = vsel %vm4273, %v4263, %v4328
    %v4334 = vpack.c.bf16 %v4329, %v4329
    %v4335 = vpack.c.bf16 %v4330, %v4330
    %v4336 = vpack.c.bf16 %v4331, %v4331
    %v4337 = vpack.c.bf16 %v4332, %v4332
    %v4338 = vpack.c.bf16 %v4333, %v4333
    %s4339 = sshll.u32 %s1077, 4
    %4340 = dma.done %s131, %s4339
    %v4341 = vld [vmem:[#allocation5] sm:$0xff]
    %v4342 = vld [vmem:[#allocation5 + $0x8] sm:$0xff]
    %v4343 = vld [vmem:[#allocation5 + $0x10] sm:$0xf]
    %v4344 = vld [vmem:[#allocation5 + $0x14] sm:$0xff]
    %v4345 = vld [vmem:[#allocation5 + $0x1c] sm:$0xff]
    %v4346 = vld [vmem:[#allocation5 + $0x24] sm:$0xf]
    %v4347 = vld [vmem:[#allocation5 + $0x28] sm:$0xff]
    %v4348 = vld [vmem:[#allocation5 + $0x30] sm:$0xff]
    %v4349 = vld [vmem:[#allocation5 + $0x38] sm:$0xf]
    %v4350 = vld [vmem:[#allocation5 + $0x3c] sm:$0xff]
    %v4351 = vld [vmem:[#allocation5 + $0x44] sm:$0xff]
    %v4352 = vld [vmem:[#allocation5 + $0x4c] sm:$0xf]
    %v4353 = vld [vmem:[#allocation5 + $0x50] sm:$0xff]
    %v4354 = vld [vmem:[#allocation5 + $0x58] sm:$0xff]
    %v4355 = vld [vmem:[#allocation5 + $0x60] sm:$0xf]
    %v4356 = vld [vmem:[#allocation5 + $0x64] sm:$0xff]
    %v4357 = vld [vmem:[#allocation5 + $0x6c] sm:$0xff]
    %v4358 = vld [vmem:[#allocation5 + $0x74] sm:$0xf]
    %v4359 = vld [vmem:[#allocation5 + $0x78] sm:$0xff]
    %v4360 = vld [vmem:[#allocation5 + $0x80] sm:$0xff]
    %v4361 = vld [vmem:[#allocation5 + $0x88] sm:$0xf]
    %v4362 = vld [vmem:[#allocation5 + $0x8c] sm:$0xff]
    %v4363 = vld [vmem:[#allocation5 + $0x94] sm:$0xff]
    %v4364 = vld [vmem:[#allocation5 + $0x9c] sm:$0xf]
    %v4365 = vld [vmem:[#allocation5 + $0xa0] sm:$0xff]
    %v4366 = vld [vmem:[#allocation5 + $0xa8] sm:$0xff]
    %v4367 = vld [vmem:[#allocation5 + $0xb0] sm:$0xf]
    %v4368 = vld [vmem:[#allocation5 + $0xb4] sm:$0xff]
    %v4369 = vld [vmem:[#allocation5 + $0xbc] sm:$0xff]
    %v4370 = vld [vmem:[#allocation5 + $0xc4] sm:$0xf]
    %v4371 = vld [vmem:[#allocation5 + $0xc8] sm:$0xff]
    %v4372 = vld [vmem:[#allocation5 + $0xd0] sm:$0xff]
    %v4373 = vld [vmem:[#allocation5 + $0xd8] sm:$0xf]
    %v4374 = vld [vmem:[#allocation5 + $0xdc] sm:$0xff]
    %v4375 = vld [vmem:[#allocation5 + $0xe4] sm:$0xff]
    %v4376 = vld [vmem:[#allocation5 + $0xec] sm:$0xf]
    %v4377 = vld [vmem:[#allocation5 + $0xf0] sm:$0xff]
    %v4378 = vld [vmem:[#allocation5 + $0xf8] sm:$0xff]
    %v4379 = vld [vmem:[#allocation5 + $0x100] sm:$0xf]
    %v4380 = vld [vmem:[#allocation5 + $0x104] sm:$0xff]
    %v4381 = vld [vmem:[#allocation5 + $0x10c] sm:$0xff]
    %v4382 = vld [vmem:[#allocation5 + $0x114] sm:$0xf]
    %v4383 = vld [vmem:[#allocation5 + $0x118] sm:$0xff]
    %v4384 = vld [vmem:[#allocation5 + $0x120] sm:$0xff]
    %v4385 = vld [vmem:[#allocation5 + $0x128] sm:$0xf]
    %v4386 = vld [vmem:[#allocation5 + $0x12c] sm:$0xff]
    %v4387 = vld [vmem:[#allocation5 + $0x134] sm:$0xff]
    %v4388 = vld [vmem:[#allocation5 + $0x13c] sm:$0xf]
    %v4389 = vld [vmem:[#allocation5 + $0x140] sm:$0xff]
    %v4390 = vld [vmem:[#allocation5 + $0x148] sm:$0xff]
    %v4391 = vld [vmem:[#allocation5 + $0x150] sm:$0xf]
    %v4392 = vld [vmem:[#allocation5 + $0x154] sm:$0xff]
    %v4393 = vld [vmem:[#allocation5 + $0x15c] sm:$0xff]
    %v4394 = vld [vmem:[#allocation5 + $0x164] sm:$0xf]
    %v4395 = vld [vmem:[#allocation5 + $0x168] sm:$0xff]
    %v4396 = vld [vmem:[#allocation5 + $0x170] sm:$0xff]
    %v4397 = vld [vmem:[#allocation5 + $0x178] sm:$0xf]
    %v4398 = vld [vmem:[#allocation5 + $0x17c] sm:$0xff]
    %v4399 = vld [vmem:[#allocation5 + $0x184] sm:$0xff]
    %v4400 = vld [vmem:[#allocation5 + $0x18c] sm:$0xf]
    %v4401 = vld [vmem:[#allocation5 + $0x190] sm:$0xff]
    %v4402 = vld [vmem:[#allocation5 + $0x198] sm:$0xff]
    %v4403 = vld [vmem:[#allocation5 + $0x1a0] sm:$0xf]
    %v4404 = vld [vmem:[#allocation5 + $0x1a4] sm:$0xff]
    %v4405 = vld [vmem:[#allocation5 + $0x1ac] sm:$0xff]
    %v4406 = vld [vmem:[#allocation5 + $0x1b4] sm:$0xf]
    %v4407 = vld [vmem:[#allocation5 + $0x1b8] sm:$0xff]
    %v4408 = vld [vmem:[#allocation5 + $0x1c0] sm:$0xff]
    %v4409 = vld [vmem:[#allocation5 + $0x1c8] sm:$0xf]
    %v4410 = vld [vmem:[#allocation5 + $0x1cc] sm:$0xff]
    %v4411 = vld [vmem:[#allocation5 + $0x1d4] sm:$0xff]
    %v4412 = vld [vmem:[#allocation5 + $0x1dc] sm:$0xf]
    %v4413 = vld [vmem:[#allocation5 + $0x1e0] sm:$0xff]
    %v4414 = vld [vmem:[#allocation5 + $0x1e8] sm:$0xff]
    %v4415 = vld [vmem:[#allocation5 + $0x1f0] sm:$0xf]
    %v4416 = vld [vmem:[#allocation5 + $0x1f4] sm:$0xff]
    %v4417 = vld [vmem:[#allocation5 + $0x1fc] sm:$0xff]
    %v4418 = vld [vmem:[#allocation5 + $0x204] sm:$0xf]
    %v4419 = vld [vmem:[#allocation5 + $0x208] sm:$0xff]
    %v4420 = vld [vmem:[#allocation5 + $0x210] sm:$0xff]
    %v4421 = vld [vmem:[#allocation5 + $0x218] sm:$0xf]
    %v4422 = vld [vmem:[#allocation5 + $0x21c] sm:$0xff]
    %v4423 = vld [vmem:[#allocation5 + $0x224] sm:$0xff]
    %v4424 = vld [vmem:[#allocation5 + $0x22c] sm:$0xf]
    %v4425 = vld [vmem:[#allocation5 + $0x230] sm:$0xff]
    %v4426 = vld [vmem:[#allocation5 + $0x238] sm:$0xff]
    %v4427 = vld [vmem:[#allocation5 + $0x240] sm:$0xf]
    %v4428 = vld [vmem:[#allocation5 + $0x244] sm:$0xff]
    %v4429 = vld [vmem:[#allocation5 + $0x24c] sm:$0xff]
    %v4430 = vld [vmem:[#allocation5 + $0x254] sm:$0xf]
    %v4431 = vld [vmem:[#allocation5 + $0x258] sm:$0xff]
    %v4432 = vld [vmem:[#allocation5 + $0x260] sm:$0xff]
    %v4433 = vld [vmem:[#allocation5 + $0x268] sm:$0xf]
    %v4434 = vld [vmem:[#allocation5 + $0x26c] sm:$0xff]
    %v4435 = vld [vmem:[#allocation5 + $0x274] sm:$0xff]
    %v4436 = vld [vmem:[#allocation5 + $0x27c] sm:$0xf]
    %v4437 = vld [vmem:[#allocation5 + $0x280] sm:$0xff]
    %v4438 = vld [vmem:[#allocation5 + $0x288] sm:$0xff]
    %v4439 = vld [vmem:[#allocation5 + $0x290] sm:$0xf]
    %v4440 = vld [vmem:[#allocation5 + $0x294] sm:$0xff]
    %v4441 = vld [vmem:[#allocation5 + $0x29c] sm:$0xff]
    %v4442 = vld [vmem:[#allocation5 + $0x2a4] sm:$0xf]
    %v4443 = vld [vmem:[#allocation5 + $0x2a8] sm:$0xff]
    %v4444 = vld [vmem:[#allocation5 + $0x2b0] sm:$0xff]
    %v4445 = vld [vmem:[#allocation5 + $0x2b8] sm:$0xf]
    %v4446 = vld [vmem:[#allocation5 + $0x2bc] sm:$0xff]
    %v4447 = vld [vmem:[#allocation5 + $0x2c4] sm:$0xff]
    %v4448 = vld [vmem:[#allocation5 + $0x2cc] sm:$0xf]
    %v4449 = vld [vmem:[#allocation5 + $0x2d0] sm:$0xff]
    %v4450 = vld [vmem:[#allocation5 + $0x2d8] sm:$0xff]
    %v4451 = vld [vmem:[#allocation5 + $0x2e0] sm:$0xf]
    %v4452 = vld [vmem:[#allocation5 + $0x2e4] sm:$0xff]
    %v4453 = vld [vmem:[#allocation5 + $0x2ec] sm:$0xff]
    %v4454 = vld [vmem:[#allocation5 + $0x2f4] sm:$0xf]
    %v4455 = vld [vmem:[#allocation5 + $0x2f8] sm:$0xff]
    %v4456 = vld [vmem:[#allocation5 + $0x300] sm:$0xff]
    %v4457 = vld [vmem:[#allocation5 + $0x308] sm:$0xf]
    %v4458 = vld [vmem:[#allocation5 + $0x30c] sm:$0xff]
    %v4459 = vld [vmem:[#allocation5 + $0x314] sm:$0xff]
    %v4460 = vld [vmem:[#allocation5 + $0x31c] sm:$0xf]
    %v4461 = vld [vmem:[#allocation5 + $0x320] sm:$0xff]
    %v4462 = vld [vmem:[#allocation5 + $0x328] sm:$0xff]
    %v4463 = vld [vmem:[#allocation5 + $0x330] sm:$0xf]
    %v4464 = vld [vmem:[#allocation5 + $0x334] sm:$0xff]
    %v4465 = vld [vmem:[#allocation5 + $0x33c] sm:$0xff]
    %v4466 = vld [vmem:[#allocation5 + $0x344] sm:$0xf]
    %v4467 = vld [vmem:[#allocation5 + $0x348] sm:$0xff]
    %v4468 = vld [vmem:[#allocation5 + $0x350] sm:$0xff]
    %v4469 = vld [vmem:[#allocation5 + $0x358] sm:$0xf]
    %v4470 = vld [vmem:[#allocation5 + $0x35c] sm:$0xff]
    %v4471 = vld [vmem:[#allocation5 + $0x364] sm:$0xff]
    %v4472 = vld [vmem:[#allocation5 + $0x36c] sm:$0xf]
    %v4473 = vld [vmem:[#allocation5 + $0x370] sm:$0xff]
    %v4474 = vld [vmem:[#allocation5 + $0x378] sm:$0xff]
    %v4475 = vld [vmem:[#allocation5 + $0x380] sm:$0xf]
    %v4476 = vld [vmem:[#allocation5 + $0x384] sm:$0xff]
    %v4477 = vld [vmem:[#allocation5 + $0x38c] sm:$0xff]
    %v4478 = vld [vmem:[#allocation5 + $0x394] sm:$0xf]
    %v4479 = vld [vmem:[#allocation5 + $0x398] sm:$0xff]
    %v4480 = vld [vmem:[#allocation5 + $0x3a0] sm:$0xff]
    %v4481 = vld [vmem:[#allocation5 + $0x3a8] sm:$0xf]
    %v4482 = vld [vmem:[#allocation5 + $0x3ac] sm:$0xff]
    %v4483 = vld [vmem:[#allocation5 + $0x3b4] sm:$0xff]
    %v4484 = vld [vmem:[#allocation5 + $0x3bc] sm:$0xf]
    %v4485 = vld [vmem:[#allocation5 + $0x3c0] sm:$0xff]
    %v4486 = vld [vmem:[#allocation5 + $0x3c8] sm:$0xff]
    %v4487 = vld [vmem:[#allocation5 + $0x3d0] sm:$0xf]
    %v4488 = vld [vmem:[#allocation5 + $0x3d4] sm:$0xff]
    %v4489 = vld [vmem:[#allocation5 + $0x3dc] sm:$0xff]
    %v4490 = vld [vmem:[#allocation5 + $0x3e4] sm:$0xf]
    %v4491 = vld [vmem:[#allocation5 + $0x3e8] sm:$0xff]
    %v4492 = vld [vmem:[#allocation5 + $0x3f0] sm:$0xff]
    %v4493 = vld [vmem:[#allocation5 + $0x3f8] sm:$0xf]
    %v4494 = vld [vmem:[#allocation5 + $0x3fc] sm:$0xff]
    %v4495 = vld [vmem:[#allocation5 + $0x404] sm:$0xff]
    %v4496 = vld [vmem:[#allocation5 + $0x40c] sm:$0xf]
    %v4497 = vld [vmem:[#allocation5 + $0x410] sm:$0xff]
    %v4498 = vld [vmem:[#allocation5 + $0x418] sm:$0xff]
    %v4499 = vld [vmem:[#allocation5 + $0x420] sm:$0xf]
    %v4500 = vld [vmem:[#allocation5 + $0x424] sm:$0xff]
    %v4501 = vld [vmem:[#allocation5 + $0x42c] sm:$0xff]
    %v4502 = vld [vmem:[#allocation5 + $0x434] sm:$0xf]
    %v4503 = vld [vmem:[#allocation5 + $0x438] sm:$0xff]
    %v4504 = vld [vmem:[#allocation5 + $0x440] sm:$0xff]
    %v4505 = vld [vmem:[#allocation5 + $0x448] sm:$0xf]
    %v4506 = vld [vmem:[#allocation5 + $0x44c] sm:$0xff]
    %v4507 = vld [vmem:[#allocation5 + $0x454] sm:$0xff]
    %v4508 = vld [vmem:[#allocation5 + $0x45c] sm:$0xf]
    %v4509 = vld [vmem:[#allocation5 + $0x460] sm:$0xff]
    %v4510 = vld [vmem:[#allocation5 + $0x468] sm:$0xff]
    %v4511 = vld [vmem:[#allocation5 + $0x470] sm:$0xf]
    %v4512 = vld [vmem:[#allocation5 + $0x474] sm:$0xff]
    %v4513 = vld [vmem:[#allocation5 + $0x47c] sm:$0xff]
    %v4514 = vld [vmem:[#allocation5 + $0x484] sm:$0xf]
    %v4515 = vld [vmem:[#allocation5 + $0x488] sm:$0xff]
    %v4516 = vld [vmem:[#allocation5 + $0x490] sm:$0xff]
    %v4517 = vld [vmem:[#allocation5 + $0x498] sm:$0xf]
    %v4518 = vld [vmem:[#allocation5 + $0x49c] sm:$0xff]
    %v4519 = vld [vmem:[#allocation5 + $0x4a4] sm:$0xff]
    %v4520 = vld [vmem:[#allocation5 + $0x4ac] sm:$0xf]
    %v4521 = vld [vmem:[#allocation5 + $0x4b0] sm:$0xff]
    %v4522 = vld [vmem:[#allocation5 + $0x4b8] sm:$0xff]
    %v4523 = vld [vmem:[#allocation5 + $0x4c0] sm:$0xf]
    %v4524 = vld [vmem:[#allocation5 + $0x4c4] sm:$0xff]
    %v4525 = vld [vmem:[#allocation5 + $0x4cc] sm:$0xff]
    %v4526 = vld [vmem:[#allocation5 + $0x4d4] sm:$0xf]
    %v4527 = vld [vmem:[#allocation5 + $0x4d8] sm:$0xff]
    %v4528 = vld [vmem:[#allocation5 + $0x4e0] sm:$0xff]
    %v4529 = vld [vmem:[#allocation5 + $0x4e8] sm:$0xf]
    %v4530 = vld [vmem:[#allocation5 + $0x4ec] sm:$0xff]
    %v4531 = vld [vmem:[#allocation5 + $0x4f4] sm:$0xff]
    %v4532 = vld [vmem:[#allocation5 + $0x4fc] sm:$0xf]
    %v4533 = vld [vmem:[#allocation5 + $0x500] sm:$0xff]
    %v4534 = vld [vmem:[#allocation5 + $0x508] sm:$0xff]
    %v4535 = vld [vmem:[#allocation5 + $0x510] sm:$0xf]
    %v4536 = vld [vmem:[#allocation5 + $0x514] sm:$0xff]
    %v4537 = vld [vmem:[#allocation5 + $0x51c] sm:$0xff]
    %v4538 = vld [vmem:[#allocation5 + $0x524] sm:$0xf]
    %v4539 = vld [vmem:[#allocation5 + $0x528] sm:$0xff]
    %v4540 = vld [vmem:[#allocation5 + $0x530] sm:$0xff]
    %v4541 = vld [vmem:[#allocation5 + $0x538] sm:$0xf]
    %v4542 = vld [vmem:[#allocation5 + $0x53c] sm:$0xff]
    %v4543 = vld [vmem:[#allocation5 + $0x544] sm:$0xff]
    %v4544 = vld [vmem:[#allocation5 + $0x54c] sm:$0xf]
    %v4545 = vld [vmem:[#allocation5 + $0x550] sm:$0xff]
    %v4546 = vld [vmem:[#allocation5 + $0x558] sm:$0xff]
    %v4547 = vld [vmem:[#allocation5 + $0x560] sm:$0xf]
    %v4548 = vld [vmem:[#allocation5 + $0x564] sm:$0xff]
    %v4549 = vld [vmem:[#allocation5 + $0x56c] sm:$0xff]
    %v4550 = vld [vmem:[#allocation5 + $0x574] sm:$0xf]
    %v4551 = vld [vmem:[#allocation5 + $0x578] sm:$0xff]
    %v4552 = vld [vmem:[#allocation5 + $0x580] sm:$0xff]
    %v4553 = vld [vmem:[#allocation5 + $0x588] sm:$0xf]
    %v4554 = vld [vmem:[#allocation5 + $0x58c] sm:$0xff]
    %v4555 = vld [vmem:[#allocation5 + $0x594] sm:$0xff]
    %v4556 = vld [vmem:[#allocation5 + $0x59c] sm:$0xf]
    %v4557 = vld [vmem:[#allocation5 + $0x5a0] sm:$0xff]
    %v4558 = vld [vmem:[#allocation5 + $0x5a8] sm:$0xff]
    %v4559 = vld [vmem:[#allocation5 + $0x5b0] sm:$0xf]
    %v4560 = vld [vmem:[#allocation5 + $0x5b4] sm:$0xff]
    %v4561 = vld [vmem:[#allocation5 + $0x5bc] sm:$0xff]
    %v4562 = vld [vmem:[#allocation5 + $0x5c4] sm:$0xf]
    %v4563 = vld [vmem:[#allocation5 + $0x5c8] sm:$0xff]
    %v4564 = vld [vmem:[#allocation5 + $0x5d0] sm:$0xff]
    %v4565 = vld [vmem:[#allocation5 + $0x5d8] sm:$0xf]
    %v4566 = vld [vmem:[#allocation5 + $0x5dc] sm:$0xff]
    %v4567 = vld [vmem:[#allocation5 + $0x5e4] sm:$0xff]
    %v4568 = vld [vmem:[#allocation5 + $0x5ec] sm:$0xf]
    %v4569 = vld [vmem:[#allocation5 + $0x5f0] sm:$0xff]
    %v4570 = vld [vmem:[#allocation5 + $0x5f8] sm:$0xff]
    %v4571 = vld [vmem:[#allocation5 + $0x600] sm:$0xf]
    %v4572 = vld [vmem:[#allocation5 + $0x604] sm:$0xff]
    %v4573 = vld [vmem:[#allocation5 + $0x60c] sm:$0xff]
    %v4574 = vld [vmem:[#allocation5 + $0x614] sm:$0xf]
    %v4575 = vld [vmem:[#allocation5 + $0x618] sm:$0xff]
    %v4576 = vld [vmem:[#allocation5 + $0x620] sm:$0xff]
    %v4577 = vld [vmem:[#allocation5 + $0x628] sm:$0xf]
    %v4578 = vld [vmem:[#allocation5 + $0x62c] sm:$0xff]
    %v4579 = vld [vmem:[#allocation5 + $0x634] sm:$0xff]
    %v4580 = vld [vmem:[#allocation5 + $0x63c] sm:$0xf]
    %v4581 = vlaneseq
    %v4582 = vshrl.u32 %v4581, 7
    %v4583 = vsub.s32 1, %v4582
    %v4584 = vrot.slane %v160, %v4583
    %v4585 = vlaneseq
    %v4586 = vshrl.u32 %v4585, 7
    %v4587 = vsub.s32 1, %v4586
    %v4588 = vrot.slane %v161, %v4587
    %v4589 = vlaneseq
    %v4590 = vshrl.u32 %v4589, 7
    %v4591 = vsub.s32 1, %v4590
    %v4592 = vrot.slane %v162, %v4591
    %v4593 = vlaneseq
    %v4594 = vshrl.u32 %v4593, 7
    %v4595 = vsub.s32 1, %v4594
    %v4596 = vrot.slane %v163, %v4595
    %v4597 = vlaneseq
    %v4598 = vshrl.u32 %v4597, 7
    %v4599 = vsub.s32 1, %v4598
    %v4600 = vrot.slane %v164, %v4599
    %v4841 = vunpack.c.l.b16 %v4341
    %v4842 = vunpack.c.h.b16 %v4341
    %v4843 = vunpack.c.l.b16 %v4342
    %v4844 = vunpack.c.h.b16 %v4342
    %v4845 = vunpack.c.l.b16 %v4343
    %v4846 = vunpack.c.l.b16 %v4344
    %v4847 = vunpack.c.h.b16 %v4344
    %v4848 = vunpack.c.l.b16 %v4345
    %v4849 = vunpack.c.h.b16 %v4345
    %v4850 = vunpack.c.l.b16 %v4346
    %v4851 = vunpack.c.l.b16 %v4347
    %v4852 = vunpack.c.h.b16 %v4347
    %v4853 = vunpack.c.l.b16 %v4348
    %v4854 = vunpack.c.h.b16 %v4348
    %v4855 = vunpack.c.l.b16 %v4349
    %v4856 = vunpack.c.l.b16 %v4350
    %v4857 = vunpack.c.h.b16 %v4350
    %v4858 = vunpack.c.l.b16 %v4351
    %v4859 = vunpack.c.h.b16 %v4351
    %v4860 = vunpack.c.l.b16 %v4352
    %v4861 = vunpack.c.l.b16 %v4353
    %v4862 = vunpack.c.h.b16 %v4353
    %v4863 = vunpack.c.l.b16 %v4354
    %v4864 = vunpack.c.h.b16 %v4354
    %v4865 = vunpack.c.l.b16 %v4355
    %v4866 = vunpack.c.l.b16 %v4356
    %v4867 = vunpack.c.h.b16 %v4356
    %v4868 = vunpack.c.l.b16 %v4357
    %v4869 = vunpack.c.h.b16 %v4357
    %v4870 = vunpack.c.l.b16 %v4358
    %v4871 = vunpack.c.l.b16 %v4359
    %v4872 = vunpack.c.h.b16 %v4359
    %v4873 = vunpack.c.l.b16 %v4360
    %v4874 = vunpack.c.h.b16 %v4360
    %v4875 = vunpack.c.l.b16 %v4361
    %v4876 = vunpack.c.l.b16 %v4362
    %v4877 = vunpack.c.h.b16 %v4362
    %v4878 = vunpack.c.l.b16 %v4363
    %v4879 = vunpack.c.h.b16 %v4363
    %v4880 = vunpack.c.l.b16 %v4364
    %v4881 = vunpack.c.l.b16 %v4365
    %v4882 = vunpack.c.h.b16 %v4365
    %v4883 = vunpack.c.l.b16 %v4366
    %v4884 = vunpack.c.h.b16 %v4366
    %v4885 = vunpack.c.l.b16 %v4367
    %v4886 = vunpack.c.l.b16 %v4368
    %v4887 = vunpack.c.h.b16 %v4368
    %v4888 = vunpack.c.l.b16 %v4369
    %v4889 = vunpack.c.h.b16 %v4369
    %v4890 = vunpack.c.l.b16 %v4370
    %v4891 = vunpack.c.l.b16 %v4371
    %v4892 = vunpack.c.h.b16 %v4371
    %v4893 = vunpack.c.l.b16 %v4372
    %v4894 = vunpack.c.h.b16 %v4372
    %v4895 = vunpack.c.l.b16 %v4373
    %v4896 = vunpack.c.l.b16 %v4374
    %v4897 = vunpack.c.h.b16 %v4374
    %v4898 = vunpack.c.l.b16 %v4375
    %v4899 = vunpack.c.h.b16 %v4375
    %v4900 = vunpack.c.l.b16 %v4376
    %v4901 = vunpack.c.l.b16 %v4377
    %v4902 = vunpack.c.h.b16 %v4377
    %v4903 = vunpack.c.l.b16 %v4378
    %v4904 = vunpack.c.h.b16 %v4378
    %v4905 = vunpack.c.l.b16 %v4379
    %v4906 = vunpack.c.l.b16 %v4380
    %v4907 = vunpack.c.h.b16 %v4380
    %v4908 = vunpack.c.l.b16 %v4381
    %v4909 = vunpack.c.h.b16 %v4381
    %v4910 = vunpack.c.l.b16 %v4382
    %v4911 = vunpack.c.l.b16 %v4383
    %v4912 = vunpack.c.h.b16 %v4383
    %v4913 = vunpack.c.l.b16 %v4384
    %v4914 = vunpack.c.h.b16 %v4384
    %v4915 = vunpack.c.l.b16 %v4385
    %v4916 = vunpack.c.l.b16 %v4386
    %v4917 = vunpack.c.h.b16 %v4386
    %v4918 = vunpack.c.l.b16 %v4387
    %v4919 = vunpack.c.h.b16 %v4387
    %v4920 = vunpack.c.l.b16 %v4388
    %v4921 = vunpack.c.l.b16 %v4389
    %v4922 = vunpack.c.h.b16 %v4389
    %v4923 = vunpack.c.l.b16 %v4390
    %v4924 = vunpack.c.h.b16 %v4390
    %v4925 = vunpack.c.l.b16 %v4391
    %v4926 = vunpack.c.l.b16 %v4392
    %v4927 = vunpack.c.h.b16 %v4392
    %v4928 = vunpack.c.l.b16 %v4393
    %v4929 = vunpack.c.h.b16 %v4393
    %v4930 = vunpack.c.l.b16 %v4394
    %v4931 = vunpack.c.l.b16 %v4395
    %v4932 = vunpack.c.h.b16 %v4395
    %v4933 = vunpack.c.l.b16 %v4396
    %v4934 = vunpack.c.h.b16 %v4396
    %v4935 = vunpack.c.l.b16 %v4397
    %v4936 = vunpack.c.l.b16 %v4398
    %v4937 = vunpack.c.h.b16 %v4398
    %v4938 = vunpack.c.l.b16 %v4399
    %v4939 = vunpack.c.h.b16 %v4399
    %v4940 = vunpack.c.l.b16 %v4400
    %v4941 = vunpack.c.l.b16 %v4401
    %v4942 = vunpack.c.h.b16 %v4401
    %v4943 = vunpack.c.l.b16 %v4402
    %v4944 = vunpack.c.h.b16 %v4402
    %v4945 = vunpack.c.l.b16 %v4403
    %v4946 = vunpack.c.l.b16 %v4404
    %v4947 = vunpack.c.h.b16 %v4404
    %v4948 = vunpack.c.l.b16 %v4405
    %v4949 = vunpack.c.h.b16 %v4405
    %v4950 = vunpack.c.l.b16 %v4406
    %v4951 = vunpack.c.l.b16 %v4407
    %v4952 = vunpack.c.h.b16 %v4407
    %v4953 = vunpack.c.l.b16 %v4408
    %v4954 = vunpack.c.h.b16 %v4408
    %v4955 = vunpack.c.l.b16 %v4409
    %v4956 = vunpack.c.l.b16 %v4410
    %v4957 = vunpack.c.h.b16 %v4410
    %v4958 = vunpack.c.l.b16 %v4411
    %v4959 = vunpack.c.h.b16 %v4411
    %v4960 = vunpack.c.l.b16 %v4412
    %v4961 = vunpack.c.l.b16 %v4413
    %v4962 = vunpack.c.h.b16 %v4413
    %v4963 = vunpack.c.l.b16 %v4414
    %v4964 = vunpack.c.h.b16 %v4414
    %v4965 = vunpack.c.l.b16 %v4415
    %v4966 = vunpack.c.l.b16 %v4416
    %v4967 = vunpack.c.h.b16 %v4416
    %v4968 = vunpack.c.l.b16 %v4417
    %v4969 = vunpack.c.h.b16 %v4417
    %v4970 = vunpack.c.l.b16 %v4418
    %v4971 = vunpack.c.l.b16 %v4419
    %v4972 = vunpack.c.h.b16 %v4419
    %v4973 = vunpack.c.l.b16 %v4420
    %v4974 = vunpack.c.h.b16 %v4420
    %v4975 = vunpack.c.l.b16 %v4421
    %v4976 = vunpack.c.l.b16 %v4422
    %v4977 = vunpack.c.h.b16 %v4422
    %v4978 = vunpack.c.l.b16 %v4423
    %v4979 = vunpack.c.h.b16 %v4423
    %v4980 = vunpack.c.l.b16 %v4424
    %v4981 = vunpack.c.l.b16 %v4425
    %v4982 = vunpack.c.h.b16 %v4425
    %v4983 = vunpack.c.l.b16 %v4426
    %v4984 = vunpack.c.h.b16 %v4426
    %v4985 = vunpack.c.l.b16 %v4427
    %v4986 = vunpack.c.l.b16 %v4428
    %v4987 = vunpack.c.h.b16 %v4428
    %v4988 = vunpack.c.l.b16 %v4429
    %v4989 = vunpack.c.h.b16 %v4429
    %v4990 = vunpack.c.l.b16 %v4430
    %v4991 = vunpack.c.l.b16 %v4431
    %v4992 = vunpack.c.h.b16 %v4431
    %v4993 = vunpack.c.l.b16 %v4432
    %v4994 = vunpack.c.h.b16 %v4432
    %v4995 = vunpack.c.l.b16 %v4433
    %v4996 = vunpack.c.l.b16 %v4434
    %v4997 = vunpack.c.h.b16 %v4434
    %v4998 = vunpack.c.l.b16 %v4435
    %v4999 = vunpack.c.h.b16 %v4435
    %v5000 = vunpack.c.l.b16 %v4436
    %v5001 = vunpack.c.l.b16 %v4437
    %v5002 = vunpack.c.h.b16 %v4437
    %v5003 = vunpack.c.l.b16 %v4438
    %v5004 = vunpack.c.h.b16 %v4438
    %v5005 = vunpack.c.l.b16 %v4439
    %v5006 = vunpack.c.l.b16 %v4440
    %v5007 = vunpack.c.h.b16 %v4440
    %v5008 = vunpack.c.l.b16 %v4441
    %v5009 = vunpack.c.h.b16 %v4441
    %v5010 = vunpack.c.l.b16 %v4442
    %v5011 = vunpack.c.l.b16 %v4443
    %v5012 = vunpack.c.h.b16 %v4443
    %v5013 = vunpack.c.l.b16 %v4444
    %v5014 = vunpack.c.h.b16 %v4444
    %v5015 = vunpack.c.l.b16 %v4445
    %v5016 = vunpack.c.l.b16 %v4446
    %v5017 = vunpack.c.h.b16 %v4446
    %v5018 = vunpack.c.l.b16 %v4447
    %v5019 = vunpack.c.h.b16 %v4447
    %v5020 = vunpack.c.l.b16 %v4448
    %v5021 = vunpack.c.l.b16 %v4449
    %v5022 = vunpack.c.h.b16 %v4449
    %v5023 = vunpack.c.l.b16 %v4450
    %v5024 = vunpack.c.h.b16 %v4450
    %v5025 = vunpack.c.l.b16 %v4451
    %v5026 = vunpack.c.l.b16 %v4452
    %v5027 = vunpack.c.h.b16 %v4452
    %v5028 = vunpack.c.l.b16 %v4453
    %v5029 = vunpack.c.h.b16 %v4453
    %v5030 = vunpack.c.l.b16 %v4454
    %v5031 = vunpack.c.l.b16 %v4455
    %v5032 = vunpack.c.h.b16 %v4455
    %v5033 = vunpack.c.l.b16 %v4456
    %v5034 = vunpack.c.h.b16 %v4456
    %v5035 = vunpack.c.l.b16 %v4457
    %v5036 = vunpack.c.l.b16 %v4458
    %v5037 = vunpack.c.h.b16 %v4458
    %v5038 = vunpack.c.l.b16 %v4459
    %v5039 = vunpack.c.h.b16 %v4459
    %v5040 = vunpack.c.l.b16 %v4460
    %v5041 = vunpack.c.l.b16 %v4461
    %v5042 = vunpack.c.h.b16 %v4461
    %v5043 = vunpack.c.l.b16 %v4462
    %v5044 = vunpack.c.h.b16 %v4462
    %v5045 = vunpack.c.l.b16 %v4463
    %v5046 = vunpack.c.l.b16 %v4464
    %v5047 = vunpack.c.h.b16 %v4464
    %v5048 = vunpack.c.l.b16 %v4465
    %v5049 = vunpack.c.h.b16 %v4465
    %v5050 = vunpack.c.l.b16 %v4466
    %v5051 = vunpack.c.l.b16 %v4467
    %v5052 = vunpack.c.h.b16 %v4467
    %v5053 = vunpack.c.l.b16 %v4468
    %v5054 = vunpack.c.h.b16 %v4468
    %v5055 = vunpack.c.l.b16 %v4469
    %v5056 = vunpack.c.l.b16 %v4470
    %v5057 = vunpack.c.h.b16 %v4470
    %v5058 = vunpack.c.l.b16 %v4471
    %v5059 = vunpack.c.h.b16 %v4471
    %v5060 = vunpack.c.l.b16 %v4472
    %v5061 = vunpack.c.l.b16 %v4473
    %v5062 = vunpack.c.h.b16 %v4473
    %v5063 = vunpack.c.l.b16 %v4474
    %v5064 = vunpack.c.h.b16 %v4474
    %v5065 = vunpack.c.l.b16 %v4475
    %v5066 = vunpack.c.l.b16 %v4476
    %v5067 = vunpack.c.h.b16 %v4476
    %v5068 = vunpack.c.l.b16 %v4477
    %v5069 = vunpack.c.h.b16 %v4477
    %v5070 = vunpack.c.l.b16 %v4478
    %v5071 = vunpack.c.l.b16 %v4479
    %v5072 = vunpack.c.h.b16 %v4479
    %v5073 = vunpack.c.l.b16 %v4480
    %v5074 = vunpack.c.h.b16 %v4480
    %v5075 = vunpack.c.l.b16 %v4481
    %v5076 = vunpack.c.l.b16 %v4482
    %v5077 = vunpack.c.h.b16 %v4482
    %v5078 = vunpack.c.l.b16 %v4483
    %v5079 = vunpack.c.h.b16 %v4483
    %v5080 = vunpack.c.l.b16 %v4484
    %v5081 = vunpack.c.l.b16 %v4485
    %v5082 = vunpack.c.h.b16 %v4485
    %v5083 = vunpack.c.l.b16 %v4486
    %v5084 = vunpack.c.h.b16 %v4486
    %v5085 = vunpack.c.l.b16 %v4487
    %v5086 = vunpack.c.l.b16 %v4488
    %v5087 = vunpack.c.h.b16 %v4488
    %v5088 = vunpack.c.l.b16 %v4489
    %v5089 = vunpack.c.h.b16 %v4489
    %v5090 = vunpack.c.l.b16 %v4490
    %v5091 = vunpack.c.l.b16 %v4491
    %v5092 = vunpack.c.h.b16 %v4491
    %v5093 = vunpack.c.l.b16 %v4492
    %v5094 = vunpack.c.h.b16 %v4492
    %v5095 = vunpack.c.l.b16 %v4493
    %v5096 = vunpack.c.l.b16 %v4494
    %v5097 = vunpack.c.h.b16 %v4494
    %v5098 = vunpack.c.l.b16 %v4495
    %v5099 = vunpack.c.h.b16 %v4495
    %v5100 = vunpack.c.l.b16 %v4496
    %v5101 = vunpack.c.l.b16 %v4497
    %v5102 = vunpack.c.h.b16 %v4497
    %v5103 = vunpack.c.l.b16 %v4498
    %v5104 = vunpack.c.h.b16 %v4498
    %v5105 = vunpack.c.l.b16 %v4499
    %v5106 = vunpack.c.l.b16 %v4500
    %v5107 = vunpack.c.h.b16 %v4500
    %v5108 = vunpack.c.l.b16 %v4501
    %v5109 = vunpack.c.h.b16 %v4501
    %v5110 = vunpack.c.l.b16 %v4502
    %v5111 = vunpack.c.l.b16 %v4503
    %v5112 = vunpack.c.h.b16 %v4503
    %v5113 = vunpack.c.l.b16 %v4504
    %v5114 = vunpack.c.h.b16 %v4504
    %v5115 = vunpack.c.l.b16 %v4505
    %v5116 = vunpack.c.l.b16 %v4506
    %v5117 = vunpack.c.h.b16 %v4506
    %v5118 = vunpack.c.l.b16 %v4507
    %v5119 = vunpack.c.h.b16 %v4507
    %v5120 = vunpack.c.l.b16 %v4508
    %v5121 = vunpack.c.l.b16 %v4509
    %v5122 = vunpack.c.h.b16 %v4509
    %v5123 = vunpack.c.l.b16 %v4510
    %v5124 = vunpack.c.h.b16 %v4510
    %v5125 = vunpack.c.l.b16 %v4511
    %v5126 = vunpack.c.l.b16 %v4512
    %v5127 = vunpack.c.h.b16 %v4512
    %v5128 = vunpack.c.l.b16 %v4513
    %v5129 = vunpack.c.h.b16 %v4513
    %v5130 = vunpack.c.l.b16 %v4514
    %v5131 = vunpack.c.l.b16 %v4515
    %v5132 = vunpack.c.h.b16 %v4515
    %v5133 = vunpack.c.l.b16 %v4516
    %v5134 = vunpack.c.h.b16 %v4516
    %v5135 = vunpack.c.l.b16 %v4517
    %v5136 = vunpack.c.l.b16 %v4518
    %v5137 = vunpack.c.h.b16 %v4518
    %v5138 = vunpack.c.l.b16 %v4519
    %v5139 = vunpack.c.h.b16 %v4519
    %v5140 = vunpack.c.l.b16 %v4520
    %v5141 = vunpack.c.l.b16 %v4521
    %v5142 = vunpack.c.h.b16 %v4521
    %v5143 = vunpack.c.l.b16 %v4522
    %v5144 = vunpack.c.h.b16 %v4522
    %v5145 = vunpack.c.l.b16 %v4523
    %v5146 = vunpack.c.l.b16 %v4524
    %v5147 = vunpack.c.h.b16 %v4524
    %v5148 = vunpack.c.l.b16 %v4525
    %v5149 = vunpack.c.h.b16 %v4525
    %v5150 = vunpack.c.l.b16 %v4526
    %v5151 = vunpack.c.l.b16 %v4527
    %v5152 = vunpack.c.h.b16 %v4527
    %v5153 = vunpack.c.l.b16 %v4528
    %v5154 = vunpack.c.h.b16 %v4528
    %v5155 = vunpack.c.l.b16 %v4529
    %v5156 = vunpack.c.l.b16 %v4530
    %v5157 = vunpack.c.h.b16 %v4530
    %v5158 = vunpack.c.l.b16 %v4531
    %v5159 = vunpack.c.h.b16 %v4531
    %v5160 = vunpack.c.l.b16 %v4532
    %v5161 = vunpack.c.l.b16 %v4533
    %v5162 = vunpack.c.h.b16 %v4533
    %v5163 = vunpack.c.l.b16 %v4534
    %v5164 = vunpack.c.h.b16 %v4534
    %v5165 = vunpack.c.l.b16 %v4535
    %v5166 = vunpack.c.l.b16 %v4536
    %v5167 = vunpack.c.h.b16 %v4536
    %v5168 = vunpack.c.l.b16 %v4537
    %v5169 = vunpack.c.h.b16 %v4537
    %v5170 = vunpack.c.l.b16 %v4538
    %v5171 = vunpack.c.l.b16 %v4539
    %v5172 = vunpack.c.h.b16 %v4539
    %v5173 = vunpack.c.l.b16 %v4540
    %v5174 = vunpack.c.h.b16 %v4540
    %v5175 = vunpack.c.l.b16 %v4541
    %v5176 = vunpack.c.l.b16 %v4542
    %v5177 = vunpack.c.h.b16 %v4542
    %v5178 = vunpack.c.l.b16 %v4543
    %v5179 = vunpack.c.h.b16 %v4543
    %v5180 = vunpack.c.l.b16 %v4544
    %v5181 = vunpack.c.l.b16 %v4545
    %v5182 = vunpack.c.h.b16 %v4545
    %v5183 = vunpack.c.l.b16 %v4546
    %v5184 = vunpack.c.h.b16 %v4546
    %v5185 = vunpack.c.l.b16 %v4547
    %v5186 = vunpack.c.l.b16 %v4548
    %v5187 = vunpack.c.h.b16 %v4548
    %v5188 = vunpack.c.l.b16 %v4549
    %v5189 = vunpack.c.h.b16 %v4549
    %v5190 = vunpack.c.l.b16 %v4550
    %v5191 = vunpack.c.l.b16 %v4551
    %v5192 = vunpack.c.h.b16 %v4551
    %v5193 = vunpack.c.l.b16 %v4552
    %v5194 = vunpack.c.h.b16 %v4552
    %v5195 = vunpack.c.l.b16 %v4553
    %v5196 = vunpack.c.l.b16 %v4554
    %v5197 = vunpack.c.h.b16 %v4554
    %v5198 = vunpack.c.l.b16 %v4555
    %v5199 = vunpack.c.h.b16 %v4555
    %v5200 = vunpack.c.l.b16 %v4556
    %v5201 = vunpack.c.l.b16 %v4557
    %v5202 = vunpack.c.h.b16 %v4557
    %v5203 = vunpack.c.l.b16 %v4558
    %v5204 = vunpack.c.h.b16 %v4558
    %v5205 = vunpack.c.l.b16 %v4559
    %v5206 = vunpack.c.l.b16 %v4560
    %v5207 = vunpack.c.h.b16 %v4560
    %v5208 = vunpack.c.l.b16 %v4561
    %v5209 = vunpack.c.h.b16 %v4561
    %v5210 = vunpack.c.l.b16 %v4562
    %v5211 = vunpack.c.l.b16 %v4563
    %v5212 = vunpack.c.h.b16 %v4563
    %v5213 = vunpack.c.l.b16 %v4564
    %v5214 = vunpack.c.h.b16 %v4564
    %v5215 = vunpack.c.l.b16 %v4565
    %v5216 = vunpack.c.l.b16 %v4566
    %v5217 = vunpack.c.h.b16 %v4566
    %v5218 = vunpack.c.l.b16 %v4567
    %v5219 = vunpack.c.h.b16 %v4567
    %v5220 = vunpack.c.l.b16 %v4568
    %v5221 = vunpack.c.l.b16 %v4569
    %v5222 = vunpack.c.h.b16 %v4569
    %v5223 = vunpack.c.l.b16 %v4570
    %v5224 = vunpack.c.h.b16 %v4570
    %v5225 = vunpack.c.l.b16 %v4571
    %v5226 = vunpack.c.l.b16 %v4572
    %v5227 = vunpack.c.h.b16 %v4572
    %v5228 = vunpack.c.l.b16 %v4573
    %v5229 = vunpack.c.h.b16 %v4573
    %v5230 = vunpack.c.l.b16 %v4574
    %v5231 = vunpack.c.l.b16 %v4575
    %v5232 = vunpack.c.h.b16 %v4575
    %v5233 = vunpack.c.l.b16 %v4576
    %v5234 = vunpack.c.h.b16 %v4576
    %v5235 = vunpack.c.l.b16 %v4577
    %v5236 = vunpack.c.l.b16 %v4578
    %v5237 = vunpack.c.h.b16 %v4578
    %v5238 = vunpack.c.l.b16 %v4579
    %v5239 = vunpack.c.h.b16 %v4579
    %v5240 = vunpack.c.l.b16 %v4580
    %v5241 = vpack.c.b16 %v4846, %v4841
    %v5242 = vpack.c.b16 %v4847, %v4842
    %v5243 = vpack.c.b16 %v4848, %v4843
    %v5244 = vpack.c.b16 %v4849, %v4844
    %v5245 = vpack.c.b16 %v4850, %v4845
    %v5246 = vpack.c.b16 %v4856, %v4851
    %v5247 = vpack.c.b16 %v4857, %v4852
    %v5248 = vpack.c.b16 %v4858, %v4853
    %v5249 = vpack.c.b16 %v4859, %v4854
    %v5250 = vpack.c.b16 %v4860, %v4855
    %v5251 = vpack.c.b16 %v4866, %v4861
    %v5252 = vpack.c.b16 %v4867, %v4862
    %v5253 = vpack.c.b16 %v4868, %v4863
    %v5254 = vpack.c.b16 %v4869, %v4864
    %v5255 = vpack.c.b16 %v4870, %v4865
    %v5256 = vpack.c.b16 %v4876, %v4871
    %v5257 = vpack.c.b16 %v4877, %v4872
    %v5258 = vpack.c.b16 %v4878, %v4873
    %v5259 = vpack.c.b16 %v4879, %v4874
    %v5260 = vpack.c.b16 %v4880, %v4875
    %v5261 = vpack.c.b16 %v4886, %v4881
    %v5262 = vpack.c.b16 %v4887, %v4882
    %v5263 = vpack.c.b16 %v4888, %v4883
    %v5264 = vpack.c.b16 %v4889, %v4884
    %v5265 = vpack.c.b16 %v4890, %v4885
    %v5266 = vpack.c.b16 %v4896, %v4891
    %v5267 = vpack.c.b16 %v4897, %v4892
    %v5268 = vpack.c.b16 %v4898, %v4893
    %v5269 = vpack.c.b16 %v4899, %v4894
    %v5270 = vpack.c.b16 %v4900, %v4895
    %v5271 = vpack.c.b16 %v4906, %v4901
    %v5272 = vpack.c.b16 %v4907, %v4902
    %v5273 = vpack.c.b16 %v4908, %v4903
    %v5274 = vpack.c.b16 %v4909, %v4904
    %v5275 = vpack.c.b16 %v4910, %v4905
    %v5276 = vpack.c.b16 %v4916, %v4911
    %v5277 = vpack.c.b16 %v4917, %v4912
    %v5278 = vpack.c.b16 %v4918, %v4913
    %v5279 = vpack.c.b16 %v4919, %v4914
    %v5280 = vpack.c.b16 %v4920, %v4915
    %v5281 = vpack.c.b16 %v4926, %v4921
    %v5282 = vpack.c.b16 %v4927, %v4922
    %v5283 = vpack.c.b16 %v4928, %v4923
    %v5284 = vpack.c.b16 %v4929, %v4924
    %v5285 = vpack.c.b16 %v4930, %v4925
    %v5286 = vpack.c.b16 %v4936, %v4931
    %v5287 = vpack.c.b16 %v4937, %v4932
    %v5288 = vpack.c.b16 %v4938, %v4933
    %v5289 = vpack.c.b16 %v4939, %v4934
    %v5290 = vpack.c.b16 %v4940, %v4935
    %v5291 = vpack.c.b16 %v4946, %v4941
    %v5292 = vpack.c.b16 %v4947, %v4942
    %v5293 = vpack.c.b16 %v4948, %v4943
    %v5294 = vpack.c.b16 %v4949, %v4944
    %v5295 = vpack.c.b16 %v4950, %v4945
    %v5296 = vpack.c.b16 %v4956, %v4951
    %v5297 = vpack.c.b16 %v4957, %v4952
    %v5298 = vpack.c.b16 %v4958, %v4953
    %v5299 = vpack.c.b16 %v4959, %v4954
    %v5300 = vpack.c.b16 %v4960, %v4955
    %v5301 = vpack.c.b16 %v4966, %v4961
    %v5302 = vpack.c.b16 %v4967, %v4962
    %v5303 = vpack.c.b16 %v4968, %v4963
    %v5304 = vpack.c.b16 %v4969, %v4964
    %v5305 = vpack.c.b16 %v4970, %v4965
    %v5306 = vpack.c.b16 %v4976, %v4971
    %v5307 = vpack.c.b16 %v4977, %v4972
    %v5308 = vpack.c.b16 %v4978, %v4973
    %v5309 = vpack.c.b16 %v4979, %v4974
    %v5310 = vpack.c.b16 %v4980, %v4975
    %v5311 = vpack.c.b16 %v4986, %v4981
    %v5312 = vpack.c.b16 %v4987, %v4982
    %v5313 = vpack.c.b16 %v4988, %v4983
    %v5314 = vpack.c.b16 %v4989, %v4984
    %v5315 = vpack.c.b16 %v4990, %v4985
    %v5316 = vpack.c.b16 %v4996, %v4991
    %v5317 = vpack.c.b16 %v4997, %v4992
    %v5318 = vpack.c.b16 %v4998, %v4993
    %v5319 = vpack.c.b16 %v4999, %v4994
    %v5320 = vpack.c.b16 %v5000, %v4995
    %v5321 = vpack.c.b16 %v5006, %v5001
    %v5322 = vpack.c.b16 %v5007, %v5002
    %v5323 = vpack.c.b16 %v5008, %v5003
    %v5324 = vpack.c.b16 %v5009, %v5004
    %v5325 = vpack.c.b16 %v5010, %v5005
    %v5326 = vpack.c.b16 %v5016, %v5011
    %v5327 = vpack.c.b16 %v5017, %v5012
    %v5328 = vpack.c.b16 %v5018, %v5013
    %v5329 = vpack.c.b16 %v5019, %v5014
    %v5330 = vpack.c.b16 %v5020, %v5015
    %v5331 = vpack.c.b16 %v5026, %v5021
    %v5332 = vpack.c.b16 %v5027, %v5022
    %v5333 = vpack.c.b16 %v5028, %v5023
    %v5334 = vpack.c.b16 %v5029, %v5024
    %v5335 = vpack.c.b16 %v5030, %v5025
    %v5336 = vpack.c.b16 %v5036, %v5031
    %v5337 = vpack.c.b16 %v5037, %v5032
    %v5338 = vpack.c.b16 %v5038, %v5033
    %v5339 = vpack.c.b16 %v5039, %v5034
    %v5340 = vpack.c.b16 %v5040, %v5035
    %v5341 = vpack.c.b16 %v5046, %v5041
    %v5342 = vpack.c.b16 %v5047, %v5042
    %v5343 = vpack.c.b16 %v5048, %v5043
    %v5344 = vpack.c.b16 %v5049, %v5044
    %v5345 = vpack.c.b16 %v5050, %v5045
    %v5346 = vpack.c.b16 %v5056, %v5051
    %v5347 = vpack.c.b16 %v5057, %v5052
    %v5348 = vpack.c.b16 %v5058, %v5053
    %v5349 = vpack.c.b16 %v5059, %v5054
    %v5350 = vpack.c.b16 %v5060, %v5055
    %v5351 = vpack.c.b16 %v5066, %v5061
    %v5352 = vpack.c.b16 %v5067, %v5062
    %v5353 = vpack.c.b16 %v5068, %v5063
    %v5354 = vpack.c.b16 %v5069, %v5064
    %v5355 = vpack.c.b16 %v5070, %v5065
    %v5356 = vpack.c.b16 %v5076, %v5071
    %v5357 = vpack.c.b16 %v5077, %v5072
    %v5358 = vpack.c.b16 %v5078, %v5073
    %v5359 = vpack.c.b16 %v5079, %v5074
    %v5360 = vpack.c.b16 %v5080, %v5075
    %v5361 = vpack.c.b16 %v5086, %v5081
    %v5362 = vpack.c.b16 %v5087, %v5082
    %v5363 = vpack.c.b16 %v5088, %v5083
    %v5364 = vpack.c.b16 %v5089, %v5084
    %v5365 = vpack.c.b16 %v5090, %v5085
    %v5366 = vpack.c.b16 %v5096, %v5091
    %v5367 = vpack.c.b16 %v5097, %v5092
    %v5368 = vpack.c.b16 %v5098, %v5093
    %v5369 = vpack.c.b16 %v5099, %v5094
    %v5370 = vpack.c.b16 %v5100, %v5095
    %v5371 = vpack.c.b16 %v5106, %v5101
    %v5372 = vpack.c.b16 %v5107, %v5102
    %v5373 = vpack.c.b16 %v5108, %v5103
    %v5374 = vpack.c.b16 %v5109, %v5104
    %v5375 = vpack.c.b16 %v5110, %v5105
    %v5376 = vpack.c.b16 %v5116, %v5111
    %v5377 = vpack.c.b16 %v5117, %v5112
    %v5378 = vpack.c.b16 %v5118, %v5113
    %v5379 = vpack.c.b16 %v5119, %v5114
    %v5380 = vpack.c.b16 %v5120, %v5115
    %v5381 = vpack.c.b16 %v5126, %v5121
    %v5382 = vpack.c.b16 %v5127, %v5122
    %v5383 = vpack.c.b16 %v5128, %v5123
    %v5384 = vpack.c.b16 %v5129, %v5124
    %v5385 = vpack.c.b16 %v5130, %v5125
    %v5386 = vpack.c.b16 %v5136, %v5131
    %v5387 = vpack.c.b16 %v5137, %v5132
    %v5388 = vpack.c.b16 %v5138, %v5133
    %v5389 = vpack.c.b16 %v5139, %v5134
    %v5390 = vpack.c.b16 %v5140, %v5135
    %v5391 = vpack.c.b16 %v5146, %v5141
    %v5392 = vpack.c.b16 %v5147, %v5142
    %v5393 = vpack.c.b16 %v5148, %v5143
    %v5394 = vpack.c.b16 %v5149, %v5144
    %v5395 = vpack.c.b16 %v5150, %v5145
    %v5396 = vpack.c.b16 %v5156, %v5151
    %v5397 = vpack.c.b16 %v5157, %v5152
    %v5398 = vpack.c.b16 %v5158, %v5153
    %v5399 = vpack.c.b16 %v5159, %v5154
    %v5400 = vpack.c.b16 %v5160, %v5155
    %v5401 = vpack.c.b16 %v5166, %v5161
    %v5402 = vpack.c.b16 %v5167, %v5162
    %v5403 = vpack.c.b16 %v5168, %v5163
    %v5404 = vpack.c.b16 %v5169, %v5164
    %v5405 = vpack.c.b16 %v5170, %v5165
    %v5406 = vpack.c.b16 %v5176, %v5171
    %v5407 = vpack.c.b16 %v5177, %v5172
    %v5408 = vpack.c.b16 %v5178, %v5173
    %v5409 = vpack.c.b16 %v5179, %v5174
    %v5410 = vpack.c.b16 %v5180, %v5175
    %v5411 = vpack.c.b16 %v5186, %v5181
    %v5412 = vpack.c.b16 %v5187, %v5182
    %v5413 = vpack.c.b16 %v5188, %v5183
    %v5414 = vpack.c.b16 %v5189, %v5184
    %v5415 = vpack.c.b16 %v5190, %v5185
    %v5416 = vpack.c.b16 %v5196, %v5191
    %v5417 = vpack.c.b16 %v5197, %v5192
    %v5418 = vpack.c.b16 %v5198, %v5193
    %v5419 = vpack.c.b16 %v5199, %v5194
    %v5420 = vpack.c.b16 %v5200, %v5195
    %v5421 = vpack.c.b16 %v5206, %v5201
    %v5422 = vpack.c.b16 %v5207, %v5202
    %v5423 = vpack.c.b16 %v5208, %v5203
    %v5424 = vpack.c.b16 %v5209, %v5204
    %v5425 = vpack.c.b16 %v5210, %v5205
    %v5426 = vpack.c.b16 %v5216, %v5211
    %v5427 = vpack.c.b16 %v5217, %v5212
    %v5428 = vpack.c.b16 %v5218, %v5213
    %v5429 = vpack.c.b16 %v5219, %v5214
    %v5430 = vpack.c.b16 %v5220, %v5215
    %v5431 = vpack.c.b16 %v5226, %v5221
    %v5432 = vpack.c.b16 %v5227, %v5222
    %v5433 = vpack.c.b16 %v5228, %v5223
    %v5434 = vpack.c.b16 %v5229, %v5224
    %v5435 = vpack.c.b16 %v5230, %v5225
    %v5436 = vpack.c.b16 %v5236, %v5231
    %v5437 = vpack.c.b16 %v5237, %v5232
    %v5438 = vpack.c.b16 %v5238, %v5233
    %v5439 = vpack.c.b16 %v5239, %v5234
    %v5440 = vpack.c.b16 %v5240, %v5235
    %5641 = vmatprep.subr.bf16.mxu0 %v5277
    %5642 = vmatpush1.bf16.msra.mxu0 %v5276
    %5643 = vmatprep.subr.bf16.mxu0 %v5272
    %5644 = vmatpush1.bf16.msra.mxu0 %v5271
    %5645 = vmatprep.subr.bf16.mxu0 %v5267
    %5646 = vmatpush1.bf16.msra.mxu0 %v5266
    %5647 = vmatprep.subr.bf16.mxu0 %v5262
    %5648 = vmatpush1.bf16.msra.mxu0 %v5261
    %5649 = vmatprep.subr.bf16.mxu0 %v5257
    %5650 = vmatpush1.bf16.msra.mxu0 %v5256
    %5651 = vmatprep.subr.bf16.mxu0 %v5252
    %5652 = vmatpush1.bf16.msra.mxu0 %v5251
    %5653 = vmatprep.subr.bf16.mxu0 %v5247
    %5654 = vmatpush1.bf16.msra.mxu0 %v5246
    %5655 = vmatprep.subr.bf16.mxu0 %v5242
    %5656 = vmatpush1.bf16.msra.mxu0 %v5241
    %5657 = vmatprep.subr.bf16.mxu0 %v5317
    %5658 = vmatpush2.bf16.msra.mxu0 %v5316
    %5659 = vmatprep.subr.bf16.mxu0 %v5312
    %5660 = vmatpush2.bf16.msra.mxu0 %v5311
    %5661 = vmatprep.subr.bf16.mxu0 %v5307
    %5662 = vmatpush2.bf16.msra.mxu0 %v5306
    %5663 = vmatprep.subr.bf16.mxu0 %v5302
    %5664 = vmatpush2.bf16.msra.mxu0 %v5301
    %5665 = vmatprep.subr.bf16.mxu0 %v5297
    %5666 = vmatpush2.bf16.msra.mxu0 %v5296
    %5667 = vmatprep.subr.bf16.mxu0 %v5292
    %5668 = vmatpush2.bf16.msra.mxu0 %v5291
    %5669 = vmatprep.subr.bf16.mxu0 %v5287
    %5670 = vmatpush2.bf16.msra.mxu0 %v5286
    %5671 = vmatprep.subr.bf16.mxu0 %v5282
    %5672 = vmatpush2.bf16.msra.mxu0 %v5281
    %5673 = vmatprep.mubr.bf16.mxu0 %v4335
    %5674 = vmatmul.mubr.bf16.gmra.mxu0 %v4334
    %v5675 = vpop.f32.mrf.mxu0
    %v5676 = vadd.f32 %v4584, %v5675
    %v5677 = vpop.f32.mrf.mxu0
    %v5678 = vadd.f32 %v4588, %v5677
    %v5679 = vpop.f32.mrf.mxu0
    %v5680 = vpop.f32.mrf.mxu0
    %5681 = vdwg.mxu0
    %5682 = vmatprep.subr.bf16.mxu0 %v5357
    %5683 = vmatpush1.bf16.msra.mxu0 %v5356
    %5684 = vmatprep.subr.bf16.mxu0 %v5352
    %5685 = vmatpush1.bf16.msra.mxu0 %v5351
    %5686 = vmatprep.subr.bf16.mxu0 %v5347
    %5687 = vmatpush1.bf16.msra.mxu0 %v5346
    %5688 = vmatprep.subr.bf16.mxu0 %v5342
    %5689 = vmatpush1.bf16.msra.mxu0 %v5341
    %5690 = vmatprep.subr.bf16.mxu0 %v5337
    %5691 = vmatpush1.bf16.msra.mxu0 %v5336
    %5692 = vmatprep.subr.bf16.mxu0 %v5332
    %5693 = vmatpush1.bf16.msra.mxu0 %v5331
    %5694 = vmatprep.subr.bf16.mxu0 %v5327
    %5695 = vmatpush1.bf16.msra.mxu0 %v5326
    %5696 = vmatprep.subr.bf16.mxu0 %v5322
    %5697 = vmatpush1.bf16.msra.mxu0 %v5321
    %5698 = vmatprep.subr.bf16.mxu0 %v5397
    %5699 = vmatpush2.bf16.msra.mxu0 %v5396
    %5700 = vmatprep.subr.bf16.mxu0 %v5392
    %5701 = vmatpush2.bf16.msra.mxu0 %v5391
    %5702 = vmatprep.subr.bf16.mxu0 %v5387
    %5703 = vmatpush2.bf16.msra.mxu0 %v5386
    %5704 = vmatprep.subr.bf16.mxu0 %v5382
    %5705 = vmatpush2.bf16.msra.mxu0 %v5381
    %5706 = vmatprep.subr.bf16.mxu0 %v5377
    %5707 = vmatpush2.bf16.msra.mxu0 %v5376
    %5708 = vmatprep.subr.bf16.mxu0 %v5372
    %5709 = vmatpush2.bf16.msra.mxu0 %v5371
    %5710 = vmatprep.subr.bf16.mxu0 %v5367
    %5711 = vmatpush2.bf16.msra.mxu0 %v5366
    %5712 = vmatprep.subr.bf16.mxu0 %v5362
    %5713 = vmatpush2.bf16.msra.mxu0 %v5361
    %5714 = vmatprep.mubr.bf16.mxu0 %v4337
    %5715 = vmatmul.mubr.bf16.gmra.mxu0 %v4336
    %v5716 = vpop.f32.mrf.mxu0
    %v5717 = vadd.f32 %v5676, %v5716
    %v5718 = vpop.f32.mrf.mxu0
    %v5719 = vadd.f32 %v5678, %v5718
    %v5720 = vpop.f32.mrf.mxu0
    %v5721 = vpop.f32.mrf.mxu0
    %5722 = vdwg.mxu0
    %5723 = vmatprep.subr.bf16.mxu0 %v5437
    %5724 = vmatpush1.bf16.msra.mxu0 %v5436
    %5725 = vmatprep.subr.bf16.mxu0 %v5432
    %5726 = vmatpush1.bf16.msra.mxu0 %v5431
    %5727 = vmatprep.subr.bf16.mxu0 %v5427
    %5728 = vmatpush1.bf16.msra.mxu0 %v5426
    %5729 = vmatprep.subr.bf16.mxu0 %v5422
    %5730 = vmatpush1.bf16.msra.mxu0 %v5421
    %5731 = vmatprep.subr.bf16.mxu0 %v5417
    %5732 = vmatpush1.bf16.msra.mxu0 %v5416
    %5733 = vmatprep.subr.bf16.mxu0 %v5412
    %5734 = vmatpush1.bf16.msra.mxu0 %v5411
    %5735 = vmatprep.subr.bf16.mxu0 %v5407
    %5736 = vmatpush1.bf16.msra.mxu0 %v5406
    %5737 = vmatprep.subr.bf16.mxu0 %v5402
    %5738 = vmatpush1.bf16.msra.mxu0 %v5401
    %5739 = vmatprep.subr.bf16.mxu0 0
    %5740 = vmatpush2.bf16.msra.mxu0 0
    %5741 = vmatprep.subr.bf16.mxu0 0
    %5742 = vmatpush2.bf16.msra.mxu0 0
    %5743 = vmatprep.subr.bf16.mxu0 0
    %5744 = vmatpush2.bf16.msra.mxu0 0
    %5745 = vmatprep.subr.bf16.mxu0 0
    %5746 = vmatpush2.bf16.msra.mxu0 0
    %5747 = vmatprep.subr.bf16.mxu0 0
    %5748 = vmatpush2.bf16.msra.mxu0 0
    %5749 = vmatprep.subr.bf16.mxu0 0
    %5750 = vmatpush2.bf16.msra.mxu0 0
    %5751 = vmatprep.subr.bf16.mxu0 0
    %5752 = vmatpush2.bf16.msra.mxu0 0
    %5753 = vmatprep.subr.bf16.mxu0 0
    %5754 = vmatpush2.bf16.msra.mxu0 0
    %5755 = vmatprep.mubr.bf16.mxu0 0
    %5756 = vmatmul.mubr.bf16.gmra.mxu0 %v4338
    %v5757 = vpop.f32.mrf.mxu0
    %v5758 = vadd.f32 %v5717, %v5757
    %v5759 = vpop.f32.mrf.mxu0
    %v5760 = vadd.f32 %v5719, %v5759
    %v5761 = vpop.f32.mrf.mxu0
    %v5762 = vpop.f32.mrf.mxu0
    %5763 = vdwg.mxu0
    %5764 = vmatprep.subr.bf16.mxu0 %v5279
    %5765 = vmatpush1.bf16.msra.mxu0 %v5278
    %5766 = vmatprep.subr.bf16.mxu0 %v5274
    %5767 = vmatpush1.bf16.msra.mxu0 %v5273
    %5768 = vmatprep.subr.bf16.mxu0 %v5269
    %5769 = vmatpush1.bf16.msra.mxu0 %v5268
    %5770 = vmatprep.subr.bf16.mxu0 %v5264
    %5771 = vmatpush1.bf16.msra.mxu0 %v5263
    %5772 = vmatprep.subr.bf16.mxu0 %v5259
    %5773 = vmatpush1.bf16.msra.mxu0 %v5258
    %5774 = vmatprep.subr.bf16.mxu0 %v5254
    %5775 = vmatpush1.bf16.msra.mxu0 %v5253
    %5776 = vmatprep.subr.bf16.mxu0 %v5249
    %5777 = vmatpush1.bf16.msra.mxu0 %v5248
    %5778 = vmatprep.subr.bf16.mxu0 %v5244
    %5779 = vmatpush1.bf16.msra.mxu0 %v5243
    %5780 = vmatprep.subr.bf16.mxu0 %v5319
    %5781 = vmatpush2.bf16.msra.mxu0 %v5318
    %5782 = vmatprep.subr.bf16.mxu0 %v5314
    %5783 = vmatpush2.bf16.msra.mxu0 %v5313
    %5784 = vmatprep.subr.bf16.mxu0 %v5309
    %5785 = vmatpush2.bf16.msra.mxu0 %v5308
    %5786 = vmatprep.subr.bf16.mxu0 %v5304
    %5787 = vmatpush2.bf16.msra.mxu0 %v5303
    %5788 = vmatprep.subr.bf16.mxu0 %v5299
    %5789 = vmatpush2.bf16.msra.mxu0 %v5298
    %5790 = vmatprep.subr.bf16.mxu0 %v5294
    %5791 = vmatpush2.bf16.msra.mxu0 %v5293
    %5792 = vmatprep.subr.bf16.mxu0 %v5289
    %5793 = vmatpush2.bf16.msra.mxu0 %v5288
    %5794 = vmatprep.subr.bf16.mxu0 %v5284
    %5795 = vmatpush2.bf16.msra.mxu0 %v5283
    %5796 = vmatprep.mubr.bf16.mxu0 %v4335
    %5797 = vmatmul.mubr.bf16.gmra.mxu0 %v4334
    %v5798 = vpop.f32.mrf.mxu0
    %v5799 = vadd.f32 %v4592, %v5798
    %v5800 = vpop.f32.mrf.mxu0
    %v5801 = vadd.f32 %v4596, %v5800
    %v5802 = vpop.f32.mrf.mxu0
    %v5803 = vpop.f32.mrf.mxu0
    %5804 = vdwg.mxu0
    %5805 = vmatprep.subr.bf16.mxu0 %v5359
    %5806 = vmatpush1.bf16.msra.mxu0 %v5358
    %5807 = vmatprep.subr.bf16.mxu0 %v5354
    %5808 = vmatpush1.bf16.msra.mxu0 %v5353
    %5809 = vmatprep.subr.bf16.mxu0 %v5349
    %5810 = vmatpush1.bf16.msra.mxu0 %v5348
    %5811 = vmatprep.subr.bf16.mxu0 %v5344
    %5812 = vmatpush1.bf16.msra.mxu0 %v5343
    %5813 = vmatprep.subr.bf16.mxu0 %v5339
    %5814 = vmatpush1.bf16.msra.mxu0 %v5338
    %5815 = vmatprep.subr.bf16.mxu0 %v5334
    %5816 = vmatpush1.bf16.msra.mxu0 %v5333
    %5817 = vmatprep.subr.bf16.mxu0 %v5329
    %5818 = vmatpush1.bf16.msra.mxu0 %v5328
    %5819 = vmatprep.subr.bf16.mxu0 %v5324
    %5820 = vmatpush1.bf16.msra.mxu0 %v5323
    %5821 = vmatprep.subr.bf16.mxu0 %v5399
    %5822 = vmatpush2.bf16.msra.mxu0 %v5398
    %5823 = vmatprep.subr.bf16.mxu0 %v5394
    %5824 = vmatpush2.bf16.msra.mxu0 %v5393
    %5825 = vmatprep.subr.bf16.mxu0 %v5389
    %5826 = vmatpush2.bf16.msra.mxu0 %v5388
    %5827 = vmatprep.subr.bf16.mxu0 %v5384
    %5828 = vmatpush2.bf16.msra.mxu0 %v5383
    %5829 = vmatprep.subr.bf16.mxu0 %v5379
    %5830 = vmatpush2.bf16.msra.mxu0 %v5378
    %5831 = vmatprep.subr.bf16.mxu0 %v5374
    %5832 = vmatpush2.bf16.msra.mxu0 %v5373
    %5833 = vmatprep.subr.bf16.mxu0 %v5369
    %5834 = vmatpush2.bf16.msra.mxu0 %v5368
    %5835 = vmatprep.subr.bf16.mxu0 %v5364
    %5836 = vmatpush2.bf16.msra.mxu0 %v5363
    %5837 = vmatprep.mubr.bf16.mxu0 %v4337
    %5838 = vmatmul.mubr.bf16.gmra.mxu0 %v4336
    %v5839 = vpop.f32.mrf.mxu0
    %v5840 = vadd.f32 %v5799, %v5839
    %v5841 = vpop.f32.mrf.mxu0
    %v5842 = vadd.f32 %v5801, %v5841
    %v5843 = vpop.f32.mrf.mxu0
    %v5844 = vpop.f32.mrf.mxu0
    %5845 = vdwg.mxu0
    %5846 = vmatprep.subr.bf16.mxu0 %v5439
    %5847 = vmatpush1.bf16.msra.mxu0 %v5438
    %5848 = vmatprep.subr.bf16.mxu0 %v5434
    %5849 = vmatpush1.bf16.msra.mxu0 %v5433
    %5850 = vmatprep.subr.bf16.mxu0 %v5429
    %5851 = vmatpush1.bf16.msra.mxu0 %v5428
    %5852 = vmatprep.subr.bf16.mxu0 %v5424
    %5853 = vmatpush1.bf16.msra.mxu0 %v5423
    %5854 = vmatprep.subr.bf16.mxu0 %v5419
    %5855 = vmatpush1.bf16.msra.mxu0 %v5418
    %5856 = vmatprep.subr.bf16.mxu0 %v5414
    %5857 = vmatpush1.bf16.msra.mxu0 %v5413
    %5858 = vmatprep.subr.bf16.mxu0 %v5409
    %5859 = vmatpush1.bf16.msra.mxu0 %v5408
    %5860 = vmatprep.subr.bf16.mxu0 %v5404
    %5861 = vmatpush1.bf16.msra.mxu0 %v5403
    %5862 = vmatprep.subr.bf16.mxu0 0
    %5863 = vmatpush2.bf16.msra.mxu0 0
    %5864 = vmatprep.subr.bf16.mxu0 0
    %5865 = vmatpush2.bf16.msra.mxu0 0
    %5866 = vmatprep.subr.bf16.mxu0 0
    %5867 = vmatpush2.bf16.msra.mxu0 0
    %5868 = vmatprep.subr.bf16.mxu0 0
    %5869 = vmatpush2.bf16.msra.mxu0 0
    %5870 = vmatprep.subr.bf16.mxu0 0
    %5871 = vmatpush2.bf16.msra.mxu0 0
    %5872 = vmatprep.subr.bf16.mxu0 0
    %5873 = vmatpush2.bf16.msra.mxu0 0
    %5874 = vmatprep.subr.bf16.mxu0 0
    %5875 = vmatpush2.bf16.msra.mxu0 0
    %5876 = vmatprep.subr.bf16.mxu0 0
    %5877 = vmatpush2.bf16.msra.mxu0 0
    %5878 = vmatprep.mubr.bf16.mxu0 0
    %5879 = vmatmul.mubr.bf16.gmra.mxu0 %v4338
    %v5880 = vpop.f32.mrf.mxu0
    %v5881 = vadd.f32 %v5840, %v5880
    %v5882 = vpop.f32.mrf.mxu0
    %v5883 = vadd.f32 %v5842, %v5882
    %v5884 = vpop.f32.mrf.mxu0
    %v5885 = vpop.f32.mrf.mxu0
    %5886 = vdwg.mxu0
    %5887 = vmatprep.subr.bf16.mxu0 0
    %5888 = vmatpush1.bf16.msra.mxu0 %v5280
    %5889 = vmatprep.subr.bf16.mxu0 0
    %5890 = vmatpush1.bf16.msra.mxu0 %v5275
    %5891 = vmatprep.subr.bf16.mxu0 0
    %5892 = vmatpush1.bf16.msra.mxu0 %v5270
    %5893 = vmatprep.subr.bf16.mxu0 0
    %5894 = vmatpush1.bf16.msra.mxu0 %v5265
    %5895 = vmatprep.subr.bf16.mxu0 0
    %5896 = vmatpush1.bf16.msra.mxu0 %v5260
    %5897 = vmatprep.subr.bf16.mxu0 0
    %5898 = vmatpush1.bf16.msra.mxu0 %v5255
    %5899 = vmatprep.subr.bf16.mxu0 0
    %5900 = vmatpush1.bf16.msra.mxu0 %v5250
    %5901 = vmatprep.subr.bf16.mxu0 0
    %5902 = vmatpush1.bf16.msra.mxu0 %v5245
    %5903 = vmatprep.subr.bf16.mxu0 0
    %5904 = vmatpush2.bf16.msra.mxu0 %v5320
    %5905 = vmatprep.subr.bf16.mxu0 0
    %5906 = vmatpush2.bf16.msra.mxu0 %v5315
    %5907 = vmatprep.subr.bf16.mxu0 0
    %5908 = vmatpush2.bf16.msra.mxu0 %v5310
    %5909 = vmatprep.subr.bf16.mxu0 0
    %5910 = vmatpush2.bf16.msra.mxu0 %v5305
    %5911 = vmatprep.subr.bf16.mxu0 0
    %5912 = vmatpush2.bf16.msra.mxu0 %v5300
    %5913 = vmatprep.subr.bf16.mxu0 0
    %5914 = vmatpush2.bf16.msra.mxu0 %v5295
    %5915 = vmatprep.subr.bf16.mxu0 0
    %5916 = vmatpush2.bf16.msra.mxu0 %v5290
    %5917 = vmatprep.subr.bf16.mxu0 0
    %5918 = vmatpush2.bf16.msra.mxu0 %v5285
    %5919 = vmatprep.mubr.bf16.mxu0 %v4335
    %5920 = vmatmul.mubr.bf16.gmra.mxu0 %v4334
    %v5921 = vpop.f32.mrf.mxu0
    %v5922 = vadd.f32 %v4600, %v5921
    %v5923 = vpop.f32.mrf.mxu0
    %v5924 = vpop.f32.mrf.mxu0
    %v5925 = vpop.f32.mrf.mxu0
    %5926 = vdwg.mxu0
    %5927 = vmatprep.subr.bf16.mxu0 0
    %5928 = vmatpush1.bf16.msra.mxu0 %v5360
    %5929 = vmatprep.subr.bf16.mxu0 0
    %5930 = vmatpush1.bf16.msra.mxu0 %v5355
    %5931 = vmatprep.subr.bf16.mxu0 0
    %5932 = vmatpush1.bf16.msra.mxu0 %v5350
    %5933 = vmatprep.subr.bf16.mxu0 0
    %5934 = vmatpush1.bf16.msra.mxu0 %v5345
    %5935 = vmatprep.subr.bf16.mxu0 0
    %5936 = vmatpush1.bf16.msra.mxu0 %v5340
    %5937 = vmatprep.subr.bf16.mxu0 0
    %5938 = vmatpush1.bf16.msra.mxu0 %v5335
    %5939 = vmatprep.subr.bf16.mxu0 0
    %5940 = vmatpush1.bf16.msra.mxu0 %v5330
    %5941 = vmatprep.subr.bf16.mxu0 0
    %5942 = vmatpush1.bf16.msra.mxu0 %v5325
    %5943 = vmatprep.subr.bf16.mxu0 0
    %5944 = vmatpush2.bf16.msra.mxu0 %v5400
    %5945 = vmatprep.subr.bf16.mxu0 0
    %5946 = vmatpush2.bf16.msra.mxu0 %v5395
    %5947 = vmatprep.subr.bf16.mxu0 0
    %5948 = vmatpush2.bf16.msra.mxu0 %v5390
    %5949 = vmatprep.subr.bf16.mxu0 0
    %5950 = vmatpush2.bf16.msra.mxu0 %v5385
    %5951 = vmatprep.subr.bf16.mxu0 0
    %5952 = vmatpush2.bf16.msra.mxu0 %v5380
    %5953 = vmatprep.subr.bf16.mxu0 0
    %5954 = vmatpush2.bf16.msra.mxu0 %v5375
    %5955 = vmatprep.subr.bf16.mxu0 0
    %5956 = vmatpush2.bf16.msra.mxu0 %v5370
    %5957 = vmatprep.subr.bf16.mxu0 0
    %5958 = vmatpush2.bf16.msra.mxu0 %v5365
    %5959 = vmatprep.mubr.bf16.mxu0 %v4337
    %5960 = vmatmul.mubr.bf16.gmra.mxu0 %v4336
    %v5961 = vpop.f32.mrf.mxu0
    %v5962 = vadd.f32 %v5922, %v5961
    %v5963 = vpop.f32.mrf.mxu0
    %v5964 = vpop.f32.mrf.mxu0
    %v5965 = vpop.f32.mrf.mxu0
    %5966 = vdwg.mxu0
    %5967 = vmatprep.subr.bf16.mxu0 0
    %5968 = vmatpush1.bf16.msra.mxu0 %v5440
    %5969 = vmatprep.subr.bf16.mxu0 0
    %5970 = vmatpush1.bf16.msra.mxu0 %v5435
    %5971 = vmatprep.subr.bf16.mxu0 0
    %5972 = vmatpush1.bf16.msra.mxu0 %v5430
    %5973 = vmatprep.subr.bf16.mxu0 0
    %5974 = vmatpush1.bf16.msra.mxu0 %v5425
    %5975 = vmatprep.subr.bf16.mxu0 0
    %5976 = vmatpush1.bf16.msra.mxu0 %v5420
    %5977 = vmatprep.subr.bf16.mxu0 0
    %5978 = vmatpush1.bf16.msra.mxu0 %v5415
    %5979 = vmatprep.subr.bf16.mxu0 0
    %5980 = vmatpush1.bf16.msra.mxu0 %v5410
    %5981 = vmatprep.subr.bf16.mxu0 0
    %5982 = vmatpush1.bf16.msra.mxu0 %v5405
    %5983 = vmatprep.subr.bf16.mxu0 0
    %5984 = vmatpush2.bf16.msra.mxu0 0
    %5985 = vmatprep.subr.bf16.mxu0 0
    %5986 = vmatpush2.bf16.msra.mxu0 0
    %5987 = vmatprep.subr.bf16.mxu0 0
    %5988 = vmatpush2.bf16.msra.mxu0 0
    %5989 = vmatprep.subr.bf16.mxu0 0
    %5990 = vmatpush2.bf16.msra.mxu0 0
    %5991 = vmatprep.subr.bf16.mxu0 0
    %5992 = vmatpush2.bf16.msra.mxu0 0
    %5993 = vmatprep.subr.bf16.mxu0 0
    %5994 = vmatpush2.bf16.msra.mxu0 0
    %5995 = vmatprep.subr.bf16.mxu0 0
    %5996 = vmatpush2.bf16.msra.mxu0 0
    %5997 = vmatprep.subr.bf16.mxu0 0
    %5998 = vmatpush2.bf16.msra.mxu0 0
    %5999 = vmatprep.mubr.bf16.mxu0 0
    %6000 = vmatmul.mubr.bf16.gmra.mxu0 %v4338
    %v6001 = vpop.f32.mrf.mxu0
    %v6002 = vadd.f32 %v5962, %v6001
    %v6003 = vpop.f32.mrf.mxu0
    %v6004 = vpop.f32.mrf.mxu0
    %v6005 = vpop.f32.mrf.mxu0
    %6006 = vdwg.mxu0
    %v6007 = vrot.slane %v5758, 4
    %v6008 = vadd.f32 %v5758, %v6007
    %v6009 = vrot.slane %v6008, 2
    %v6010 = vadd.f32 %v6008, %v6009
    %v6011 = vrot.slane %v6010, 1
    %v6012 = vadd.f32 %v6010, %v6011
    %v6013 = vrot.slane %v5760, 4
    %v6014 = vadd.f32 %v5760, %v6013
    %v6015 = vrot.slane %v6014, 2
    %v6016 = vadd.f32 %v6014, %v6015
    %v6017 = vrot.slane %v6016, 1
    %v6018 = vadd.f32 %v6016, %v6017
    %v6019 = vrot.slane %v5881, 4
    %v6020 = vadd.f32 %v5881, %v6019
    %v6021 = vrot.slane %v6020, 2
    %v6022 = vadd.f32 %v6020, %v6021
    %v6023 = vrot.slane %v6022, 1
    %v6024 = vadd.f32 %v6022, %v6023
    %v6025 = vrot.slane %v5883, 4
    %v6026 = vadd.f32 %v5883, %v6025
    %v6027 = vrot.slane %v6026, 2
    %v6028 = vadd.f32 %v6026, %v6027
    %v6029 = vrot.slane %v6028, 1
    %v6030 = vadd.f32 %v6028, %v6029
    %v6031 = vrot.slane %v6002, 4
    %v6032 = vadd.f32 %v6002, %v6031
    %v6033 = vrot.slane %v6032, 2
    %v6034 = vadd.f32 %v6032, %v6033
    %v6035 = vrot.slane %v6034, 1
    %v6036 = vadd.f32 %v6034, %v6035
    %v6037 = vmul.f32 %v6012, %v855
    %v6038 = vmul.f32 %v6018, %v855
    %v6039 = vmul.f32 %v6024, %v855
    %v6040 = vmul.f32 %v6030, %v855
    %v6041 = vmul.f32 %v6036, %v855
    %v6042 = vmul.f32 %v5758, %v5758
    %v6043 = vmul.f32 %v5760, %v5760
    %v6044 = vmul.f32 %v5881, %v5881
    %v6045 = vmul.f32 %v5883, %v5883
    %v6046 = vmul.f32 %v6002, %v6002
    %v6047 = vrot.slane %v6042, 4
    %v6048 = vadd.f32 %v6042, %v6047
    %v6049 = vrot.slane %v6048, 2
    %v6050 = vadd.f32 %v6048, %v6049
    %v6051 = vrot.slane %v6050, 1
    %v6052 = vadd.f32 %v6050, %v6051
    %v6053 = vrot.slane %v6043, 4
    %v6054 = vadd.f32 %v6043, %v6053
    %v6055 = vrot.slane %v6054, 2
    %v6056 = vadd.f32 %v6054, %v6055
    %v6057 = vrot.slane %v6056, 1
    %v6058 = vadd.f32 %v6056, %v6057
    %v6059 = vrot.slane %v6044, 4
    %v6060 = vadd.f32 %v6044, %v6059
    %v6061 = vrot.slane %v6060, 2
    %v6062 = vadd.f32 %v6060, %v6061
    %v6063 = vrot.slane %v6062, 1
    %v6064 = vadd.f32 %v6062, %v6063
    %v6065 = vrot.slane %v6045, 4
    %v6066 = vadd.f32 %v6045, %v6065
    %v6067 = vrot.slane %v6066, 2
    %v6068 = vadd.f32 %v6066, %v6067
    %v6069 = vrot.slane %v6068, 1
    %v6070 = vadd.f32 %v6068, %v6069
    %v6071 = vrot.slane %v6046, 4
    %v6072 = vadd.f32 %v6046, %v6071
    %v6073 = vrot.slane %v6072, 2
    %v6074 = vadd.f32 %v6072, %v6073
    %v6075 = vrot.slane %v6074, 1
    %v6076 = vadd.f32 %v6074, %v6075
    %v6077 = vmul.f32 %v6052, %v855
    %v6078 = vmul.f32 %v6058, %v855
    %v6079 = vmul.f32 %v6064, %v855
    %v6080 = vmul.f32 %v6070, %v855
    %v6081 = vmul.f32 %v6076, %v855
    %v6082 = vmul.f32 %v6037, %v6037
    %v6083 = vmul.f32 %v6038, %v6038
    %v6084 = vmul.f32 %v6039, %v6039
    %v6085 = vmul.f32 %v6040, %v6040
    %v6086 = vmul.f32 %v6041, %v6041
    %v6087 = vsub.f32 %v6077, %v6082
    %v6088 = vsub.f32 %v6078, %v6083
    %v6089 = vsub.f32 %v6079, %v6084
    %v6090 = vsub.f32 %v6080, %v6085
    %v6091 = vsub.f32 %v6081, %v6086
    %v6092 = vadd.f32 %v6087, 1e-05
    %v6093 = vadd.f32 %v6088, 1e-05
    %v6094 = vadd.f32 %v6089, 1e-05
    %v6095 = vadd.f32 %v6090, 1e-05
    %v6096 = vadd.f32 %v6091, 1e-05
    %v6097 = vrsqrt.pop %v6092
    %v6098 = vrsqrt.pop %v6093
    %v6099 = vrsqrt.pop %v6094
    %v6100 = vrsqrt.pop %v6095
    %v6101 = vrsqrt.pop %v6096
    %v6102 = vmul.f32 %v160, %v6097
    %v6103 = vmul.f32 %v161, %v6098
    %v6104 = vmul.f32 %v162, %v6099
    %v6105 = vmul.f32 %v163, %v6100
    %v6106 = vmul.f32 %v164, %v6101
    %v6107 = vlaneseq
    %v6108 = vshrl.u32 %v6107, 7
    %v6109 = vsub.s32 2, %v6108
    %v6110 = vrot.slane %v6102, %v6109
    %v6111 = vlaneseq
    %v6112 = vshrl.u32 %v6111, 7
    %v6113 = vsub.s32 2, %v6112
    %v6114 = vrot.slane %v6103, %v6113
    %v6115 = vlaneseq
    %v6116 = vshrl.u32 %v6115, 7
    %v6117 = vsub.s32 2, %v6116
    %v6118 = vrot.slane %v6104, %v6117
    %v6119 = vlaneseq
    %v6120 = vshrl.u32 %v6119, 7
    %v6121 = vsub.s32 2, %v6120
    %v6122 = vrot.slane %v6105, %v6121
    %v6123 = vlaneseq
    %v6124 = vshrl.u32 %v6123, 7
    %v6125 = vsub.s32 2, %v6124
    %v6126 = vrot.slane %v6106, %v6125
    %v6127 = vmul.f32 %v5758, %v6110
    %v6128 = vmul.f32 %v5760, %v6114
    %v6129 = vmul.f32 %v5881, %v6118
    %v6130 = vmul.f32 %v5883, %v6122
    %v6131 = vmul.f32 %v6002, %v6126
    %v6132 = vmul.f32 %v6037, %v6102
    %v6133 = vmul.f32 %v6038, %v6103
    %v6134 = vmul.f32 %v6039, %v6104
    %v6135 = vmul.f32 %v6040, %v6105
    %v6136 = vmul.f32 %v6041, %v6106
    %v6142 = vrot.slane %v6132, 7
    %v6143 = vrot.slane %v6133, 7
    %v6144 = vrot.slane %v6134, 7
    %v6145 = vrot.slane %v6135, 7
    %v6146 = vrot.slane %v6136, 7
    %v6152 = vsub.f32 %v160, %v6142
    %v6153 = vsub.f32 %v161, %v6143
    %v6154 = vsub.f32 %v162, %v6144
    %v6155 = vsub.f32 %v163, %v6145
    %v6156 = vsub.f32 %v164, %v6146
    %v6157 = vlaneseq
    %v6158 = vshrl.u32 %v6157, 7
    %v6159 = vsub.s32 3, %v6158
    %v6160 = vrot.slane %v6152, %v6159
    %v6161 = vlaneseq
    %v6162 = vshrl.u32 %v6161, 7
    %v6163 = vsub.s32 3, %v6162
    %v6164 = vrot.slane %v6153, %v6163
    %v6165 = vlaneseq
    %v6166 = vshrl.u32 %v6165, 7
    %v6167 = vsub.s32 3, %v6166
    %v6168 = vrot.slane %v6154, %v6167
    %v6169 = vlaneseq
    %v6170 = vshrl.u32 %v6169, 7
    %v6171 = vsub.s32 3, %v6170
    %v6172 = vrot.slane %v6155, %v6171
    %v6173 = vlaneseq
    %v6174 = vshrl.u32 %v6173, 7
    %v6175 = vsub.s32 3, %v6174
    %v6176 = vrot.slane %v6156, %v6175
    %v6177 = vadd.f32 %v6127, %v6160
    %v6178 = vadd.f32 %v6128, %v6164
    %v6179 = vadd.f32 %v6129, %v6168
    %v6180 = vadd.f32 %v6130, %v6172
    %v6181 = vadd.f32 %v6131, %v6176
    %v6182 = vmin.f32 %v6177, 20.0
    %v6183 = vmin.f32 %v6178, 20.0
    %v6184 = vmin.f32 %v6179, 20.0
    %v6185 = vmin.f32 %v6180, 20.0
    %v6186 = vmin.f32 %v6181, 20.0
    %vm6187 = vcmp.gt.f32.partialorder %v6177, 20.0
    %vm6188 = vcmp.gt.f32.partialorder %v6178, 20.0
    %vm6189 = vcmp.gt.f32.partialorder %v6179, 20.0
    %vm6190 = vcmp.gt.f32.partialorder %v6180, 20.0
    %vm6191 = vcmp.gt.f32.partialorder %v6181, 20.0
    %v6192 = vmul.f32 %v6182, 1.442695
    %v6193 = vpow.pop %v6192
    %v6194 = vmul.f32 %v6183, 1.442695
    %v6195 = vpow.pop %v6194
    %v6196 = vmul.f32 %v6184, 1.442695
    %v6197 = vpow.pop %v6196
    %v6198 = vmul.f32 %v6185, 1.442695
    %v6199 = vpow.pop %v6198
    %v6200 = vmul.f32 %v6186, 1.442695
    %v6201 = vpow.pop %v6200
    %v6202 = vadd.f32 %v6193, 1.0
    %v6203 = vlog2.pop %v6202
    %v6204 = vmul.f32 %v6203, 0.6931472
    %v6205 = vmul.f32 -0.5, %v6193
    %v6206 = vadd.f32 %v6205, 1.0
    %v6207 = vmul.f32 %v6206, %v6193
    %v6208 = vand.u32 2147483647, %v6193
    %vm6209 = vcmp.lt.f32.partialorder %v6208, 0.0004427343
    %v6210 = vsel %vm6209, %v6207, %v6204
    %v6211 = vadd.f32 %v6195, 1.0
    %v6212 = vlog2.pop %v6211
    %v6213 = vmul.f32 %v6212, 0.6931472
    %v6214 = vmul.f32 -0.5, %v6195
    %v6215 = vadd.f32 %v6214, 1.0
    %v6216 = vmul.f32 %v6215, %v6195
    %v6217 = vand.u32 2147483647, %v6195
    %vm6218 = vcmp.lt.f32.partialorder %v6217, 0.0004427343
    %v6219 = vsel %vm6218, %v6216, %v6213
    %v6220 = vadd.f32 %v6197, 1.0
    %v6221 = vlog2.pop %v6220
    %v6222 = vmul.f32 %v6221, 0.6931472
    %v6223 = vmul.f32 -0.5, %v6197
    %v6224 = vadd.f32 %v6223, 1.0
    %v6225 = vmul.f32 %v6224, %v6197
    %v6226 = vand.u32 2147483647, %v6197
    %vm6227 = vcmp.lt.f32.partialorder %v6226, 0.0004427343
    %v6228 = vsel %vm6227, %v6225, %v6222
    %v6229 = vadd.f32 %v6199, 1.0
    %v6230 = vlog2.pop %v6229
    %v6231 = vmul.f32 %v6230, 0.6931472
    %v6232 = vmul.f32 -0.5, %v6199
    %v6233 = vadd.f32 %v6232, 1.0
    %v6234 = vmul.f32 %v6233, %v6199
    %v6235 = vand.u32 2147483647, %v6199
    %vm6236 = vcmp.lt.f32.partialorder %v6235, 0.0004427343
    %v6237 = vsel %vm6236, %v6234, %v6231
    %v6238 = vadd.f32 %v6201, 1.0
    %v6239 = vlog2.pop %v6238
    %v6240 = vmul.f32 %v6239, 0.6931472
    %v6241 = vmul.f32 -0.5, %v6201
    %v6242 = vadd.f32 %v6241, 1.0
    %v6243 = vmul.f32 %v6242, %v6201
    %v6244 = vand.u32 2147483647, %v6201
    %vm6245 = vcmp.lt.f32.partialorder %v6244, 0.0004427343
    %v6246 = vsel %vm6245, %v6243, %v6240
    %v6247 = vsel %vm6187, %v6177, %v6210
    %v6248 = vsel %vm6188, %v6178, %v6219
    %v6249 = vsel %vm6189, %v6179, %v6228
    %v6250 = vsel %vm6190, %v6180, %v6237
    %v6251 = vsel %vm6191, %v6181, %v6246
    %v6252 = vpack.c.bf16 %v6247, %v6247
    %v6253 = vpack.c.bf16 %v6248, %v6248
    %v6254 = vpack.c.bf16 %v6249, %v6249
    %v6255 = vpack.c.bf16 %v6250, %v6250
    %v6256 = vpack.c.bf16 %v6251, %v6251
    %s6257 = sshll.u32 %s2996, 4
    %6258 = dma.done %s143, %s6257
    %v6259 = vld [vmem:[%s5] sm:$0x3]
    %v6260 = vld [vmem:[#allocation6] sm:$0xff]
    %v6261 = vld [vmem:[#allocation6 + $0x8] sm:$0xff]
    %v6262 = vld [vmem:[#allocation6 + $0x10] sm:$0xff]
    %v6263 = vld [vmem:[#allocation6 + $0x18] sm:$0xff]
    %v6264 = vld [vmem:[#allocation6 + $0x20] sm:$0xff]
    %v6265 = vld [vmem:[#allocation6 + $0x28] sm:$0xff]
    %v6266 = vld [vmem:[#allocation6 + $0x30] sm:$0xff]
    %v6267 = vld [vmem:[#allocation6 + $0x38] sm:$0xff]
    %v6268 = vld [vmem:[#allocation6 + $0x40] sm:$0xff]
    %v6269 = vld [vmem:[#allocation6 + $0x48] sm:$0xff]
    %v6270 = vld [vmem:[#allocation6 + $0x50] sm:$0xff]
    %v6271 = vld [vmem:[#allocation6 + $0x58] sm:$0xff]
    %v6272 = vld [vmem:[#allocation6 + $0x60] sm:$0xff]
    %v6273 = vld [vmem:[#allocation6 + $0x68] sm:$0xff]
    %v6274 = vld [vmem:[#allocation6 + $0x70] sm:$0xff]
    %v6275 = vld [vmem:[#allocation6 + $0x78] sm:$0xff]
    %v6276 = vld [vmem:[#allocation6 + $0x80] sm:$0xff]
    %v6277 = vld [vmem:[#allocation6 + $0x88] sm:$0xff]
    %v6278 = vld [vmem:[#allocation6 + $0x90] sm:$0xff]
    %v6279 = vld [vmem:[#allocation6 + $0x98] sm:$0xff]
    %v6280 = vld [vmem:[#allocation6 + $0xa0] sm:$0xff]
    %v6281 = vld [vmem:[#allocation6 + $0xa8] sm:$0xff]
    %v6282 = vld [vmem:[#allocation6 + $0xb0] sm:$0xff]
    %v6283 = vld [vmem:[#allocation6 + $0xb8] sm:$0xff]
    %v6284 = vld [vmem:[#allocation6 + $0xc0] sm:$0xff]
    %v6285 = vld [vmem:[#allocation6 + $0xc8] sm:$0xff]
    %v6286 = vld [vmem:[#allocation6 + $0xd0] sm:$0xff]
    %v6287 = vld [vmem:[#allocation6 + $0xd8] sm:$0xff]
    %v6288 = vld [vmem:[#allocation6 + $0xe0] sm:$0xff]
    %v6289 = vld [vmem:[#allocation6 + $0xe8] sm:$0xff]
    %v6290 = vld [vmem:[#allocation6 + $0xf0] sm:$0xff]
    %v6291 = vld [vmem:[#allocation6 + $0xf8] sm:$0xff]
    %v6292 = vld [vmem:[#allocation6 + $0x100] sm:$0xff]
    %v6293 = vld [vmem:[#allocation6 + $0x108] sm:$0xff]
    %v6294 = vld [vmem:[#allocation6 + $0x110] sm:$0xff]
    %v6295 = vld [vmem:[#allocation6 + $0x118] sm:$0xff]
    %v6296 = vld [vmem:[#allocation6 + $0x120] sm:$0xff]
    %v6297 = vld [vmem:[#allocation6 + $0x128] sm:$0xff]
    %v6298 = vld [vmem:[#allocation6 + $0x130] sm:$0xff]
    %v6299 = vld [vmem:[#allocation6 + $0x138] sm:$0xff]
    %v6300 = vld [vmem:[#allocation6 + $0x140] sm:$0xff]
    %v6301 = vld [vmem:[#allocation6 + $0x148] sm:$0xff]
    %v6302 = vld [vmem:[#allocation6 + $0x150] sm:$0xff]
    %v6303 = vld [vmem:[#allocation6 + $0x158] sm:$0xff]
    %v6304 = vld [vmem:[#allocation6 + $0x160] sm:$0xff]
    %v6305 = vld [vmem:[#allocation6 + $0x168] sm:$0xff]
    %v6306 = vld [vmem:[#allocation6 + $0x170] sm:$0xff]
    %v6307 = vld [vmem:[#allocation6 + $0x178] sm:$0xff]
    %v6308 = vld [vmem:[#allocation6 + $0x180] sm:$0xff]
    %v6309 = vld [vmem:[#allocation6 + $0x188] sm:$0xff]
    %v6310 = vld [vmem:[#allocation6 + $0x190] sm:$0xff]
    %v6311 = vld [vmem:[#allocation6 + $0x198] sm:$0xff]
    %v6312 = vld [vmem:[#allocation6 + $0x1a0] sm:$0xff]
    %v6313 = vld [vmem:[#allocation6 + $0x1a8] sm:$0xff]
    %v6314 = vld [vmem:[#allocation6 + $0x1b0] sm:$0xff]
    %v6315 = vld [vmem:[#allocation6 + $0x1b8] sm:$0xff]
    %v6316 = vld [vmem:[#allocation6 + $0x1c0] sm:$0xff]
    %v6317 = vld [vmem:[#allocation6 + $0x1c8] sm:$0xff]
    %v6318 = vld [vmem:[#allocation6 + $0x1d0] sm:$0xff]
    %v6319 = vld [vmem:[#allocation6 + $0x1d8] sm:$0xff]
    %v6320 = vld [vmem:[#allocation6 + $0x1e0] sm:$0xff]
    %v6321 = vld [vmem:[#allocation6 + $0x1e8] sm:$0xff]
    %v6322 = vld [vmem:[#allocation6 + $0x1f0] sm:$0xff]
    %v6323 = vld [vmem:[#allocation6 + $0x1f8] sm:$0xff]
    %v6324 = vld [vmem:[#allocation6 + $0x200] sm:$0xff]
    %v6325 = vld [vmem:[#allocation6 + $0x208] sm:$0xff]
    %v6326 = vld [vmem:[#allocation6 + $0x210] sm:$0xff]
    %v6327 = vld [vmem:[#allocation6 + $0x218] sm:$0xff]
    %v6328 = vld [vmem:[#allocation6 + $0x220] sm:$0xff]
    %v6329 = vld [vmem:[#allocation6 + $0x228] sm:$0xff]
    %v6330 = vld [vmem:[#allocation6 + $0x230] sm:$0xff]
    %v6331 = vld [vmem:[#allocation6 + $0x238] sm:$0xff]
    %v6332 = vld [vmem:[#allocation6 + $0x240] sm:$0xff]
    %v6333 = vld [vmem:[#allocation6 + $0x248] sm:$0xff]
    %v6334 = vld [vmem:[#allocation6 + $0x250] sm:$0xff]
    %v6335 = vld [vmem:[#allocation6 + $0x258] sm:$0xff]
    %v6336 = vld [vmem:[#allocation6 + $0x260] sm:$0xff]
    %v6337 = vld [vmem:[#allocation6 + $0x268] sm:$0xff]
    %v6338 = vld [vmem:[#allocation6 + $0x270] sm:$0xff]
    %v6339 = vld [vmem:[#allocation6 + $0x278] sm:$0xff]
    %v6341 = vlaneseq
    %v6342 = vshrl.u32 %v6341, 7
    %v6343 = vsub.s32 0, %v6342
    %v6344 = vrot.slane %v6259, %v6343
    %v6345 = vlaneseq
    %v6346 = vshrl.u32 %v6345, 7
    %v6347 = vsub.s32 1, %v6346
    %v6348 = vrot.slane %v6259, %v6347
    %v6431 = vunpack.c.l.b16 %v6260
    %v6432 = vunpack.c.h.b16 %v6260
    %v6433 = vunpack.c.l.b16 %v6261
    %v6434 = vunpack.c.h.b16 %v6261
    %v6435 = vunpack.c.l.b16 %v6262
    %v6436 = vunpack.c.h.b16 %v6262
    %v6437 = vunpack.c.l.b16 %v6263
    %v6438 = vunpack.c.h.b16 %v6263
    %v6439 = vunpack.c.l.b16 %v6264
    %v6440 = vunpack.c.h.b16 %v6264
    %v6441 = vunpack.c.l.b16 %v6265
    %v6442 = vunpack.c.h.b16 %v6265
    %v6443 = vunpack.c.l.b16 %v6266
    %v6444 = vunpack.c.h.b16 %v6266
    %v6445 = vunpack.c.l.b16 %v6267
    %v6446 = vunpack.c.h.b16 %v6267
    %v6447 = vunpack.c.l.b16 %v6268
    %v6448 = vunpack.c.h.b16 %v6268
    %v6449 = vunpack.c.l.b16 %v6269
    %v6450 = vunpack.c.h.b16 %v6269
    %v6451 = vunpack.c.l.b16 %v6270
    %v6452 = vunpack.c.h.b16 %v6270
    %v6453 = vunpack.c.l.b16 %v6271
    %v6454 = vunpack.c.h.b16 %v6271
    %v6455 = vunpack.c.l.b16 %v6272
    %v6456 = vunpack.c.h.b16 %v6272
    %v6457 = vunpack.c.l.b16 %v6273
    %v6458 = vunpack.c.h.b16 %v6273
    %v6459 = vunpack.c.l.b16 %v6274
    %v6460 = vunpack.c.h.b16 %v6274
    %v6461 = vunpack.c.l.b16 %v6275
    %v6462 = vunpack.c.h.b16 %v6275
    %v6463 = vunpack.c.l.b16 %v6276
    %v6464 = vunpack.c.h.b16 %v6276
    %v6465 = vunpack.c.l.b16 %v6277
    %v6466 = vunpack.c.h.b16 %v6277
    %v6467 = vunpack.c.l.b16 %v6278
    %v6468 = vunpack.c.h.b16 %v6278
    %v6469 = vunpack.c.l.b16 %v6279
    %v6470 = vunpack.c.h.b16 %v6279
    %v6471 = vunpack.c.l.b16 %v6280
    %v6472 = vunpack.c.h.b16 %v6280
    %v6473 = vunpack.c.l.b16 %v6281
    %v6474 = vunpack.c.h.b16 %v6281
    %v6475 = vunpack.c.l.b16 %v6282
    %v6476 = vunpack.c.h.b16 %v6282
    %v6477 = vunpack.c.l.b16 %v6283
    %v6478 = vunpack.c.h.b16 %v6283
    %v6479 = vunpack.c.l.b16 %v6284
    %v6480 = vunpack.c.h.b16 %v6284
    %v6481 = vunpack.c.l.b16 %v6285
    %v6482 = vunpack.c.h.b16 %v6285
    %v6483 = vunpack.c.l.b16 %v6286
    %v6484 = vunpack.c.h.b16 %v6286
    %v6485 = vunpack.c.l.b16 %v6287
    %v6486 = vunpack.c.h.b16 %v6287
    %v6487 = vunpack.c.l.b16 %v6288
    %v6488 = vunpack.c.h.b16 %v6288
    %v6489 = vunpack.c.l.b16 %v6289
    %v6490 = vunpack.c.h.b16 %v6289
    %v6491 = vunpack.c.l.b16 %v6290
    %v6492 = vunpack.c.h.b16 %v6290
    %v6493 = vunpack.c.l.b16 %v6291
    %v6494 = vunpack.c.h.b16 %v6291
    %v6495 = vunpack.c.l.b16 %v6292
    %v6496 = vunpack.c.h.b16 %v6292
    %v6497 = vunpack.c.l.b16 %v6293
    %v6498 = vunpack.c.h.b16 %v6293
    %v6499 = vunpack.c.l.b16 %v6294
    %v6500 = vunpack.c.h.b16 %v6294
    %v6501 = vunpack.c.l.b16 %v6295
    %v6502 = vunpack.c.h.b16 %v6295
    %v6503 = vunpack.c.l.b16 %v6296
    %v6504 = vunpack.c.h.b16 %v6296
    %v6505 = vunpack.c.l.b16 %v6297
    %v6506 = vunpack.c.h.b16 %v6297
    %v6507 = vunpack.c.l.b16 %v6298
    %v6508 = vunpack.c.h.b16 %v6298
    %v6509 = vunpack.c.l.b16 %v6299
    %v6510 = vunpack.c.h.b16 %v6299
    %v6511 = vunpack.c.l.b16 %v6300
    %v6512 = vunpack.c.h.b16 %v6300
    %v6513 = vunpack.c.l.b16 %v6301
    %v6514 = vunpack.c.h.b16 %v6301
    %v6515 = vunpack.c.l.b16 %v6302
    %v6516 = vunpack.c.h.b16 %v6302
    %v6517 = vunpack.c.l.b16 %v6303
    %v6518 = vunpack.c.h.b16 %v6303
    %v6519 = vunpack.c.l.b16 %v6304
    %v6520 = vunpack.c.h.b16 %v6304
    %v6521 = vunpack.c.l.b16 %v6305
    %v6522 = vunpack.c.h.b16 %v6305
    %v6523 = vunpack.c.l.b16 %v6306
    %v6524 = vunpack.c.h.b16 %v6306
    %v6525 = vunpack.c.l.b16 %v6307
    %v6526 = vunpack.c.h.b16 %v6307
    %v6527 = vunpack.c.l.b16 %v6308
    %v6528 = vunpack.c.h.b16 %v6308
    %v6529 = vunpack.c.l.b16 %v6309
    %v6530 = vunpack.c.h.b16 %v6309
    %v6531 = vunpack.c.l.b16 %v6310
    %v6532 = vunpack.c.h.b16 %v6310
    %v6533 = vunpack.c.l.b16 %v6311
    %v6534 = vunpack.c.h.b16 %v6311
    %v6535 = vunpack.c.l.b16 %v6312
    %v6536 = vunpack.c.h.b16 %v6312
    %v6537 = vunpack.c.l.b16 %v6313
    %v6538 = vunpack.c.h.b16 %v6313
    %v6539 = vunpack.c.l.b16 %v6314
    %v6540 = vunpack.c.h.b16 %v6314
    %v6541 = vunpack.c.l.b16 %v6315
    %v6542 = vunpack.c.h.b16 %v6315
    %v6543 = vunpack.c.l.b16 %v6316
    %v6544 = vunpack.c.h.b16 %v6316
    %v6545 = vunpack.c.l.b16 %v6317
    %v6546 = vunpack.c.h.b16 %v6317
    %v6547 = vunpack.c.l.b16 %v6318
    %v6548 = vunpack.c.h.b16 %v6318
    %v6549 = vunpack.c.l.b16 %v6319
    %v6550 = vunpack.c.h.b16 %v6319
    %v6551 = vunpack.c.l.b16 %v6320
    %v6552 = vunpack.c.h.b16 %v6320
    %v6553 = vunpack.c.l.b16 %v6321
    %v6554 = vunpack.c.h.b16 %v6321
    %v6555 = vunpack.c.l.b16 %v6322
    %v6556 = vunpack.c.h.b16 %v6322
    %v6557 = vunpack.c.l.b16 %v6323
    %v6558 = vunpack.c.h.b16 %v6323
    %v6559 = vunpack.c.l.b16 %v6324
    %v6560 = vunpack.c.h.b16 %v6324
    %v6561 = vunpack.c.l.b16 %v6325
    %v6562 = vunpack.c.h.b16 %v6325
    %v6563 = vunpack.c.l.b16 %v6326
    %v6564 = vunpack.c.h.b16 %v6326
    %v6565 = vunpack.c.l.b16 %v6327
    %v6566 = vunpack.c.h.b16 %v6327
    %v6567 = vunpack.c.l.b16 %v6328
    %v6568 = vunpack.c.h.b16 %v6328
    %v6569 = vunpack.c.l.b16 %v6329
    %v6570 = vunpack.c.h.b16 %v6329
    %v6571 = vunpack.c.l.b16 %v6330
    %v6572 = vunpack.c.h.b16 %v6330
    %v6573 = vunpack.c.l.b16 %v6331
    %v6574 = vunpack.c.h.b16 %v6331
    %v6575 = vunpack.c.l.b16 %v6332
    %v6576 = vunpack.c.h.b16 %v6332
    %v6577 = vunpack.c.l.b16 %v6333
    %v6578 = vunpack.c.h.b16 %v6333
    %v6579 = vunpack.c.l.b16 %v6334
    %v6580 = vunpack.c.h.b16 %v6334
    %v6581 = vunpack.c.l.b16 %v6335
    %v6582 = vunpack.c.h.b16 %v6335
    %v6583 = vunpack.c.l.b16 %v6336
    %v6584 = vunpack.c.h.b16 %v6336
    %v6585 = vunpack.c.l.b16 %v6337
    %v6586 = vunpack.c.h.b16 %v6337
    %v6587 = vunpack.c.l.b16 %v6338
    %v6588 = vunpack.c.h.b16 %v6338
    %v6589 = vunpack.c.l.b16 %v6339
    %v6590 = vunpack.c.h.b16 %v6339
    %v6591 = vpack.c.b16 %v6433, %v6431
    %v6592 = vpack.c.b16 %v6434, %v6432
    %v6593 = vpack.c.b16 %v6437, %v6435
    %v6594 = vpack.c.b16 %v6438, %v6436
    %v6595 = vpack.c.b16 %v6441, %v6439
    %v6596 = vpack.c.b16 %v6442, %v6440
    %v6597 = vpack.c.b16 %v6445, %v6443
    %v6598 = vpack.c.b16 %v6446, %v6444
    %v6599 = vpack.c.b16 %v6449, %v6447
    %v6600 = vpack.c.b16 %v6450, %v6448
    %v6601 = vpack.c.b16 %v6453, %v6451
    %v6602 = vpack.c.b16 %v6454, %v6452
    %v6603 = vpack.c.b16 %v6457, %v6455
    %v6604 = vpack.c.b16 %v6458, %v6456
    %v6605 = vpack.c.b16 %v6461, %v6459
    %v6606 = vpack.c.b16 %v6462, %v6460
    %v6607 = vpack.c.b16 %v6465, %v6463
    %v6608 = vpack.c.b16 %v6466, %v6464
    %v6609 = vpack.c.b16 %v6469, %v6467
    %v6610 = vpack.c.b16 %v6470, %v6468
    %v6611 = vpack.c.b16 %v6473, %v6471
    %v6612 = vpack.c.b16 %v6474, %v6472
    %v6613 = vpack.c.b16 %v6477, %v6475
    %v6614 = vpack.c.b16 %v6478, %v6476
    %v6615 = vpack.c.b16 %v6481, %v6479
    %v6616 = vpack.c.b16 %v6482, %v6480
    %v6617 = vpack.c.b16 %v6485, %v6483
    %v6618 = vpack.c.b16 %v6486, %v6484
    %v6619 = vpack.c.b16 %v6489, %v6487
    %v6620 = vpack.c.b16 %v6490, %v6488
    %v6621 = vpack.c.b16 %v6493, %v6491
    %v6622 = vpack.c.b16 %v6494, %v6492
    %v6623 = vpack.c.b16 %v6497, %v6495
    %v6624 = vpack.c.b16 %v6498, %v6496
    %v6625 = vpack.c.b16 %v6501, %v6499
    %v6626 = vpack.c.b16 %v6502, %v6500
    %v6627 = vpack.c.b16 %v6505, %v6503
    %v6628 = vpack.c.b16 %v6506, %v6504
    %v6629 = vpack.c.b16 %v6509, %v6507
    %v6630 = vpack.c.b16 %v6510, %v6508
    %v6631 = vpack.c.b16 %v6513, %v6511
    %v6632 = vpack.c.b16 %v6514, %v6512
    %v6633 = vpack.c.b16 %v6517, %v6515
    %v6634 = vpack.c.b16 %v6518, %v6516
    %v6635 = vpack.c.b16 %v6521, %v6519
    %v6636 = vpack.c.b16 %v6522, %v6520
    %v6637 = vpack.c.b16 %v6525, %v6523
    %v6638 = vpack.c.b16 %v6526, %v6524
    %v6639 = vpack.c.b16 %v6529, %v6527
    %v6640 = vpack.c.b16 %v6530, %v6528
    %v6641 = vpack.c.b16 %v6533, %v6531
    %v6642 = vpack.c.b16 %v6534, %v6532
    %v6643 = vpack.c.b16 %v6537, %v6535
    %v6644 = vpack.c.b16 %v6538, %v6536
    %v6645 = vpack.c.b16 %v6541, %v6539
    %v6646 = vpack.c.b16 %v6542, %v6540
    %v6647 = vpack.c.b16 %v6545, %v6543
    %v6648 = vpack.c.b16 %v6546, %v6544
    %v6649 = vpack.c.b16 %v6549, %v6547
    %v6650 = vpack.c.b16 %v6550, %v6548
    %v6651 = vpack.c.b16 %v6553, %v6551
    %v6652 = vpack.c.b16 %v6554, %v6552
    %v6653 = vpack.c.b16 %v6557, %v6555
    %v6654 = vpack.c.b16 %v6558, %v6556
    %v6655 = vpack.c.b16 %v6561, %v6559
    %v6656 = vpack.c.b16 %v6562, %v6560
    %v6657 = vpack.c.b16 %v6565, %v6563
    %v6658 = vpack.c.b16 %v6566, %v6564
    %v6659 = vpack.c.b16 %v6569, %v6567
    %v6660 = vpack.c.b16 %v6570, %v6568
    %v6661 = vpack.c.b16 %v6573, %v6571
    %v6662 = vpack.c.b16 %v6574, %v6572
    %v6663 = vpack.c.b16 %v6577, %v6575
    %v6664 = vpack.c.b16 %v6578, %v6576
    %v6665 = vpack.c.b16 %v6581, %v6579
    %v6666 = vpack.c.b16 %v6582, %v6580
    %v6667 = vpack.c.b16 %v6585, %v6583
    %v6668 = vpack.c.b16 %v6586, %v6584
    %v6669 = vpack.c.b16 %v6589, %v6587
    %v6670 = vpack.c.b16 %v6590, %v6588
    %6751 = vmatprep.subr.bf16.mxu0 %v6606
    %6752 = vmatpush1.bf16.msra.mxu0 %v6605
    %6753 = vmatprep.subr.bf16.mxu0 %v6604
    %6754 = vmatpush1.bf16.msra.mxu0 %v6603
    %6755 = vmatprep.subr.bf16.mxu0 %v6602
    %6756 = vmatpush1.bf16.msra.mxu0 %v6601
    %6757 = vmatprep.subr.bf16.mxu0 %v6600
    %6758 = vmatpush1.bf16.msra.mxu0 %v6599
    %6759 = vmatprep.subr.bf16.mxu0 %v6598
    %6760 = vmatpush1.bf16.msra.mxu0 %v6597
    %6761 = vmatprep.subr.bf16.mxu0 %v6596
    %6762 = vmatpush1.bf16.msra.mxu0 %v6595
    %6763 = vmatprep.subr.bf16.mxu0 %v6594
    %6764 = vmatpush1.bf16.msra.mxu0 %v6593
    %6765 = vmatprep.subr.bf16.mxu0 %v6592
    %6766 = vmatpush1.bf16.msra.mxu0 %v6591
    %6767 = vmatprep.subr.bf16.mxu0 %v6622
    %6768 = vmatpush2.bf16.msra.mxu0 %v6621
    %6769 = vmatprep.subr.bf16.mxu0 %v6620
    %6770 = vmatpush2.bf16.msra.mxu0 %v6619
    %6771 = vmatprep.subr.bf16.mxu0 %v6618
    %6772 = vmatpush2.bf16.msra.mxu0 %v6617
    %6773 = vmatprep.subr.bf16.mxu0 %v6616
    %6774 = vmatpush2.bf16.msra.mxu0 %v6615
    %6775 = vmatprep.subr.bf16.mxu0 %v6614
    %6776 = vmatpush2.bf16.msra.mxu0 %v6613
    %6777 = vmatprep.subr.bf16.mxu0 %v6612
    %6778 = vmatpush2.bf16.msra.mxu0 %v6611
    %6779 = vmatprep.subr.bf16.mxu0 %v6610
    %6780 = vmatpush2.bf16.msra.mxu0 %v6609
    %6781 = vmatprep.subr.bf16.mxu0 %v6608
    %6782 = vmatpush2.bf16.msra.mxu0 %v6607
    %6783 = vmatprep.mubr.bf16.mxu0 %v6253
    %6784 = vmatmul.mubr.bf16.gmra.mxu0 %v6252
    %v6785 = vpop.f32.mrf.mxu0
    %v6786 = vadd.f32 %v6344, %v6785
    %v6787 = vpop.f32.mrf.mxu0
    %v6788 = vadd.f32 %v6348, %v6787
    %v6789 = vpop.f32.mrf.mxu0
    %v6790 = vpop.f32.mrf.mxu0
    %6791 = vdwg.mxu0
    %6792 = vmatprep.subr.bf16.mxu0 %v6638
    %6793 = vmatpush1.bf16.msra.mxu0 %v6637
    %6794 = vmatprep.subr.bf16.mxu0 %v6636
    %6795 = vmatpush1.bf16.msra.mxu0 %v6635
    %6796 = vmatprep.subr.bf16.mxu0 %v6634
    %6797 = vmatpush1.bf16.msra.mxu0 %v6633
    %6798 = vmatprep.subr.bf16.mxu0 %v6632
    %6799 = vmatpush1.bf16.msra.mxu0 %v6631
    %6800 = vmatprep.subr.bf16.mxu0 %v6630
    %6801 = vmatpush1.bf16.msra.mxu0 %v6629
    %6802 = vmatprep.subr.bf16.mxu0 %v6628
    %6803 = vmatpush1.bf16.msra.mxu0 %v6627
    %6804 = vmatprep.subr.bf16.mxu0 %v6626
    %6805 = vmatpush1.bf16.msra.mxu0 %v6625
    %6806 = vmatprep.subr.bf16.mxu0 %v6624
    %6807 = vmatpush1.bf16.msra.mxu0 %v6623
    %6808 = vmatprep.subr.bf16.mxu0 %v6654
    %6809 = vmatpush2.bf16.msra.mxu0 %v6653
    %6810 = vmatprep.subr.bf16.mxu0 %v6652
    %6811 = vmatpush2.bf16.msra.mxu0 %v6651
    %6812 = vmatprep.subr.bf16.mxu0 %v6650
    %6813 = vmatpush2.bf16.msra.mxu0 %v6649
    %6814 = vmatprep.subr.bf16.mxu0 %v6648
    %6815 = vmatpush2.bf16.msra.mxu0 %v6647
    %6816 = vmatprep.subr.bf16.mxu0 %v6646
    %6817 = vmatpush2.bf16.msra.mxu0 %v6645
    %6818 = vmatprep.subr.bf16.mxu0 %v6644
    %6819 = vmatpush2.bf16.msra.mxu0 %v6643
    %6820 = vmatprep.subr.bf16.mxu0 %v6642
    %6821 = vmatpush2.bf16.msra.mxu0 %v6641
    %6822 = vmatprep.subr.bf16.mxu0 %v6640
    %6823 = vmatpush2.bf16.msra.mxu0 %v6639
    %6824 = vmatprep.mubr.bf16.mxu0 %v6255
    %6825 = vmatmul.mubr.bf16.gmra.mxu0 %v6254
    %v6826 = vpop.f32.mrf.mxu0
    %v6827 = vadd.f32 %v6786, %v6826
    %v6828 = vpop.f32.mrf.mxu0
    %v6829 = vadd.f32 %v6788, %v6828
    %v6830 = vpop.f32.mrf.mxu0
    %v6831 = vpop.f32.mrf.mxu0
    %6832 = vdwg.mxu0
    %6833 = vmatprep.subr.bf16.mxu0 %v6670
    %6834 = vmatpush1.bf16.msra.mxu0 %v6669
    %6835 = vmatprep.subr.bf16.mxu0 %v6668
    %6836 = vmatpush1.bf16.msra.mxu0 %v6667
    %6837 = vmatprep.subr.bf16.mxu0 %v6666
    %6838 = vmatpush1.bf16.msra.mxu0 %v6665
    %6839 = vmatprep.subr.bf16.mxu0 %v6664
    %6840 = vmatpush1.bf16.msra.mxu0 %v6663
    %6841 = vmatprep.subr.bf16.mxu0 %v6662
    %6842 = vmatpush1.bf16.msra.mxu0 %v6661
    %6843 = vmatprep.subr.bf16.mxu0 %v6660
    %6844 = vmatpush1.bf16.msra.mxu0 %v6659
    %6845 = vmatprep.subr.bf16.mxu0 %v6658
    %6846 = vmatpush1.bf16.msra.mxu0 %v6657
    %6847 = vmatprep.subr.bf16.mxu0 %v6656
    %6848 = vmatpush1.bf16.msra.mxu0 %v6655
    %6849 = vmatprep.subr.bf16.mxu0 0
    %6850 = vmatpush2.bf16.msra.mxu0 0
    %6851 = vmatprep.subr.bf16.mxu0 0
    %6852 = vmatpush2.bf16.msra.mxu0 0
    %6853 = vmatprep.subr.bf16.mxu0 0
    %6854 = vmatpush2.bf16.msra.mxu0 0
    %6855 = vmatprep.subr.bf16.mxu0 0
    %6856 = vmatpush2.bf16.msra.mxu0 0
    %6857 = vmatprep.subr.bf16.mxu0 0
    %6858 = vmatpush2.bf16.msra.mxu0 0
    %6859 = vmatprep.subr.bf16.mxu0 0
    %6860 = vmatpush2.bf16.msra.mxu0 0
    %6861 = vmatprep.subr.bf16.mxu0 0
    %6862 = vmatpush2.bf16.msra.mxu0 0
    %6863 = vmatprep.subr.bf16.mxu0 0
    %6864 = vmatpush2.bf16.msra.mxu0 0
    %6865 = vmatprep.mubr.bf16.mxu0 0
    %6866 = vmatmul.mubr.bf16.gmra.mxu0 %v6256
    %v6867 = vpop.f32.mrf.mxu0
    %v6868 = vadd.f32 %v6827, %v6867
    %v6869 = vpop.f32.mrf.mxu0
    %v6870 = vadd.f32 %v6829, %v6869
    %v6871 = vpop.f32.mrf.mxu0
    %v6872 = vpop.f32.mrf.mxu0
    %6873 = vdwg.mxu0
    %6874 = vst [vmem:[#allocation17] sm:$0xff] %v6868
    %6875 = vst [vmem:[#allocation17 + $0x8] sm:$0xff] %v6870
    %6876 = vst [vmem:[#allocation18] sm:$0xff] %v3678
    %6877 = vst [vmem:[#allocation20] sm:$0xff] %v3679
    // Predicated region
    $region66: #{tpu_custom_call.1} parent=1 // pred_check
      _
    $region67: #{tpu_custom_call.1} parent=1 // pred_check_branch
      %6879 = sbr.rel (0) target = $region69
    $region68: #{tpu_custom_call.1} parent=1 // pred_region
      %s6881 = ssub.s32 256, 256
      %6882 = vsyncadd [#allocation10], %s6881
      %s6884 = sshll.u32 [#allocation17], 4
      %s6885 = int_to_ptr.vmem [resolvable:$true] %s6884
      %6887 = dma.vmem_to_hbm [thread:$0]  %s6885, 256, %s11, [#allocation10]
    $region69: #{tpu_custom_call.1} parent=1 // pred_fallthru
      _
    // Predicated region
    $region70: #{tpu_custom_call.1} parent=1 // pred_check
      _
    $region71: #{tpu_custom_call.1} parent=1 // pred_check_branch
      %6889 = sbr.rel (0) target = $region73
    $region72: #{tpu_custom_call.1} parent=1 // pred_region
      %s6891 = ssub.s32 128, 128
      %6892 = vsyncadd [#allocation19], %s6891
      %s6894 = sshll.u32 [#allocation18], 4
      %s6895 = int_to_ptr.vmem [resolvable:$true] %s6894
      %6897 = dma.vmem_to_hbm [thread:$0]  %s6895, 128, %s12, [#allocation19]
    $region73: #{tpu_custom_call.1} parent=1 // pred_fallthru
      _
    // Predicated region
    $region74: #{tpu_custom_call.1} parent=1 // pred_check
      _
    $region75: #{tpu_custom_call.1} parent=1 // pred_check_branch
      %6899 = sbr.rel (0) target = $region77
    $region76: #{tpu_custom_call.1} parent=1 // pred_region
      %s6901 = ssub.s32 128, 128
      %6902 = vsyncadd [#allocation19], %s6901
      %s6904 = sshll.u32 [#allocation20], 4
      %s6905 = int_to_ptr.vmem [resolvable:$true] %s6904
      %6907 = dma.vmem_to_hbm [thread:$0]  %s6905, 128, %s13, [#allocation19]
    $region77: #{tpu_custom_call.1} parent=1 // pred_fallthru
      _
    // Predicated region
    $region78: #{tpu_custom_call.1} parent=1 // pred_check
      _
    $region79: #{tpu_custom_call.1} parent=1 // pred_check_branch
      %6909 = sbr.rel (0) target = $region81
    $region80: #{tpu_custom_call.1} parent=1 // pred_region
      %6910 = dma.done [#allocation10], 256
    $region81: #{tpu_custom_call.1} parent=1 // pred_fallthru
      _
    // Predicated region
    $region82: #{tpu_custom_call.1} parent=1 // pred_check
      _
    $region83: #{tpu_custom_call.1} parent=1 // pred_check_branch
      %6912 = sbr.rel (0) target = $region85
    $region84: #{tpu_custom_call.1} parent=1 // pred_region
      %6913 = dma.done [#allocation19], 128
    $region85: #{tpu_custom_call.1} parent=1 // pred_fallthru
      _
    // Predicated region
    $region86: #{tpu_custom_call.1} parent=1 // pred_check
      _
    $region87: #{tpu_custom_call.1} parent=1 // pred_check_branch
      %6915 = sbr.rel (0) target = $region89
    $region88: #{tpu_custom_call.1} parent=1 // pred_region
      %6916 = dma.done [#allocation19], 128
    $region89: #{tpu_custom_call.1} parent=1 // pred_fallthru
      _
    %6917 = vsyncpa [#allocation9], 1
    %6918 = vsyncpa [#allocation12], 1
    %6919 = vsyncpa [#allocation15], 1
    %6920 = vsyncpa [#allocation10], 1
    %6921 = vsyncpa [#allocation19], 1
  %6922 = vsyncmov [#allocation7]
  %s6923 = vpop.sfrf %6922
  %p6924 = scmp.eq.s32.totalorder %s6923, 0
  %p6925 = pneg %p6924
  %6927 = shalt.err (%p6925)
  %s6928 = scalar_lea.sflag [#allocation7], 1
  %6929 = vsyncmov %s6928
  %s6930 = vpop.sfrf %6929
  %p6931 = scmp.eq.s32.totalorder %s6930, 0
  %p6932 = pneg %p6931
  %6934 = shalt.err (%p6932)
  %s6935 = scalar_lea.sflag [#allocation7], 2
  %6936 = vsyncmov %s6935
  %s6937 = vpop.sfrf %6936
  %p6938 = scmp.eq.s32.totalorder %s6937, 0
  %p6939 = pneg %p6938
  %6941 = shalt.err (%p6939)
  %s6942 = scalar_lea.sflag [#allocation7], 3
  %6943 = vsyncmov %s6942
  %s6944 = vpop.sfrf %6943
  %p6945 = scmp.eq.s32.totalorder %s6944, 0
  %p6946 = pneg %p6945
  %6948 = shalt.err (%p6946)
  %s6949 = scalar_lea.sflag [#allocation7], 4
  %6950 = vsyncmov %s6949
  %s6951 = vpop.sfrf %6950
  %p6952 = scmp.eq.s32.totalorder %s6951, 0
  %p6953 = pneg %p6952
  %6955 = shalt.err (%p6953)

</llo_original>
